<compile_context>
chip_gen: v7x
topology: tpu7x:2x2x1
jax: 0.10.0
libtpu: 0.0.40
codegen_flags: <defaults>
</compile_context>

<pallas_src>
import functools

import jax
import jax.numpy as jnp
from jax.experimental import pallas as pl
from jax.experimental.pallas import tpu as pltpu

PAD = 0
LN_EPS = 1e-6  # ShuttleNet reference LayerNorm eps (torch default would be 1e-5)

_VMEM_SPEC = pl.BlockSpec(memory_space=pltpu.MemorySpace.VMEM)


# ----------------------------------------------------------------------------
# In-kernel helpers
# ----------------------------------------------------------------------------
def _layernorm(x, g, b, eps):
    mu = jnp.mean(x, axis=-1, keepdims=True)
    var = jnp.mean((x - mu) ** 2, axis=-1, keepdims=True)
    return (x - mu) * jax.lax.rsqrt(var + eps) * g + b


def _masked_softmax(s, mask):
    s = jnp.where(mask > 0.5, s, jnp.float32(-1e9))
    s = s - jnp.max(s, axis=-1, keepdims=True)
    e = jnp.exp(s)
    return e / jnp.sum(e, axis=-1, keepdims=True)


def _mha_heads(q, k, v, mask, H, dk, dv):
    """Per-head attention on row-flattened (batch*seq) operands.

    q:(Rq,H*dk) k:(Rk,H*dk) v:(Rk,H*dv) mask:(Rq,Rk) -> (Rq,H*dv).
    Cross-batch score entries are removed by the block-diagonal mask (after softmax they
    underflow to exactly 0), so pure 2-D matmuls are sufficient.  Note: a query row whose
    keys are ALL pad-masked would normalize over B*Rk instead of Rk; such rows are
    meaningless in the reference too (never hit with a non-PAD first token).
    """
    outs = []
    for h in range(H):
        qh = q[:, h * dk:(h + 1) * dk]
        kh = k[:, h * dk:(h + 1) * dk]
        vh = v[:, h * dv:(h + 1) * dv]
        s = jax.lax.dot_general(qh, kh, (((1,), (1,)), ((), ())),
                                preferred_element_type=jnp.float32)
        p = _masked_softmax(s, mask)
        outs.append(jnp.dot(p, vh, preferred_element_type=jnp.float32))
    return jnp.concatenate(outs, axis=-1)


# ----------------------------------------------------------------------------
# Fused DecoderLayer kernel (self-attn + enc-attn + FFN + residuals + LayerNorms)
# ----------------------------------------------------------------------------
def _decoder_layer_kernel(xa_ref, xs_ref, enc_ref, mslf_ref, menc_ref,
                          w_slf_ref, fc_slf_ref, ln1g_ref, ln1b_ref,
                          wq_enc_ref, wkv_enc_ref, fc_enc_ref, ln2g_ref, ln2b_ref,
                          w1_ref, b1_ref, w2_ref, b2_ref, ln3g_ref, ln3b_ref,
                          o_ref, *, H, dk, dv, eps):
    xa = xa_ref[...]                       # (R, d)  area stream (with pos enc)
    xs = xs_ref[...]                       # (R, d)  shot stream (with pos enc)
    Hdk, Hdv = H * dk, H * dv

    # --- disentangled type/area self-attention, collapsed to a single stream -------
    # q = qa+qs, k = ka+ks, v = va+vs all come out of one fused projection matmul.
    x_cat = jnp.concatenate([xa, xs], axis=-1)                                   # (R, 2d)
    qkv = jnp.dot(x_cat, w_slf_ref[...], preferred_element_type=jnp.float32)     # (R, 3*H*dk)
    q = qkv[:, :Hdk]
    k = qkv[:, Hdk:2 * Hdk]
    v = qkv[:, 2 * Hdk:2 * Hdk + Hdv]
    attn1 = _mha_heads(q, k, v, mslf_ref[...], H, dk, dv)                        # (R, H*dv)
    y1 = jnp.dot(attn1, fc_slf_ref[...], preferred_element_type=jnp.float32) + (xa + xs)
    y1 = _layernorm(y1, ln1g_ref[...], ln1b_ref[...], eps)

    # --- decoder-encoder attention ---------------------------------------------------
    q2 = jnp.dot(y1, wq_enc_ref[...], preferred_element_type=jnp.float32)        # (R, H*dk)
    kv2 = jnp.dot(enc_ref[...], wkv_enc_ref[...],
                  preferred_element_type=jnp.float32)                            # (Re, 2*H*dk)
    k2 = kv2[:, :Hdk]
    v2 = kv2[:, Hdk:Hdk + Hdv]
    attn2 = _mha_heads(q2, k2, v2, menc_ref[...], H, dk, dv)                     # (R, H*dv)
    y2 = jnp.dot(attn2, fc_enc_ref[...], preferred_element_type=jnp.float32) + y1
    y2 = _layernorm(y2, ln2g_ref[...], ln2b_ref[...], eps)

    # --- position-wise feed-forward ---------------------------------------------------
    h1 = jnp.maximum(
        jnp.dot(y2, w1_ref[...], preferred_element_type=jnp.float32) + b1_ref[...], 0.0)
    y3 = jnp.dot(h1, w2_ref[...], preferred_element_type=jnp.float32) + b2_ref[...] + y2
    y3 = _layernorm(y3, ln3g_ref[...], ln3b_ref[...], eps)
    o_ref[...] = y3


def _block_diag_mask(m):
    """(B, Lq, Lk) per-batch mask -> (B*Lq, B*Lk) block-diagonal float32 mask."""
    B, Lq, Lk = m.shape
    eye = jnp.eye(B, dtype=jnp.float32)
    full = eye[:, None, :, None] * m.astype(jnp.float32)[:, :, None, :]
    return full.reshape(B * Lq, B * Lk)


def _fuse_layer_weights(p, dk):
    """Host-side weight stacking (runs under the surrounding jit; tiny)."""
    inv_t = 1.0 / (float(dk) ** 0.5)          # fold 1/temperature into q projections
    slf = p["slf"]
    w_slf = jnp.concatenate([
        jnp.concatenate([slf["w_qs_area"] * inv_t, slf["w_ks_area"], slf["w_vs_area"]], axis=1),
        jnp.concatenate([slf["w_qs_shot"] * inv_t, slf["w_ks_shot"], slf["w_vs_shot"]], axis=1),
    ], axis=0)                                                        # (2d, 3*H*dk)
    enc = p["enc"]
    wq_enc = enc["w_qs"] * inv_t                                      # (d, H*dk)
    wkv_enc = jnp.concatenate([enc["w_ks"], enc["w_vs"]], axis=1)     # (d, 2*H*dk)
    return w_slf, wq_enc, wkv_enc


def decoder_layer(p, dec_area, dec_shot, enc_output, slf_mask, H, dk, dv, d_model):
    B, L, _ = dec_area.shape
    Le = enc_output.shape[1]
    w_slf, wq_enc, wkv_enc = _fuse_layer_weights(p, dk)

    xa = dec_area.reshape(B * L, d_model).astype(jnp.float32)
    xs = dec_shot.reshape(B * L, d_model).astype(jnp.float32)
    enc = enc_output.reshape(B * Le, d_model).astype(jnp.float32)
    mslf = _block_diag_mask(slf_mask)                                  # (B*L, B*L)
    menc = _block_diag_mask(jnp.ones((B, L, Le), jnp.float32))         # (B*L, B*Le)

    r2 = lambda a: a.reshape(1, -1).astype(jnp.float32)

    out = pl.pallas_call(
        functools.partial(_decoder_layer_kernel, H=H, dk=dk, dv=dv, eps=LN_EPS),
        out_shape=jax.ShapeDtypeStruct((B * L, d_model), jnp.float32),
        in_specs=[_VMEM_SPEC] * 20,
        out_specs=_VMEM_SPEC,
    )(xa, xs, enc, mslf, menc,
      w_slf, p["slf"]["fc"].astype(jnp.float32), r2(p["slf"]["ln_g"]), r2(p["slf"]["ln_b"]),
      wq_enc, wkv_enc, p["enc"]["fc"].astype(jnp.float32), r2(p["enc"]["ln_g"]), r2(p["enc"]["ln_b"]),
      p["ffn"]["w1"].astype(jnp.float32), r2(p["ffn"]["b1"]),
      p["ffn"]["w2"].astype(jnp.float32), r2(p["ffn"]["b2"]),
      r2(p["ffn"]["ln_g"]), r2(p["ffn"]["ln_b"]))
    return out.reshape(B, L, d_model)


# ----------------------------------------------------------------------------
# Fused GatedFusionLayer kernel
# ----------------------------------------------------------------------------
def _fusion_kernel(xcat_ref, hbd_ref, gcat_ref, sig_ref, o_ref, *, d):
    xc = xcat_ref[...]                                                           # (R, 3d)
    hmat = jnp.tanh(jnp.dot(xc, hbd_ref[...], preferred_element_type=jnp.float32))
    gmat = jax.nn.sigmoid(jnp.dot(xc, gcat_ref[...], preferred_element_type=jnp.float32))
    z = hmat * gmat * sig_ref[...]                                               # (R, 3d)
    o_ref[...] = z[:, :d] + z[:, d:2 * d] + z[:, 2 * d:3 * d]


def pallas_gated_fusion(p, xA, xB, xL):
    B, L, d = xA.shape
    R = B * L
    xcat = jnp.concatenate([xA, xB, xL], axis=-1).reshape(R, 3 * d).astype(jnp.float32)
    zero = jnp.zeros((d, d), jnp.float32)
    # block-diag so one matmul yields [tanh-in for A | B | L]
    hbd = jnp.concatenate([
        jnp.concatenate([p["h1"], zero, zero], axis=1),
        jnp.concatenate([zero, p["h2"], zero], axis=1),
        jnp.concatenate([zero, zero, p["h3"]], axis=1)], axis=0)                 # (3d, 3d)
    gcat = jnp.concatenate([p["g1"], p["g2"], p["g3"]], axis=1)                  # (3d, 3d)
    # constant per-position mixing weights: sigmoid precomputed on the host
    sig = jnp.concatenate([jax.nn.sigmoid(p["w_A"][:L]),
                           jax.nn.sigmoid(p["w_B"][:L]),
                           jax.nn.sigmoid(p["w_L"][:L])], axis=1)                # (L, 3d)
    sig = jnp.tile(sig, (B, 1)).astype(jnp.float32)                              # (R, 3d)

    out = pl.pallas_call(
        functools.partial(_fusion_kernel, d=d),
        out_shape=jax.ShapeDtypeStruct((R, d), jnp.float32),
        in_specs=[_VMEM_SPEC] * 4,
        out_specs=_VMEM_SPEC,
    )(xcat, hbd.astype(jnp.float32), gcat.astype(jnp.float32), sig)
    return out.reshape(B, L, d)


# ----------------------------------------------------------------------------
# Model glue (embeddings, positional encoding, masks, merging, parameter setup)
# ----------------------------------------------------------------------------
def sinusoid_table(n_position, d_hid):
    pos = jnp.arange(n_position, dtype=jnp.float32)[:, None]
    i = jnp.arange(d_hid)[None, :]
    angle = pos / jnp.power(10000.0, (2 * (i // 2)).astype(jnp.float32) / d_hid)
    return jnp.where(i % 2 == 0, jnp.sin(angle), jnp.cos(angle))


def alternatemerge(seq_A, seq_B, merge_len, player):
    B, seq_len, d = seq_A.shape
    merged = jnp.zeros((B, merge_len, d), dtype=seq_A.dtype)
    if seq_len * 2 == merge_len - 1:
        merged = merged.at[:, 1::2, :].set(seq_A[:, :seq_len, :])
        merged = merged.at[:, 2::2, :].set(seq_B[:, :seq_len, :])
    elif seq_len * 2 - 1 == merge_len:
        merged = merged.at[:, ::2, :].set(seq_A[:, :seq_len, :])
        merged = merged.at[:, 1::2, :].set(seq_B[:, :merge_len - seq_len, :])
    elif seq_len * 2 == merge_len:
        if player == "A":
            merged = merged.at[:, ::2, :].set(seq_A[:, :seq_len, :])
            merged = merged.at[:, 1::2, :].set(seq_B[:, :seq_len, :])
        elif player == "B":
            merged = merged.at[:, 1::2, :].set(seq_A[:, :seq_len, :])
            merged = merged.at[:, 2::2, :].set(seq_B[:, :seq_len - 1, :])
        else:
            raise NotImplementedError
    else:
        raise NotImplementedError
    return merged


def init_params(key, cfg):
    d = cfg["encode_dim"]
    H, dk, dv, d_inner = 2, d, d, d * 2
    keys = iter(jax.random.split(key, 64))

    def w(shape, scale=0.1):
        return scale * jax.random.normal(next(keys), shape, jnp.float32)

    params = {
        "emb_type": w((cfg["shot_num"], cfg["var_dim"])).at[PAD].set(0.0),
        "emb_backhand": w((cfg["backhand_num"], cfg["var_dim"])).at[PAD].set(0.0),
        "area_w": w((2, cfg["area_dim"])), "area_b": w((cfg["area_dim"],)),
        "time_w": w((1, cfg["area_dim"])), "time_b": w((cfg["area_dim"],)),
        "angle_w": w((1, cfg["area_dim"])), "angle_b": w((cfg["area_dim"],)),
        "dist_w": w((1, cfg["area_dim"])), "dist_b": w((cfg["area_dim"],)),
    }

    def dec_layer_params():
        return {
            "slf": {
                "w_qs_area": w((d, H * dk)), "w_ks_area": w((d, H * dk)), "w_vs_area": w((d, H * dv)),
                "w_qs_shot": w((d, H * dk)), "w_ks_shot": w((d, H * dk)), "w_vs_shot": w((d, H * dv)),
                "fc": w((H * dv, d)),
                "ln_g": jnp.ones((d,), jnp.float32), "ln_b": jnp.zeros((d,), jnp.float32),
            },
            "enc": {
                "w_qs": w((d, H * dk)), "w_ks": w((d, H * dk)), "w_vs": w((d, H * dv)),
                "fc": w((H * dv, d)),
                "ln_g": jnp.ones((d,), jnp.float32), "ln_b": jnp.zeros((d,), jnp.float32),
            },
            "ffn": {
                "w1": w((d, d_inner)), "b1": w((d_inner,)),
                "w2": w((d_inner, d)), "b2": w((d,)),
                "ln_g": jnp.ones((d,), jnp.float32), "ln_b": jnp.zeros((d,), jnp.float32),
            },
        }

    params["global_layer"] = dec_layer_params()
    params["local_layer"] = dec_layer_params()

    n_pos = cfg["max_ball_round"] + 1
    decode_length = n_pos - cfg["encode_length"]
    params["fusion"] = {
        "h1": w((d, d)), "h2": w((d, d)), "h3": w((d, d)),
        "g1": w((3 * d, d)), "g2": w((3 * d, d)), "g3": w((3 * d, d)),
        "w_A": jnp.zeros((decode_length, d), jnp.float32),
        "w_B": jnp.zeros((decode_length, d), jnp.float32),
        "w_L": jnp.zeros((decode_length, d), jnp.float32),
    }
    params["pos_table"] = sinusoid_table(n_pos, cfg["shot_dim"])
    return params


def shotgen_decoder_forward(params, cfg, input_dict,
                            encode_local_output, encode_global_A, encode_global_B):
    d = cfg["encode_dim"]
    H, dk, dv = 2, d, d
    B, L = input_dict["type"].shape

    area = jnp.stack([input_dict["landing_x"], input_dict["landing_y"]], axis=-1).astype(jnp.float32)
    time_diff = input_dict["time_diff"][..., None].astype(jnp.float32)
    shot_angle = input_dict["shot_angle"][..., None].astype(jnp.float32)
    distance = input_dict["distance"][..., None].astype(jnp.float32)

    cont = ("landing_x", "landing_y", "time_diff", "shot_angle", "distance", "area")
    token_keys = [k for k in input_dict if k not in cont]

    def make_mask(tok):  # get_pad_mask & get_subsequent_mask
        Lt = tok.shape[1]
        pad = (tok != PAD)[:, None, :]
        sub = jnp.tril(jnp.ones((Lt, Lt), dtype=bool))[None]
        return pad & sub

    # loop semantics of the reference: the masks used are those from the last key
    trg_local_mask = trg_global_A_mask = trg_global_B_mask = None
    for k in token_keys:
        trg_local_mask = make_mask(input_dict[k])
        trg_global_A_mask = make_mask(input_dict[k][:, ::2])
        trg_global_B_mask = make_mask(input_dict[k][:, 1::2])

    relu = lambda x: jnp.maximum(x, 0.0)
    emb = {
        "area": relu(area @ params["area_w"] + params["area_b"]),
        "time_diff": relu(time_diff @ params["time_w"] + params["time_b"]),
        "shot_angle": relu(shot_angle @ params["angle_w"] + params["angle_b"]),
        "distance": relu(distance @ params["dist_w"] + params["dist_b"]),
        "type": params["emb_type"][input_dict["type"]],
        "backhand": params["emb_backhand"][input_dict["backhand"]],
    }

    h_a = emb["area"]
    h_s = emb["type"]
    for k in emb:
        if k in ("area", "type"):
            continue
        h_a = h_a + emb[k]
        h_s = h_s + emb[k]

    h_a_A, h_a_B = h_a[:, ::2], h_a[:, 1::2]
    h_s_A, h_s_B = h_s[:, ::2], h_s[:, 1::2]

    pos = params["pos_table"]
    enc_len = cfg["encode_length"]

    def add_pos(x):  # PositionalEncoding, mode='decode' (offset by encode_length)
        Lx = x.shape[1]
        return x + pos[enc_len:enc_len + Lx][None]

    dec_area, dec_shot = add_pos(h_a), add_pos(h_s)
    dec_area_A, dec_area_B = add_pos(h_a_A), add_pos(h_a_B)
    dec_shot_A, dec_shot_B = add_pos(h_s_A), add_pos(h_s_B)

    decode_global_A = decoder_layer(params["global_layer"], dec_area_A, dec_shot_A,
                                    encode_global_A, trg_global_A_mask, H, dk, dv, d)
    if dec_area_B.shape[1] != 0:
        decode_global_B = decoder_layer(params["global_layer"], dec_area_B, dec_shot_B,
                                        encode_global_B, trg_global_B_mask, H, dk, dv, d)
    decode_local_output = decoder_layer(params["local_layer"], dec_area, dec_shot,
                                        encode_local_output, trg_local_mask, H, dk, dv, d)

    Lfull = decode_local_output.shape[1]
    if dec_area_B.shape[1] != 0:
        # NB: the PyTorch reference literally calls alternatemerge(A, A, ...) / (B, B, ...).
        decode_output_A = alternatemerge(decode_global_A, decode_global_A, Lfull, "A")
        decode_output_B = alternatemerge(decode_global_B, decode_global_B, Lfull, "B")
    else:
        decode_output_A = decode_global_A
        decode_output_B = jnp.zeros_like(decode_local_output)

    return pallas_gated_fusion(params["fusion"], decode_output_A, decode_output_B,
                               decode_local_output)


# ----------------------------------------------------------------------------
if __name__ == "__main__":
    cfg = dict(var_dim=32, area_dim=32, shot_dim=32, encode_dim=32,
               encode_length=4, max_ball_round=16, shot_num=12, backhand_num=4)
    key = jax.random.PRNGKey(0)
    kp, k1, k2, k3, k4, k5, k6, k7, k8, k9, k10 = jax.random.split(key, 11)
    params = init_params(kp, cfg)

    B, L, d = 2, 8, cfg["encode_dim"]
    input_dict = {
        "type": jax.random.randint(k1, (B, L), 1, cfg["shot_num"]),          # nonzero -> no PAD
        "backhand": jax.random.randint(k2, (B, L), 1, cfg["backhand_num"]),
        "landing_x": jax.random.normal(k3, (B, L), jnp.float32),
        "landing_y": jax.random.normal(k4, (B, L), jnp.float32),
        "time_diff": jax.random.uniform(k5, (B, L), jnp.float32),
        "shot_angle": jax.random.uniform(k6, (B, L), jnp.float32),
        "distance": jax.random.uniform(k7, (B, L), jnp.float32),
    }
    enc_len = cfg["encode_length"]
    encode_local_output = jax.random.normal(k8, (B, enc_len, d), jnp.float32)
    encode_global_A = jax.random.normal(k9, (B, (enc_len + 1) // 2, d), jnp.float32)
    encode_global_B = jax.random.normal(k10, (B, enc_len // 2, d), jnp.float32)

    fwd = jax.jit(lambda p, idict, el, ga, gb:
                  shotgen_decoder_forward(p, cfg, idict, el, ga, gb))
    out = fwd(params, input_dict, encode_local_output, encode_global_A, encode_global_B)
    out = jax.block_until_ready(out)
    assert out.shape == (B, L, d), out.shape
    assert bool(jnp.all(jnp.isfinite(out)))
    print("KERNEL_OK")
</pallas_src>

<mosaic_0001>
module attributes {stable_mosaic.version = 11 : i64} {
  func.func @_decoder_layer_kernel(%arg0: memref<16x32xf32, #tpu.memory_space<vmem>>, %arg1: memref<16x32xf32, #tpu.memory_space<vmem>>, %arg2: memref<8x32xf32, #tpu.memory_space<vmem>>, %arg3: memref<16x16xf32, #tpu.memory_space<vmem>>, %arg4: memref<16x8xf32, #tpu.memory_space<vmem>>, %arg5: memref<64x192xf32, #tpu.memory_space<vmem>>, %arg6: memref<64x32xf32, #tpu.memory_space<vmem>>, %arg7: memref<1x32xf32, #tpu.memory_space<vmem>>, %arg8: memref<1x32xf32, #tpu.memory_space<vmem>>, %arg9: memref<32x64xf32, #tpu.memory_space<vmem>>, %arg10: memref<32x128xf32, #tpu.memory_space<vmem>>, %arg11: memref<64x32xf32, #tpu.memory_space<vmem>>, %arg12: memref<1x32xf32, #tpu.memory_space<vmem>>, %arg13: memref<1x32xf32, #tpu.memory_space<vmem>>, %arg14: memref<32x64xf32, #tpu.memory_space<vmem>>, %arg15: memref<1x64xf32, #tpu.memory_space<vmem>>, %arg16: memref<64x32xf32, #tpu.memory_space<vmem>>, %arg17: memref<1x32xf32, #tpu.memory_space<vmem>>, %arg18: memref<1x32xf32, #tpu.memory_space<vmem>>, %arg19: memref<1x32xf32, #tpu.memory_space<vmem>>, %arg20: memref<16x32xf32, #tpu.memory_space<vmem>>) attributes {dimension_semantics = [], scalar_prefetch = 0 : i64, scratch_operands = 0 : i64, tpu.core_type = #tpu.core_type<tc>} {
    %c0 = arith.constant 0 : index
    %c0_0 = arith.constant 0 : index
    %0 = vector.load %arg0[%c0, %c0_0] : memref<16x32xf32, #tpu.memory_space<vmem>>, vector<16x32xf32>
    %c0_1 = arith.constant 0 : index
    %c0_2 = arith.constant 0 : index
    %1 = vector.load %arg1[%c0_1, %c0_2] : memref<16x32xf32, #tpu.memory_space<vmem>>, vector<16x32xf32>
    %2 = tpu.concatenate %0, %1 in 1 : vector<16x32xf32>, vector<16x32xf32> -> vector<16x64xf32>
    %c0_3 = arith.constant 0 : index
    %c0_4 = arith.constant 0 : index
    %3 = vector.load %arg5[%c0_3, %c0_4] : memref<64x192xf32, #tpu.memory_space<vmem>>, vector<64x192xf32>
    %cst = arith.constant dense<0.000000e+00> : vector<16x192xf32>
    %4 = tpu.matmul %2, %3, %cst {dimension_numbers = #tpu.dot_dimension_numbers<[1], [0], [0], [1], [0, 0, 1, 1], [], []>} : vector<16x64xf32>, vector<64x192xf32>, vector<16x192xf32> -> vector<16x192xf32>
    %5 = vector.extract_strided_slice %4 {offsets = [0, 0], sizes = [16, 64], strides = [1, 1]} : vector<16x192xf32> to vector<16x64xf32>
    %6 = vector.extract_strided_slice %4 {offsets = [0, 64], sizes = [16, 64], strides = [1, 1]} : vector<16x192xf32> to vector<16x64xf32>
    %7 = vector.extract_strided_slice %4 {offsets = [0, 128], sizes = [16, 64], strides = [1, 1]} : vector<16x192xf32> to vector<16x64xf32>
    %c0_5 = arith.constant 0 : index
    %c0_6 = arith.constant 0 : index
    %8 = vector.load %arg3[%c0_5, %c0_6] : memref<16x16xf32, #tpu.memory_space<vmem>>, vector<16x16xf32>
    %9 = vector.extract_strided_slice %5 {offsets = [0, 0], sizes = [16, 32], strides = [1, 1]} : vector<16x64xf32> to vector<16x32xf32>
    %10 = vector.extract_strided_slice %6 {offsets = [0, 0], sizes = [16, 32], strides = [1, 1]} : vector<16x64xf32> to vector<16x32xf32>
    %11 = vector.extract_strided_slice %7 {offsets = [0, 0], sizes = [16, 32], strides = [1, 1]} : vector<16x64xf32> to vector<16x32xf32>
    %cst_7 = arith.constant dense<0.000000e+00> : vector<16x16xf32>
    %12 = tpu.matmul %9, %10, %cst_7 {dimension_numbers = #tpu.dot_dimension_numbers<[1], [1], [0], [0], [0, 0, 1, 0], [], []>} : vector<16x32xf32>, vector<16x32xf32>, vector<16x16xf32> -> vector<16x16xf32>
    %cst_8 = arith.constant 5.000000e-01 : f32
    %13 = vector.broadcast %cst_8 : f32 to vector<16x16xf32>
    %14 = arith.cmpf ogt, %8, %13 : vector<16x16xf32>
    %cst_9 = arith.constant -1.000000e+09 : f32
    %15 = vector.broadcast %cst_9 : f32 to vector<16x16xf32>
    %16 = arith.select %14, %12, %15 : vector<16x16xi1>, vector<16x16xf32>
    %cst_10 = arith.constant dense<0xFF800000> : vector<16xf32>
    %17 = vector.multi_reduction <maximumf>, %16, %cst_10 [1] : vector<16x16xf32> to vector<16xf32>
    %18 = vector.shape_cast %17 : vector<16xf32> to vector<16x1xf32>
    %19 = vector.broadcast %18 : vector<16x1xf32> to vector<16x16xf32>
    %20 = arith.subf %16, %19 : vector<16x16xf32>
    %21 = math.exp %20 : vector<16x16xf32>
    %cst_11 = arith.constant dense<0.000000e+00> : vector<16xf32>
    %22 = vector.multi_reduction <add>, %21, %cst_11 [1] : vector<16x16xf32> to vector<16xf32>
    %23 = vector.shape_cast %22 : vector<16xf32> to vector<16x1xf32>
    %24 = vector.broadcast %23 : vector<16x1xf32> to vector<16x16xf32>
    %25 = arith.divf %21, %24 : vector<16x16xf32>
    %cst_12 = arith.constant dense<0.000000e+00> : vector<16x32xf32>
    %26 = tpu.matmul %25, %11, %cst_12 {dimension_numbers = #tpu.dot_dimension_numbers<[1], [0], [0], [1], [0, 0, 1, 1], [], []>} : vector<16x16xf32>, vector<16x32xf32>, vector<16x32xf32> -> vector<16x32xf32>
    %27 = vector.extract_strided_slice %5 {offsets = [0, 32], sizes = [16, 32], strides = [1, 1]} : vector<16x64xf32> to vector<16x32xf32>
    %28 = vector.extract_strided_slice %6 {offsets = [0, 32], sizes = [16, 32], strides = [1, 1]} : vector<16x64xf32> to vector<16x32xf32>
    %29 = vector.extract_strided_slice %7 {offsets = [0, 32], sizes = [16, 32], strides = [1, 1]} : vector<16x64xf32> to vector<16x32xf32>
    %cst_13 = arith.constant dense<0.000000e+00> : vector<16x16xf32>
    %30 = tpu.matmul %27, %28, %cst_13 {dimension_numbers = #tpu.dot_dimension_numbers<[1], [1], [0], [0], [0, 0, 1, 0], [], []>} : vector<16x32xf32>, vector<16x32xf32>, vector<16x16xf32> -> vector<16x16xf32>
    %cst_14 = arith.constant 5.000000e-01 : f32
    %31 = vector.broadcast %cst_14 : f32 to vector<16x16xf32>
    %32 = arith.cmpf ogt, %8, %31 : vector<16x16xf32>
    %cst_15 = arith.constant -1.000000e+09 : f32
    %33 = vector.broadcast %cst_15 : f32 to vector<16x16xf32>
    %34 = arith.select %32, %30, %33 : vector<16x16xi1>, vector<16x16xf32>
    %cst_16 = arith.constant dense<0xFF800000> : vector<16xf32>
    %35 = vector.multi_reduction <maximumf>, %34, %cst_16 [1] : vector<16x16xf32> to vector<16xf32>
    %36 = vector.shape_cast %35 : vector<16xf32> to vector<16x1xf32>
    %37 = vector.broadcast %36 : vector<16x1xf32> to vector<16x16xf32>
    %38 = arith.subf %34, %37 : vector<16x16xf32>
    %39 = math.exp %38 : vector<16x16xf32>
    %cst_17 = arith.constant dense<0.000000e+00> : vector<16xf32>
    %40 = vector.multi_reduction <add>, %39, %cst_17 [1] : vector<16x16xf32> to vector<16xf32>
    %41 = vector.shape_cast %40 : vector<16xf32> to vector<16x1xf32>
    %42 = vector.broadcast %41 : vector<16x1xf32> to vector<16x16xf32>
    %43 = arith.divf %39, %42 : vector<16x16xf32>
    %cst_18 = arith.constant dense<0.000000e+00> : vector<16x32xf32>
    %44 = tpu.matmul %43, %29, %cst_18 {dimension_numbers = #tpu.dot_dimension_numbers<[1], [0], [0], [1], [0, 0, 1, 1], [], []>} : vector<16x16xf32>, vector<16x32xf32>, vector<16x32xf32> -> vector<16x32xf32>
    %45 = tpu.concatenate %26, %44 in 1 : vector<16x32xf32>, vector<16x32xf32> -> vector<16x64xf32>
    %c0_19 = arith.constant 0 : index
    %c0_20 = arith.constant 0 : index
    %46 = vector.load %arg6[%c0_19, %c0_20] : memref<64x32xf32, #tpu.memory_space<vmem>>, vector<64x32xf32>
    %cst_21 = arith.constant dense<0.000000e+00> : vector<16x32xf32>
    %47 = tpu.matmul %45, %46, %cst_21 {dimension_numbers = #tpu.dot_dimension_numbers<[1], [0], [0], [1], [0, 0, 1, 1], [], []>} : vector<16x64xf32>, vector<64x32xf32>, vector<16x32xf32> -> vector<16x32xf32>
    %48 = arith.addf %0, %1 : vector<16x32xf32>
    %49 = arith.addf %47, %48 : vector<16x32xf32>
    %c0_22 = arith.constant 0 : index
    %c0_23 = arith.constant 0 : index
    %50 = vector.load %arg7[%c0_22, %c0_23] : memref<1x32xf32, #tpu.memory_space<vmem>>, vector<1x32xf32>
    %c0_24 = arith.constant 0 : index
    %c0_25 = arith.constant 0 : index
    %51 = vector.load %arg8[%c0_24, %c0_25] : memref<1x32xf32, #tpu.memory_space<vmem>>, vector<1x32xf32>
    %cst_26 = arith.constant dense<0.000000e+00> : vector<16xf32>
    %52 = vector.multi_reduction <add>, %49, %cst_26 [1] : vector<16x32xf32> to vector<16xf32>
    %53 = vector.shape_cast %52 : vector<16xf32> to vector<16x1xf32>
    %cst_27 = arith.constant 3.200000e+01 : f32
    %54 = vector.broadcast %cst_27 : f32 to vector<16x1xf32>
    %55 = arith.divf %53, %54 : vector<16x1xf32>
    %56 = vector.broadcast %55 : vector<16x1xf32> to vector<16x32xf32>
    %57 = arith.subf %49, %56 : vector<16x32xf32>
    %58 = arith.mulf %57, %57 : vector<16x32xf32>
    %cst_28 = arith.constant dense<0.000000e+00> : vector<16xf32>
    %59 = vector.multi_reduction <add>, %58, %cst_28 [1] : vector<16x32xf32> to vector<16xf32>
    %60 = vector.shape_cast %59 : vector<16xf32> to vector<16x1xf32>
    %cst_29 = arith.constant 3.200000e+01 : f32
    %61 = vector.broadcast %cst_29 : f32 to vector<16x1xf32>
    %62 = arith.divf %60, %61 : vector<16x1xf32>
    %63 = vector.broadcast %55 : vector<16x1xf32> to vector<16x32xf32>
    %64 = arith.subf %49, %63 : vector<16x32xf32>
    %cst_30 = arith.constant 9.99999997E-7 : f32
    %65 = vector.broadcast %cst_30 : f32 to vector<16x1xf32>
    %66 = arith.addf %62, %65 : vector<16x1xf32>
    %67 = math.rsqrt %66 : vector<16x1xf32>
    %68 = vector.broadcast %67 : vector<16x1xf32> to vector<16x32xf32>
    %69 = arith.mulf %64, %68 : vector<16x32xf32>
    %70 = vector.broadcast %50 : vector<1x32xf32> to vector<16x32xf32>
    %71 = arith.mulf %69, %70 : vector<16x32xf32>
    %72 = vector.broadcast %51 : vector<1x32xf32> to vector<16x32xf32>
    %73 = arith.addf %71, %72 : vector<16x32xf32>
    %c0_31 = arith.constant 0 : index
    %c0_32 = arith.constant 0 : index
    %74 = vector.load %arg9[%c0_31, %c0_32] : memref<32x64xf32, #tpu.memory_space<vmem>>, vector<32x64xf32>
    %cst_33 = arith.constant dense<0.000000e+00> : vector<16x64xf32>
    %75 = tpu.matmul %73, %74, %cst_33 {dimension_numbers = #tpu.dot_dimension_numbers<[1], [0], [0], [1], [0, 0, 1, 1], [], []>} : vector<16x32xf32>, vector<32x64xf32>, vector<16x64xf32> -> vector<16x64xf32>
    %c0_34 = arith.constant 0 : index
    %c0_35 = arith.constant 0 : index
    %76 = vector.load %arg2[%c0_34, %c0_35] : memref<8x32xf32, #tpu.memory_space<vmem>>, vector<8x32xf32>
    %c0_36 = arith.constant 0 : index
    %c0_37 = arith.constant 0 : index
    %77 = vector.load %arg10[%c0_36, %c0_37] : memref<32x128xf32, #tpu.memory_space<vmem>>, vector<32x128xf32>
    %cst_38 = arith.constant dense<0.000000e+00> : vector<8x128xf32>
    %78 = tpu.matmul %76, %77, %cst_38 {dimension_numbers = #tpu.dot_dimension_numbers<[1], [0], [0], [1], [0, 0, 1, 1], [], []>} : vector<8x32xf32>, vector<32x128xf32>, vector<8x128xf32> -> vector<8x128xf32>
    %79 = vector.extract_strided_slice %78 {offsets = [0, 0], sizes = [8, 64], strides = [1, 1]} : vector<8x128xf32> to vector<8x64xf32>
    %80 = vector.extract_strided_slice %78 {offsets = [0, 64], sizes = [8, 64], strides = [1, 1]} : vector<8x128xf32> to vector<8x64xf32>
    %c0_39 = arith.constant 0 : index
    %c0_40 = arith.constant 0 : index
    %81 = vector.load %arg4[%c0_39, %c0_40] : memref<16x8xf32, #tpu.memory_space<vmem>>, vector<16x8xf32>
    %82 = vector.extract_strided_slice %75 {offsets = [0, 0], sizes = [16, 32], strides = [1, 1]} : vector<16x64xf32> to vector<16x32xf32>
    %83 = vector.extract_strided_slice %79 {offsets = [0, 0], sizes = [8, 32], strides = [1, 1]} : vector<8x64xf32> to vector<8x32xf32>
    %84 = vector.extract_strided_slice %80 {offsets = [0, 0], sizes = [8, 32], strides = [1, 1]} : vector<8x64xf32> to vector<8x32xf32>
    %cst_41 = arith.constant dense<0.000000e+00> : vector<16x8xf32>
    %85 = tpu.matmul %82, %83, %cst_41 {dimension_numbers = #tpu.dot_dimension_numbers<[1], [1], [0], [0], [0, 0, 1, 0], [], []>} : vector<16x32xf32>, vector<8x32xf32>, vector<16x8xf32> -> vector<16x8xf32>
    %cst_42 = arith.constant 5.000000e-01 : f32
    %86 = vector.broadcast %cst_42 : f32 to vector<16x8xf32>
    %87 = arith.cmpf ogt, %81, %86 : vector<16x8xf32>
    %cst_43 = arith.constant -1.000000e+09 : f32
    %88 = vector.broadcast %cst_43 : f32 to vector<16x8xf32>
    %89 = arith.select %87, %85, %88 : vector<16x8xi1>, vector<16x8xf32>
    %cst_44 = arith.constant dense<0xFF800000> : vector<16xf32>
    %90 = vector.multi_reduction <maximumf>, %89, %cst_44 [1] : vector<16x8xf32> to vector<16xf32>
    %91 = vector.shape_cast %90 : vector<16xf32> to vector<16x1xf32>
    %92 = vector.broadcast %91 : vector<16x1xf32> to vector<16x8xf32>
    %93 = arith.subf %89, %92 : vector<16x8xf32>
    %94 = math.exp %93 : vector<16x8xf32>
    %cst_45 = arith.constant dense<0.000000e+00> : vector<16xf32>
    %95 = vector.multi_reduction <add>, %94, %cst_45 [1] : vector<16x8xf32> to vector<16xf32>
    %96 = vector.shape_cast %95 : vector<16xf32> to vector<16x1xf32>
    %97 = vector.broadcast %96 : vector<16x1xf32> to vector<16x8xf32>
    %98 = arith.divf %94, %97 : vector<16x8xf32>
    %cst_46 = arith.constant dense<0.000000e+00> : vector<16x32xf32>
    %99 = tpu.matmul %98, %84, %cst_46 {dimension_numbers = #tpu.dot_dimension_numbers<[1], [0], [0], [1], [0, 0, 1, 1], [], []>} : vector<16x8xf32>, vector<8x32xf32>, vector<16x32xf32> -> vector<16x32xf32>
    %100 = vector.extract_strided_slice %75 {offsets = [0, 32], sizes = [16, 32], strides = [1, 1]} : vector<16x64xf32> to vector<16x32xf32>
    %101 = vector.extract_strided_slice %79 {offsets = [0, 32], sizes = [8, 32], strides = [1, 1]} : vector<8x64xf32> to vector<8x32xf32>
    %102 = vector.extract_strided_slice %80 {offsets = [0, 32], sizes = [8, 32], strides = [1, 1]} : vector<8x64xf32> to vector<8x32xf32>
    %cst_47 = arith.constant dense<0.000000e+00> : vector<16x8xf32>
    %103 = tpu.matmul %100, %101, %cst_47 {dimension_numbers = #tpu.dot_dimension_numbers<[1], [1], [0], [0], [0, 0, 1, 0], [], []>} : vector<16x32xf32>, vector<8x32xf32>, vector<16x8xf32> -> vector<16x8xf32>
    %cst_48 = arith.constant 5.000000e-01 : f32
    %104 = vector.broadcast %cst_48 : f32 to vector<16x8xf32>
    %105 = arith.cmpf ogt, %81, %104 : vector<16x8xf32>
    %cst_49 = arith.constant -1.000000e+09 : f32
    %106 = vector.broadcast %cst_49 : f32 to vector<16x8xf32>
    %107 = arith.select %105, %103, %106 : vector<16x8xi1>, vector<16x8xf32>
    %cst_50 = arith.constant dense<0xFF800000> : vector<16xf32>
    %108 = vector.multi_reduction <maximumf>, %107, %cst_50 [1] : vector<16x8xf32> to vector<16xf32>
    %109 = vector.shape_cast %108 : vector<16xf32> to vector<16x1xf32>
    %110 = vector.broadcast %109 : vector<16x1xf32> to vector<16x8xf32>
    %111 = arith.subf %107, %110 : vector<16x8xf32>
    %112 = math.exp %111 : vector<16x8xf32>
    %cst_51 = arith.constant dense<0.000000e+00> : vector<16xf32>
    %113 = vector.multi_reduction <add>, %112, %cst_51 [1] : vector<16x8xf32> to vector<16xf32>
    %114 = vector.shape_cast %113 : vector<16xf32> to vector<16x1xf32>
    %115 = vector.broadcast %114 : vector<16x1xf32> to vector<16x8xf32>
    %116 = arith.divf %112, %115 : vector<16x8xf32>
    %cst_52 = arith.constant dense<0.000000e+00> : vector<16x32xf32>
    %117 = tpu.matmul %116, %102, %cst_52 {dimension_numbers = #tpu.dot_dimension_numbers<[1], [0], [0], [1], [0, 0, 1, 1], [], []>} : vector<16x8xf32>, vector<8x32xf32>, vector<16x32xf32> -> vector<16x32xf32>
    %118 = tpu.concatenate %99, %117 in 1 : vector<16x32xf32>, vector<16x32xf32> -> vector<16x64xf32>
    %c0_53 = arith.constant 0 : index
    %c0_54 = arith.constant 0 : index
    %119 = vector.load %arg11[%c0_53, %c0_54] : memref<64x32xf32, #tpu.memory_space<vmem>>, vector<64x32xf32>
    %cst_55 = arith.constant dense<0.000000e+00> : vector<16x32xf32>
    %120 = tpu.matmul %118, %119, %cst_55 {dimension_numbers = #tpu.dot_dimension_numbers<[1], [0], [0], [1], [0, 0, 1, 1], [], []>} : vector<16x64xf32>, vector<64x32xf32>, vector<16x32xf32> -> vector<16x32xf32>
    %121 = arith.addf %120, %73 : vector<16x32xf32>
    %c0_56 = arith.constant 0 : index
    %c0_57 = arith.constant 0 : index
    %122 = vector.load %arg12[%c0_56, %c0_57] : memref<1x32xf32, #tpu.memory_space<vmem>>, vector<1x32xf32>
    %c0_58 = arith.constant 0 : index
    %c0_59 = arith.constant 0 : index
    %123 = vector.load %arg13[%c0_58, %c0_59] : memref<1x32xf32, #tpu.memory_space<vmem>>, vector<1x32xf32>
    %cst_60 = arith.constant dense<0.000000e+00> : vector<16xf32>
    %124 = vector.multi_reduction <add>, %121, %cst_60 [1] : vector<16x32xf32> to vector<16xf32>
    %125 = vector.shape_cast %124 : vector<16xf32> to vector<16x1xf32>
    %cst_61 = arith.constant 3.200000e+01 : f32
    %126 = vector.broadcast %cst_61 : f32 to vector<16x1xf32>
    %127 = arith.divf %125, %126 : vector<16x1xf32>
    %128 = vector.broadcast %127 : vector<16x1xf32> to vector<16x32xf32>
    %129 = arith.subf %121, %128 : vector<16x32xf32>
    %130 = arith.mulf %129, %129 : vector<16x32xf32>
    %cst_62 = arith.constant dense<0.000000e+00> : vector<16xf32>
    %131 = vector.multi_reduction <add>, %130, %cst_62 [1] : vector<16x32xf32> to vector<16xf32>
    %132 = vector.shape_cast %131 : vector<16xf32> to vector<16x1xf32>
    %cst_63 = arith.constant 3.200000e+01 : f32
    %133 = vector.broadcast %cst_63 : f32 to vector<16x1xf32>
    %134 = arith.divf %132, %133 : vector<16x1xf32>
    %135 = vector.broadcast %127 : vector<16x1xf32> to vector<16x32xf32>
    %136 = arith.subf %121, %135 : vector<16x32xf32>
    %cst_64 = arith.constant 9.99999997E-7 : f32
    %137 = vector.broadcast %cst_64 : f32 to vector<16x1xf32>
    %138 = arith.addf %134, %137 : vector<16x1xf32>
    %139 = math.rsqrt %138 : vector<16x1xf32>
    %140 = vector.broadcast %139 : vector<16x1xf32> to vector<16x32xf32>
    %141 = arith.mulf %136, %140 : vector<16x32xf32>
    %142 = vector.broadcast %122 : vector<1x32xf32> to vector<16x32xf32>
    %143 = arith.mulf %141, %142 : vector<16x32xf32>
    %144 = vector.broadcast %123 : vector<1x32xf32> to vector<16x32xf32>
    %145 = arith.addf %143, %144 : vector<16x32xf32>
    %c0_65 = arith.constant 0 : index
    %c0_66 = arith.constant 0 : index
    %146 = vector.load %arg14[%c0_65, %c0_66] : memref<32x64xf32, #tpu.memory_space<vmem>>, vector<32x64xf32>
    %cst_67 = arith.constant dense<0.000000e+00> : vector<16x64xf32>
    %147 = tpu.matmul %145, %146, %cst_67 {dimension_numbers = #tpu.dot_dimension_numbers<[1], [0], [0], [1], [0, 0, 1, 1], [], []>} : vector<16x32xf32>, vector<32x64xf32>, vector<16x64xf32> -> vector<16x64xf32>
    %c0_68 = arith.constant 0 : index
    %c0_69 = arith.constant 0 : index
    %148 = vector.load %arg15[%c0_68, %c0_69] : memref<1x64xf32, #tpu.memory_space<vmem>>, vector<1x64xf32>
    %149 = vector.broadcast %148 : vector<1x64xf32> to vector<16x64xf32>
    %150 = arith.addf %147, %149 : vector<16x64xf32>
    %cst_70 = arith.constant 0.000000e+00 : f32
    %151 = vector.broadcast %cst_70 : f32 to vector<16x64xf32>
    %152 = arith.maximumf %150, %151 : vector<16x64xf32>
    %c0_71 = arith.constant 0 : index
    %c0_72 = arith.constant 0 : index
    %153 = vector.load %arg16[%c0_71, %c0_72] : memref<64x32xf32, #tpu.memory_space<vmem>>, vector<64x32xf32>
    %cst_73 = arith.constant dense<0.000000e+00> : vector<16x32xf32>
    %154 = tpu.matmul %152, %153, %cst_73 {dimension_numbers = #tpu.dot_dimension_numbers<[1], [0], [0], [1], [0, 0, 1, 1], [], []>} : vector<16x64xf32>, vector<64x32xf32>, vector<16x32xf32> -> vector<16x32xf32>
    %c0_74 = arith.constant 0 : index
    %c0_75 = arith.constant 0 : index
    %155 = vector.load %arg17[%c0_74, %c0_75] : memref<1x32xf32, #tpu.memory_space<vmem>>, vector<1x32xf32>
    %156 = vector.broadcast %155 : vector<1x32xf32> to vector<16x32xf32>
    %157 = arith.addf %154, %156 : vector<16x32xf32>
    %158 = arith.addf %157, %145 : vector<16x32xf32>
    %c0_76 = arith.constant 0 : index
    %c0_77 = arith.constant 0 : index
    %159 = vector.load %arg18[%c0_76, %c0_77] : memref<1x32xf32, #tpu.memory_space<vmem>>, vector<1x32xf32>
    %c0_78 = arith.constant 0 : index
    %c0_79 = arith.constant 0 : index
    %160 = vector.load %arg19[%c0_78, %c0_79] : memref<1x32xf32, #tpu.memory_space<vmem>>, vector<1x32xf32>
    %cst_80 = arith.constant dense<0.000000e+00> : vector<16xf32>
    %161 = vector.multi_reduction <add>, %158, %cst_80 [1] : vector<16x32xf32> to vector<16xf32>
    %162 = vector.shape_cast %161 : vector<16xf32> to vector<16x1xf32>
    %cst_81 = arith.constant 3.200000e+01 : f32
    %163 = vector.broadcast %cst_81 : f32 to vector<16x1xf32>
    %164 = arith.divf %162, %163 : vector<16x1xf32>
    %165 = vector.broadcast %164 : vector<16x1xf32> to vector<16x32xf32>
    %166 = arith.subf %158, %165 : vector<16x32xf32>
    %167 = arith.mulf %166, %166 : vector<16x32xf32>
    %cst_82 = arith.constant dense<0.000000e+00> : vector<16xf32>
    %168 = vector.multi_reduction <add>, %167, %cst_82 [1] : vector<16x32xf32> to vector<16xf32>
    %169 = vector.shape_cast %168 : vector<16xf32> to vector<16x1xf32>
    %cst_83 = arith.constant 3.200000e+01 : f32
    %170 = vector.broadcast %cst_83 : f32 to vector<16x1xf32>
    %171 = arith.divf %169, %170 : vector<16x1xf32>
    %172 = vector.broadcast %164 : vector<16x1xf32> to vector<16x32xf32>
    %173 = arith.subf %158, %172 : vector<16x32xf32>
    %cst_84 = arith.constant 9.99999997E-7 : f32
    %174 = vector.broadcast %cst_84 : f32 to vector<16x1xf32>
    %175 = arith.addf %171, %174 : vector<16x1xf32>
    %176 = math.rsqrt %175 : vector<16x1xf32>
    %177 = vector.broadcast %176 : vector<16x1xf32> to vector<16x32xf32>
    %178 = arith.mulf %173, %177 : vector<16x32xf32>
    %179 = vector.broadcast %159 : vector<1x32xf32> to vector<16x32xf32>
    %180 = arith.mulf %178, %179 : vector<16x32xf32>
    %181 = vector.broadcast %160 : vector<1x32xf32> to vector<16x32xf32>
    %182 = arith.addf %180, %181 : vector<16x32xf32>
    %c0_85 = arith.constant 0 : index
    %c0_86 = arith.constant 0 : index
    %183 = vector.load %arg20[%c0_85, %c0_86] : memref<16x32xf32, #tpu.memory_space<vmem>>, vector<16x32xf32>
    tpu.vector_store %arg20[%c0_85, %c0_86], %182 {strides = array<i32>} : memref<16x32xf32, #tpu.memory_space<vmem>>, vector<16x32xf32>,
    return
  }
}

module attributes {stable_mosaic.version = 11 : i64} {
  func.func @_decoder_layer_kernel(%arg0: memref<8x32xf32, #tpu.memory_space<vmem>>, %arg1: memref<8x32xf32, #tpu.memory_space<vmem>>, %arg2: memref<4x32xf32, #tpu.memory_space<vmem>>, %arg3: memref<8x8xf32, #tpu.memory_space<vmem>>, %arg4: memref<8x4xf32, #tpu.memory_space<vmem>>, %arg5: memref<64x192xf32, #tpu.memory_space<vmem>>, %arg6: memref<64x32xf32, #tpu.memory_space<vmem>>, %arg7: memref<1x32xf32, #tpu.memory_space<vmem>>, %arg8: memref<1x32xf32, #tpu.memory_space<vmem>>, %arg9: memref<32x64xf32, #tpu.memory_space<vmem>>, %arg10: memref<32x128xf32, #tpu.memory_space<vmem>>, %arg11: memref<64x32xf32, #tpu.memory_space<vmem>>, %arg12: memref<1x32xf32, #tpu.memory_space<vmem>>, %arg13: memref<1x32xf32, #tpu.memory_space<vmem>>, %arg14: memref<32x64xf32, #tpu.memory_space<vmem>>, %arg15: memref<1x64xf32, #tpu.memory_space<vmem>>, %arg16: memref<64x32xf32, #tpu.memory_space<vmem>>, %arg17: memref<1x32xf32, #tpu.memory_space<vmem>>, %arg18: memref<1x32xf32, #tpu.memory_space<vmem>>, %arg19: memref<1x32xf32, #tpu.memory_space<vmem>>, %arg20: memref<8x32xf32, #tpu.memory_space<vmem>>) attributes {dimension_semantics = [], scalar_prefetch = 0 : i64, scratch_operands = 0 : i64, tpu.core_type = #tpu.core_type<tc>} {
    %c0 = arith.constant 0 : index
    %c0_0 = arith.constant 0 : index
    %0 = vector.load %arg0[%c0, %c0_0] : memref<8x32xf32, #tpu.memory_space<vmem>>, vector<8x32xf32>
    %c0_1 = arith.constant 0 : index
    %c0_2 = arith.constant 0 : index
    %1 = vector.load %arg1[%c0_1, %c0_2] : memref<8x32xf32, #tpu.memory_space<vmem>>, vector<8x32xf32>
    %2 = tpu.concatenate %0, %1 in 1 : vector<8x32xf32>, vector<8x32xf32> -> vector<8x64xf32>
    %c0_3 = arith.constant 0 : index
    %c0_4 = arith.constant 0 : index
    %3 = vector.load %arg5[%c0_3, %c0_4] : memref<64x192xf32, #tpu.memory_space<vmem>>, vector<64x192xf32>
    %cst = arith.constant dense<0.000000e+00> : vector<8x192xf32>
    %4 = tpu.matmul %2, %3, %cst {dimension_numbers = #tpu.dot_dimension_numbers<[1], [0], [0], [1], [0, 0, 1, 1], [], []>} : vector<8x64xf32>, vector<64x192xf32>, vector<8x192xf32> -> vector<8x192xf32>
    %5 = vector.extract_strided_slice %4 {offsets = [0, 0], sizes = [8, 64], strides = [1, 1]} : vector<8x192xf32> to vector<8x64xf32>
    %6 = vector.extract_strided_slice %4 {offsets = [0, 64], sizes = [8, 64], strides = [1, 1]} : vector<8x192xf32> to vector<8x64xf32>
    %7 = vector.extract_strided_slice %4 {offsets = [0, 128], sizes = [8, 64], strides = [1, 1]} : vector<8x192xf32> to vector<8x64xf32>
    %c0_5 = arith.constant 0 : index
    %c0_6 = arith.constant 0 : index
    %8 = vector.load %arg3[%c0_5, %c0_6] : memref<8x8xf32, #tpu.memory_space<vmem>>, vector<8x8xf32>
    %9 = vector.extract_strided_slice %5 {offsets = [0, 0], sizes = [8, 32], strides = [1, 1]} : vector<8x64xf32> to vector<8x32xf32>
    %10 = vector.extract_strided_slice %6 {offsets = [0, 0], sizes = [8, 32], strides = [1, 1]} : vector<8x64xf32> to vector<8x32xf32>
    %11 = vector.extract_strided_slice %7 {offsets = [0, 0], sizes = [8, 32], strides = [1, 1]} : vector<8x64xf32> to vector<8x32xf32>
    %cst_7 = arith.constant dense<0.000000e+00> : vector<8x8xf32>
    %12 = tpu.matmul %9, %10, %cst_7 {dimension_numbers = #tpu.dot_dimension_numbers<[1], [1], [0], [0], [0, 0, 1, 0], [], []>} : vector<8x32xf32>, vector<8x32xf32>, vector<8x8xf32> -> vector<8x8xf32>
    %cst_8 = arith.constant 5.000000e-01 : f32
    %13 = vector.broadcast %cst_8 : f32 to vector<8x8xf32>
    %14 = arith.cmpf ogt, %8, %13 : vector<8x8xf32>
    %cst_9 = arith.constant -1.000000e+09 : f32
    %15 = vector.broadcast %cst_9 : f32 to vector<8x8xf32>
    %16 = arith.select %14, %12, %15 : vector<8x8xi1>, vector<8x8xf32>
    %cst_10 = arith.constant dense<0xFF800000> : vector<8xf32>
    %17 = vector.multi_reduction <maximumf>, %16, %cst_10 [1] : vector<8x8xf32> to vector<8xf32>
    %18 = vector.shape_cast %17 : vector<8xf32> to vector<8x1xf32>
    %19 = vector.broadcast %18 : vector<8x1xf32> to vector<8x8xf32>
    %20 = arith.subf %16, %19 : vector<8x8xf32>
    %21 = math.exp %20 : vector<8x8xf32>
    %cst_11 = arith.constant dense<0.000000e+00> : vector<8xf32>
    %22 = vector.multi_reduction <add>, %21, %cst_11 [1] : vector<8x8xf32> to vector<8xf32>
    %23 = vector.shape_cast %22 : vector<8xf32> to vector<8x1xf32>
    %24 = vector.broadcast %23 : vector<8x1xf32> to vector<8x8xf32>
    %25 = arith.divf %21, %24 : vector<8x8xf32>
    %cst_12 = arith.constant dense<0.000000e+00> : vector<8x32xf32>
    %26 = tpu.matmul %25, %11, %cst_12 {dimension_numbers = #tpu.dot_dimension_numbers<[1], [0], [0], [1], [0, 0, 1, 1], [], []>} : vector<8x8xf32>, vector<8x32xf32>, vector<8x32xf32> -> vector<8x32xf32>
    %27 = vector.extract_strided_slice %5 {offsets = [0, 32], sizes = [8, 32], strides = [1, 1]} : vector<8x64xf32> to vector<8x32xf32>
    %28 = vector.extract_strided_slice %6 {offsets = [0, 32], sizes = [8, 32], strides = [1, 1]} : vector<8x64xf32> to vector<8x32xf32>
    %29 = vector.extract_strided_slice %7 {offsets = [0, 32], sizes = [8, 32], strides = [1, 1]} : vector<8x64xf32> to vector<8x32xf32>
    %cst_13 = arith.constant dense<0.000000e+00> : vector<8x8xf32>
    %30 = tpu.matmul %27, %28, %cst_13 {dimension_numbers = #tpu.dot_dimension_numbers<[1], [1], [0], [0], [0, 0, 1, 0], [], []>} : vector<8x32xf32>, vector<8x32xf32>, vector<8x8xf32> -> vector<8x8xf32>
    %cst_14 = arith.constant 5.000000e-01 : f32
    %31 = vector.broadcast %cst_14 : f32 to vector<8x8xf32>
    %32 = arith.cmpf ogt, %8, %31 : vector<8x8xf32>
    %cst_15 = arith.constant -1.000000e+09 : f32
    %33 = vector.broadcast %cst_15 : f32 to vector<8x8xf32>
    %34 = arith.select %32, %30, %33 : vector<8x8xi1>, vector<8x8xf32>
    %cst_16 = arith.constant dense<0xFF800000> : vector<8xf32>
    %35 = vector.multi_reduction <maximumf>, %34, %cst_16 [1] : vector<8x8xf32> to vector<8xf32>
    %36 = vector.shape_cast %35 : vector<8xf32> to vector<8x1xf32>
    %37 = vector.broadcast %36 : vector<8x1xf32> to vector<8x8xf32>
    %38 = arith.subf %34, %37 : vector<8x8xf32>
    %39 = math.exp %38 : vector<8x8xf32>
    %cst_17 = arith.constant dense<0.000000e+00> : vector<8xf32>
    %40 = vector.multi_reduction <add>, %39, %cst_17 [1] : vector<8x8xf32> to vector<8xf32>
    %41 = vector.shape_cast %40 : vector<8xf32> to vector<8x1xf32>
    %42 = vector.broadcast %41 : vector<8x1xf32> to vector<8x8xf32>
    %43 = arith.divf %39, %42 : vector<8x8xf32>
    %cst_18 = arith.constant dense<0.000000e+00> : vector<8x32xf32>
    %44 = tpu.matmul %43, %29, %cst_18 {dimension_numbers = #tpu.dot_dimension_numbers<[1], [0], [0], [1], [0, 0, 1, 1], [], []>} : vector<8x8xf32>, vector<8x32xf32>, vector<8x32xf32> -> vector<8x32xf32>
    %45 = tpu.concatenate %26, %44 in 1 : vector<8x32xf32>, vector<8x32xf32> -> vector<8x64xf32>
    %c0_19 = arith.constant 0 : index
    %c0_20 = arith.constant 0 : index
    %46 = vector.load %arg6[%c0_19, %c0_20] : memref<64x32xf32, #tpu.memory_space<vmem>>, vector<64x32xf32>
    %cst_21 = arith.constant dense<0.000000e+00> : vector<8x32xf32>
    %47 = tpu.matmul %45, %46, %cst_21 {dimension_numbers = #tpu.dot_dimension_numbers<[1], [0], [0], [1], [0, 0, 1, 1], [], []>} : vector<8x64xf32>, vector<64x32xf32>, vector<8x32xf32> -> vector<8x32xf32>
    %48 = arith.addf %0, %1 : vector<8x32xf32>
    %49 = arith.addf %47, %48 : vector<8x32xf32>
    %c0_22 = arith.constant 0 : index
    %c0_23 = arith.constant 0 : index
    %50 = vector.load %arg7[%c0_22, %c0_23] : memref<1x32xf32, #tpu.memory_space<vmem>>, vector<1x32xf32>
    %c0_24 = arith.constant 0 : index
    %c0_25 = arith.constant 0 : index
    %51 = vector.load %arg8[%c0_24, %c0_25] : memref<1x32xf32, #tpu.memory_space<vmem>>, vector<1x32xf32>
    %cst_26 = arith.constant dense<0.000000e+00> : vector<8xf32>
    %52 = vector.multi_reduction <add>, %49, %cst_26 [1] : vector<8x32xf32> to vector<8xf32>
    %53 = vector.shape_cast %52 : vector<8xf32> to vector<8x1xf32>
    %cst_27 = arith.constant 3.200000e+01 : f32
    %54 = vector.broadcast %cst_27 : f32 to vector<8x1xf32>
    %55 = arith.divf %53, %54 : vector<8x1xf32>
    %56 = vector.broadcast %55 : vector<8x1xf32> to vector<8x32xf32>
    %57 = arith.subf %49, %56 : vector<8x32xf32>
    %58 = arith.mulf %57, %57 : vector<8x32xf32>
    %cst_28 = arith.constant dense<0.000000e+00> : vector<8xf32>
    %59 = vector.multi_reduction <add>, %58, %cst_28 [1] : vector<8x32xf32> to vector<8xf32>
    %60 = vector.shape_cast %59 : vector<8xf32> to vector<8x1xf32>
    %cst_29 = arith.constant 3.200000e+01 : f32
    %61 = vector.broadcast %cst_29 : f32 to vector<8x1xf32>
    %62 = arith.divf %60, %61 : vector<8x1xf32>
    %63 = vector.broadcast %55 : vector<8x1xf32> to vector<8x32xf32>
    %64 = arith.subf %49, %63 : vector<8x32xf32>
    %cst_30 = arith.constant 9.99999997E-7 : f32
    %65 = vector.broadcast %cst_30 : f32 to vector<8x1xf32>
    %66 = arith.addf %62, %65 : vector<8x1xf32>
    %67 = math.rsqrt %66 : vector<8x1xf32>
    %68 = vector.broadcast %67 : vector<8x1xf32> to vector<8x32xf32>
    %69 = arith.mulf %64, %68 : vector<8x32xf32>
    %70 = vector.broadcast %50 : vector<1x32xf32> to vector<8x32xf32>
    %71 = arith.mulf %69, %70 : vector<8x32xf32>
    %72 = vector.broadcast %51 : vector<1x32xf32> to vector<8x32xf32>
    %73 = arith.addf %71, %72 : vector<8x32xf32>
    %c0_31 = arith.constant 0 : index
    %c0_32 = arith.constant 0 : index
    %74 = vector.load %arg9[%c0_31, %c0_32] : memref<32x64xf32, #tpu.memory_space<vmem>>, vector<32x64xf32>
    %cst_33 = arith.constant dense<0.000000e+00> : vector<8x64xf32>
    %75 = tpu.matmul %73, %74, %cst_33 {dimension_numbers = #tpu.dot_dimension_numbers<[1], [0], [0], [1], [0, 0, 1, 1], [], []>} : vector<8x32xf32>, vector<32x64xf32>, vector<8x64xf32> -> vector<8x64xf32>
    %c0_34 = arith.constant 0 : index
    %c0_35 = arith.constant 0 : index
    %76 = vector.load %arg2[%c0_34, %c0_35] : memref<4x32xf32, #tpu.memory_space<vmem>>, vector<4x32xf32>
    %c0_36 = arith.constant 0 : index
    %c0_37 = arith.constant 0 : index
    %77 = vector.load %arg10[%c0_36, %c0_37] : memref<32x128xf32, #tpu.memory_space<vmem>>, vector<32x128xf32>
    %cst_38 = arith.constant dense<0.000000e+00> : vector<4x128xf32>
    %78 = tpu.matmul %76, %77, %cst_38 {dimension_numbers = #tpu.dot_dimension_numbers<[1], [0], [0], [1], [0, 0, 1, 1], [], []>} : vector<4x32xf32>, vector<32x128xf32>, vector<4x128xf32> -> vector<4x128xf32>
    %79 = vector.extract_strided_slice %78 {offsets = [0, 0], sizes = [4, 64], strides = [1, 1]} : vector<4x128xf32> to vector<4x64xf32>
    %80 = vector.extract_strided_slice %78 {offsets = [0, 64], sizes = [4, 64], strides = [1, 1]} : vector<4x128xf32> to vector<4x64xf32>
    %c0_39 = arith.constant 0 : index
    %c0_40 = arith.constant 0 : index
    %81 = vector.load %arg4[%c0_39, %c0_40] : memref<8x4xf32, #tpu.memory_space<vmem>>, vector<8x4xf32>
    %82 = vector.extract_strided_slice %75 {offsets = [0, 0], sizes = [8, 32], strides = [1, 1]} : vector<8x64xf32> to vector<8x32xf32>
    %83 = vector.extract_strided_slice %79 {offsets = [0, 0], sizes = [4, 32], strides = [1, 1]} : vector<4x64xf32> to vector<4x32xf32>
    %84 = vector.extract_strided_slice %80 {offsets = [0, 0], sizes = [4, 32], strides = [1, 1]} : vector<4x64xf32> to vector<4x32xf32>
    %cst_41 = arith.constant dense<0.000000e+00> : vector<8x4xf32>
    %85 = tpu.matmul %82, %83, %cst_41 {dimension_numbers = #tpu.dot_dimension_numbers<[1], [1], [0], [0], [0, 0, 1, 0], [], []>} : vector<8x32xf32>, vector<4x32xf32>, vector<8x4xf32> -> vector<8x4xf32>
    %cst_42 = arith.constant 5.000000e-01 : f32
    %86 = vector.broadcast %cst_42 : f32 to vector<8x4xf32>
    %87 = arith.cmpf ogt, %81, %86 : vector<8x4xf32>
    %cst_43 = arith.constant -1.000000e+09 : f32
    %88 = vector.broadcast %cst_43 : f32 to vector<8x4xf32>
    %89 = arith.select %87, %85, %88 : vector<8x4xi1>, vector<8x4xf32>
    %cst_44 = arith.constant dense<0xFF800000> : vector<8xf32>
    %90 = vector.multi_reduction <maximumf>, %89, %cst_44 [1] : vector<8x4xf32> to vector<8xf32>
    %91 = vector.shape_cast %90 : vector<8xf32> to vector<8x1xf32>
    %92 = vector.broadcast %91 : vector<8x1xf32> to vector<8x4xf32>
    %93 = arith.subf %89, %92 : vector<8x4xf32>
    %94 = math.exp %93 : vector<8x4xf32>
    %cst_45 = arith.constant dense<0.000000e+00> : vector<8xf32>
    %95 = vector.multi_reduction <add>, %94, %cst_45 [1] : vector<8x4xf32> to vector<8xf32>
    %96 = vector.shape_cast %95 : vector<8xf32> to vector<8x1xf32>
    %97 = vector.broadcast %96 : vector<8x1xf32> to vector<8x4xf32>
    %98 = arith.divf %94, %97 : vector<8x4xf32>
    %cst_46 = arith.constant dense<0.000000e+00> : vector<8x32xf32>
    %99 = tpu.matmul %98, %84, %cst_46 {dimension_numbers = #tpu.dot_dimension_numbers<[1], [0], [0], [1], [0, 0, 1, 1], [], []>} : vector<8x4xf32>, vector<4x32xf32>, vector<8x32xf32> -> vector<8x32xf32>
    %100 = vector.extract_strided_slice %75 {offsets = [0, 32], sizes = [8, 32], strides = [1, 1]} : vector<8x64xf32> to vector<8x32xf32>
    %101 = vector.extract_strided_slice %79 {offsets = [0, 32], sizes = [4, 32], strides = [1, 1]} : vector<4x64xf32> to vector<4x32xf32>
    %102 = vector.extract_strided_slice %80 {offsets = [0, 32], sizes = [4, 32], strides = [1, 1]} : vector<4x64xf32> to vector<4x32xf32>
    %cst_47 = arith.constant dense<0.000000e+00> : vector<8x4xf32>
    %103 = tpu.matmul %100, %101, %cst_47 {dimension_numbers = #tpu.dot_dimension_numbers<[1], [1], [0], [0], [0, 0, 1, 0], [], []>} : vector<8x32xf32>, vector<4x32xf32>, vector<8x4xf32> -> vector<8x4xf32>
    %cst_48 = arith.constant 5.000000e-01 : f32
    %104 = vector.broadcast %cst_48 : f32 to vector<8x4xf32>
    %105 = arith.cmpf ogt, %81, %104 : vector<8x4xf32>
    %cst_49 = arith.constant -1.000000e+09 : f32
    %106 = vector.broadcast %cst_49 : f32 to vector<8x4xf32>
    %107 = arith.select %105, %103, %106 : vector<8x4xi1>, vector<8x4xf32>
    %cst_50 = arith.constant dense<0xFF800000> : vector<8xf32>
    %108 = vector.multi_reduction <maximumf>, %107, %cst_50 [1] : vector<8x4xf32> to vector<8xf32>
    %109 = vector.shape_cast %108 : vector<8xf32> to vector<8x1xf32>
    %110 = vector.broadcast %109 : vector<8x1xf32> to vector<8x4xf32>
    %111 = arith.subf %107, %110 : vector<8x4xf32>
    %112 = math.exp %111 : vector<8x4xf32>
    %cst_51 = arith.constant dense<0.000000e+00> : vector<8xf32>
    %113 = vector.multi_reduction <add>, %112, %cst_51 [1] : vector<8x4xf32> to vector<8xf32>
    %114 = vector.shape_cast %113 : vector<8xf32> to vector<8x1xf32>
    %115 = vector.broadcast %114 : vector<8x1xf32> to vector<8x4xf32>
    %116 = arith.divf %112, %115 : vector<8x4xf32>
    %cst_52 = arith.constant dense<0.000000e+00> : vector<8x32xf32>
    %117 = tpu.matmul %116, %102, %cst_52 {dimension_numbers = #tpu.dot_dimension_numbers<[1], [0], [0], [1], [0, 0, 1, 1], [], []>} : vector<8x4xf32>, vector<4x32xf32>, vector<8x32xf32> -> vector<8x32xf32>
    %118 = tpu.concatenate %99, %117 in 1 : vector<8x32xf32>, vector<8x32xf32> -> vector<8x64xf32>
    %c0_53 = arith.constant 0 : index
    %c0_54 = arith.constant 0 : index
    %119 = vector.load %arg11[%c0_53, %c0_54] : memref<64x32xf32, #tpu.memory_space<vmem>>, vector<64x32xf32>
    %cst_55 = arith.constant dense<0.000000e+00> : vector<8x32xf32>
    %120 = tpu.matmul %118, %119, %cst_55 {dimension_numbers = #tpu.dot_dimension_numbers<[1], [0], [0], [1], [0, 0, 1, 1], [], []>} : vector<8x64xf32>, vector<64x32xf32>, vector<8x32xf32> -> vector<8x32xf32>
    %121 = arith.addf %120, %73 : vector<8x32xf32>
    %c0_56 = arith.constant 0 : index
    %c0_57 = arith.constant 0 : index
    %122 = vector.load %arg12[%c0_56, %c0_57] : memref<1x32xf32, #tpu.memory_space<vmem>>, vector<1x32xf32>
    %c0_58 = arith.constant 0 : index
    %c0_59 = arith.constant 0 : index
    %123 = vector.load %arg13[%c0_58, %c0_59] : memref<1x32xf32, #tpu.memory_space<vmem>>, vector<1x32xf32>
    %cst_60 = arith.constant dense<0.000000e+00> : vector<8xf32>
    %124 = vector.multi_reduction <add>, %121, %cst_60 [1] : vector<8x32xf32> to vector<8xf32>
    %125 = vector.shape_cast %124 : vector<8xf32> to vector<8x1xf32>
    %cst_61 = arith.constant 3.200000e+01 : f32
    %126 = vector.broadcast %cst_61 : f32 to vector<8x1xf32>
    %127 = arith.divf %125, %126 : vector<8x1xf32>
    %128 = vector.broadcast %127 : vector<8x1xf32> to vector<8x32xf32>
    %129 = arith.subf %121, %128 : vector<8x32xf32>
    %130 = arith.mulf %129, %129 : vector<8x32xf32>
    %cst_62 = arith.constant dense<0.000000e+00> : vector<8xf32>
    %131 = vector.multi_reduction <add>, %130, %cst_62 [1] : vector<8x32xf32> to vector<8xf32>
    %132 = vector.shape_cast %131 : vector<8xf32> to vector<8x1xf32>
    %cst_63 = arith.constant 3.200000e+01 : f32
    %133 = vector.broadcast %cst_63 : f32 to vector<8x1xf32>
    %134 = arith.divf %132, %133 : vector<8x1xf32>
    %135 = vector.broadcast %127 : vector<8x1xf32> to vector<8x32xf32>
    %136 = arith.subf %121, %135 : vector<8x32xf32>
    %cst_64 = arith.constant 9.99999997E-7 : f32
    %137 = vector.broadcast %cst_64 : f32 to vector<8x1xf32>
    %138 = arith.addf %134, %137 : vector<8x1xf32>
    %139 = math.rsqrt %138 : vector<8x1xf32>
    %140 = vector.broadcast %139 : vector<8x1xf32> to vector<8x32xf32>
    %141 = arith.mulf %136, %140 : vector<8x32xf32>
    %142 = vector.broadcast %122 : vector<1x32xf32> to vector<8x32xf32>
    %143 = arith.mulf %141, %142 : vector<8x32xf32>
    %144 = vector.broadcast %123 : vector<1x32xf32> to vector<8x32xf32>
    %145 = arith.addf %143, %144 : vector<8x32xf32>
    %c0_65 = arith.constant 0 : index
    %c0_66 = arith.constant 0 : index
    %146 = vector.load %arg14[%c0_65, %c0_66] : memref<32x64xf32, #tpu.memory_space<vmem>>, vector<32x64xf32>
    %cst_67 = arith.constant dense<0.000000e+00> : vector<8x64xf32>
    %147 = tpu.matmul %145, %146, %cst_67 {dimension_numbers = #tpu.dot_dimension_numbers<[1], [0], [0], [1], [0, 0, 1, 1], [], []>} : vector<8x32xf32>, vector<32x64xf32>, vector<8x64xf32> -> vector<8x64xf32>
    %c0_68 = arith.constant 0 : index
    %c0_69 = arith.constant 0 : index
    %148 = vector.load %arg15[%c0_68, %c0_69] : memref<1x64xf32, #tpu.memory_space<vmem>>, vector<1x64xf32>
    %149 = vector.broadcast %148 : vector<1x64xf32> to vector<8x64xf32>
    %150 = arith.addf %147, %149 : vector<8x64xf32>
    %cst_70 = arith.constant 0.000000e+00 : f32
    %151 = vector.broadcast %cst_70 : f32 to vector<8x64xf32>
    %152 = arith.maximumf %150, %151 : vector<8x64xf32>
    %c0_71 = arith.constant 0 : index
    %c0_72 = arith.constant 0 : index
    %153 = vector.load %arg16[%c0_71, %c0_72] : memref<64x32xf32, #tpu.memory_space<vmem>>, vector<64x32xf32>
    %cst_73 = arith.constant dense<0.000000e+00> : vector<8x32xf32>
    %154 = tpu.matmul %152, %153, %cst_73 {dimension_numbers = #tpu.dot_dimension_numbers<[1], [0], [0], [1], [0, 0, 1, 1], [], []>} : vector<8x64xf32>, vector<64x32xf32>, vector<8x32xf32> -> vector<8x32xf32>
    %c0_74 = arith.constant 0 : index
    %c0_75 = arith.constant 0 : index
    %155 = vector.load %arg17[%c0_74, %c0_75] : memref<1x32xf32, #tpu.memory_space<vmem>>, vector<1x32xf32>
    %156 = vector.broadcast %155 : vector<1x32xf32> to vector<8x32xf32>
    %157 = arith.addf %154, %156 : vector<8x32xf32>
    %158 = arith.addf %157, %145 : vector<8x32xf32>
    %c0_76 = arith.constant 0 : index
    %c0_77 = arith.constant 0 : index
    %159 = vector.load %arg18[%c0_76, %c0_77] : memref<1x32xf32, #tpu.memory_space<vmem>>, vector<1x32xf32>
    %c0_78 = arith.constant 0 : index
    %c0_79 = arith.constant 0 : index
    %160 = vector.load %arg19[%c0_78, %c0_79] : memref<1x32xf32, #tpu.memory_space<vmem>>, vector<1x32xf32>
    %cst_80 = arith.constant dense<0.000000e+00> : vector<8xf32>
    %161 = vector.multi_reduction <add>, %158, %cst_80 [1] : vector<8x32xf32> to vector<8xf32>
    %162 = vector.shape_cast %161 : vector<8xf32> to vector<8x1xf32>
    %cst_81 = arith.constant 3.200000e+01 : f32
    %163 = vector.broadcast %cst_81 : f32 to vector<8x1xf32>
    %164 = arith.divf %162, %163 : vector<8x1xf32>
    %165 = vector.broadcast %164 : vector<8x1xf32> to vector<8x32xf32>
    %166 = arith.subf %158, %165 : vector<8x32xf32>
    %167 = arith.mulf %166, %166 : vector<8x32xf32>
    %cst_82 = arith.constant dense<0.000000e+00> : vector<8xf32>
    %168 = vector.multi_reduction <add>, %167, %cst_82 [1] : vector<8x32xf32> to vector<8xf32>
    %169 = vector.shape_cast %168 : vector<8xf32> to vector<8x1xf32>
    %cst_83 = arith.constant 3.200000e+01 : f32
    %170 = vector.broadcast %cst_83 : f32 to vector<8x1xf32>
    %171 = arith.divf %169, %170 : vector<8x1xf32>
    %172 = vector.broadcast %164 : vector<8x1xf32> to vector<8x32xf32>
    %173 = arith.subf %158, %172 : vector<8x32xf32>
    %cst_84 = arith.constant 9.99999997E-7 : f32
    %174 = vector.broadcast %cst_84 : f32 to vector<8x1xf32>
    %175 = arith.addf %171, %174 : vector<8x1xf32>
    %176 = math.rsqrt %175 : vector<8x1xf32>
    %177 = vector.broadcast %176 : vector<8x1xf32> to vector<8x32xf32>
    %178 = arith.mulf %173, %177 : vector<8x32xf32>
    %179 = vector.broadcast %159 : vector<1x32xf32> to vector<8x32xf32>
    %180 = arith.mulf %178, %179 : vector<8x32xf32>
    %181 = vector.broadcast %160 : vector<1x32xf32> to vector<8x32xf32>
    %182 = arith.addf %180, %181 : vector<8x32xf32>
    %c0_85 = arith.constant 0 : index
    %c0_86 = arith.constant 0 : index
    %183 = vector.load %arg20[%c0_85, %c0_86] : memref<8x32xf32, #tpu.memory_space<vmem>>, vector<8x32xf32>
    tpu.vector_store %arg20[%c0_85, %c0_86], %182 {strides = array<i32>} : memref<8x32xf32, #tpu.memory_space<vmem>>, vector<8x32xf32>,
    return
  }
}

module attributes {stable_mosaic.version = 11 : i64} {
  func.func @_fusion_kernel(%arg0: memref<16x96xf32, #tpu.memory_space<vmem>>, %arg1: memref<96x96xf32, #tpu.memory_space<vmem>>, %arg2: memref<96x96xf32, #tpu.memory_space<vmem>>, %arg3: memref<16x96xf32, #tpu.memory_space<vmem>>, %arg4: memref<16x32xf32, #tpu.memory_space<vmem>>) attributes {dimension_semantics = [], scalar_prefetch = 0 : i64, scratch_operands = 0 : i64, tpu.core_type = #tpu.core_type<tc>} {
    %c0 = arith.constant 0 : index
    %c0_0 = arith.constant 0 : index
    %0 = vector.load %arg0[%c0, %c0_0] : memref<16x96xf32, #tpu.memory_space<vmem>>, vector<16x96xf32>
    %c0_1 = arith.constant 0 : index
    %c0_2 = arith.constant 0 : index
    %1 = vector.load %arg1[%c0_1, %c0_2] : memref<96x96xf32, #tpu.memory_space<vmem>>, vector<96x96xf32>
    %cst = arith.constant dense<0.000000e+00> : vector<16x96xf32>
    %2 = tpu.matmul %0, %1, %cst {dimension_numbers = #tpu.dot_dimension_numbers<[1], [0], [0], [1], [0, 0, 1, 1], [], []>} : vector<16x96xf32>, vector<96x96xf32>, vector<16x96xf32> -> vector<16x96xf32>
    %3 = math.tanh %2 : vector<16x96xf32>
    %c0_3 = arith.constant 0 : index
    %c0_4 = arith.constant 0 : index
    %4 = vector.load %arg2[%c0_3, %c0_4] : memref<96x96xf32, #tpu.memory_space<vmem>>, vector<96x96xf32>
    %cst_5 = arith.constant dense<0.000000e+00> : vector<16x96xf32>
    %5 = tpu.matmul %0, %4, %cst_5 {dimension_numbers = #tpu.dot_dimension_numbers<[1], [0], [0], [1], [0, 0, 1, 1], [], []>} : vector<16x96xf32>, vector<96x96xf32>, vector<16x96xf32> -> vector<16x96xf32>
    %6 = arith.negf %5 : vector<16x96xf32>
    %7 = math.exp %6 : vector<16x96xf32>
    %cst_6 = arith.constant 1.000000e+00 : f32
    %8 = vector.broadcast %cst_6 : f32 to vector<16x96xf32>
    %9 = arith.addf %8, %7 : vector<16x96xf32>
    %10 = arith.divf %8, %9 : vector<16x96xf32>
    %11 = arith.mulf %3, %10 : vector<16x96xf32>
    %c0_7 = arith.constant 0 : index
    %c0_8 = arith.constant 0 : index
    %12 = vector.load %arg3[%c0_7, %c0_8] : memref<16x96xf32, #tpu.memory_space<vmem>>, vector<16x96xf32>
    %13 = arith.mulf %11, %12 : vector<16x96xf32>
    %14 = vector.extract_strided_slice %13 {offsets = [0, 0], sizes = [16, 32], strides = [1, 1]} : vector<16x96xf32> to vector<16x32xf32>
    %15 = vector.extract_strided_slice %13 {offsets = [0, 32], sizes = [16, 32], strides = [1, 1]} : vector<16x96xf32> to vector<16x32xf32>
    %16 = arith.addf %14, %15 : vector<16x32xf32>
    %17 = vector.extract_strided_slice %13 {offsets = [0, 64], sizes = [16, 32], strides = [1, 1]} : vector<16x96xf32> to vector<16x32xf32>
    %18 = arith.addf %16, %17 : vector<16x32xf32>
    %c0_9 = arith.constant 0 : index
    %c0_10 = arith.constant 0 : index
    %19 = vector.load %arg4[%c0_9, %c0_10] : memref<16x32xf32, #tpu.memory_space<vmem>>, vector<16x32xf32>
    tpu.vector_store %arg4[%c0_9, %c0_10], %18 {strides = array<i32>} : memref<16x32xf32, #tpu.memory_space<vmem>>, vector<16x32xf32>,
    return
  }
}

</mosaic_0001>

<llo_original>
// kernel: mul.81
$region0: #{mul.81}
  #allocation0 [shape = 's32[1]{0}', space=sflag, size = 0x4, scoped, tag = 'scoped memory for mul.81']
  %s0 = inlined_call_operand.vmem [shape: f32[2,2], index: 0, kind: input, shape index: {}]
  %s1 = inlined_call_operand.vmem [shape: f32[2,8,2,4], index: 1, kind: output, shape index: {}]
  // Predicated region
  $region2: #{mul.81} parent=0 // pred_check
    _
  $region3: #{mul.81} parent=0 // pred_check_branch
    %3 = sbr.rel (0) target = $region5
  $region4: #{mul.81} parent=0 // pred_region
    _
  $region5: #{mul.81} parent=0 // pred_fallthru
    _
  %v4 = vld [vmem:[%s0] ss:$0 sm:$0xff]
  %6 = vbcast.lane.b32.xlu0 %v4, 256
  %v7 = vpop.permute.xlu0 %6
  %8 = vst [vmem:[%s1] sm:$0x3] %v7
  %s9 = scalar_lea.vmem %s0, 1
  %v10 = vld [vmem:[%s9] ss:$0 sm:$0xff]
  %12 = vbcast.lane.b32.xlu0 %v10, 256
  %v13 = vpop.permute.xlu0 %12
  %s14 = scalar_lea.vmem %s1, 8
  %15 = vst [vmem:[%s14] sm:$0x3] %v13
  %s16 = scalar_lea.vmem %s1, 2
  %17 = vst [vmem:[%s16] sm:$0x3] %v7
  %s18 = scalar_lea.vmem %s1, 10
  %19 = vst [vmem:[%s18] sm:$0x3] %v13
  %s20 = scalar_lea.vmem %s1, 4
  %21 = vst [vmem:[%s20] sm:$0x3] %v7
  %s22 = scalar_lea.vmem %s1, 12
  %23 = vst [vmem:[%s22] sm:$0x3] %v13
  %s24 = scalar_lea.vmem %s1, 6
  %25 = vst [vmem:[%s24] sm:$0x3] %v7
  %s26 = scalar_lea.vmem %s1, 14
  %27 = vst [vmem:[%s26] sm:$0x3] %v13

// kernel: mul.55
$region0: #{mul.55}
  #allocation0 [shape = 's32[1]{0}', space=sflag, size = 0x4, scoped, tag = 'scoped memory for mul.55']
  %s0 = inlined_call_operand.vmem [shape: f32[2,2], index: 0, kind: input, shape index: {}]
  %s1 = inlined_call_operand.vmem [shape: f32[2,4,2,2], index: 1, kind: output, shape index: {}]
  // Predicated region
  $region2: #{mul.55} parent=0 // pred_check
    _
  $region3: #{mul.55} parent=0 // pred_check_branch
    %3 = sbr.rel (0) target = $region5
  $region4: #{mul.55} parent=0 // pred_region
    _
  $region5: #{mul.55} parent=0 // pred_fallthru
    _
  %v4 = vld [vmem:[%s0] ss:$0 sm:$0xff]
  %6 = vbcast.lane.b32.xlu0 %v4, 256
  %v7 = vpop.permute.xlu0 %6
  %8 = vst [vmem:[%s1] sm:$0x3] %v7
  %s9 = scalar_lea.vmem %s0, 1
  %v10 = vld [vmem:[%s9] ss:$0 sm:$0xff]
  %12 = vbcast.lane.b32.xlu0 %v10, 256
  %v13 = vpop.permute.xlu0 %12
  %s14 = scalar_lea.vmem %s1, 4
  %15 = vst [vmem:[%s14] sm:$0x3] %v13
  %s16 = scalar_lea.vmem %s1, 2
  %17 = vst [vmem:[%s16] sm:$0x3] %v7
  %s18 = scalar_lea.vmem %s1, 6
  %19 = vst [vmem:[%s18] sm:$0x3] %v13

// kernel: _lambda_.7
$region0: #{_lambda_.7}
  #allocation0 [shape = 'u32[]', space=smem, size = 0x4, offset = 0x4, fixed_abs, tag = 'smem constant byte address 0x4 - core index']
  #allocation1 [shape = 'u32[144,128]{1,0:T(1,128)}', space=vmem, size = 0x12000, scoped, tag = 'internal scratch']
  %s0 = inlined_call_operand.vmem [shape: f32[16,96], index: 0, kind: input, shape index: {}]
  %s1 = inlined_call_operand.vmem [shape: f32[96,96], index: 1, kind: input, shape index: {}]
  %s2 = inlined_call_operand.vmem [shape: f32[96,96], index: 2, kind: input, shape index: {}]
  %s3 = inlined_call_operand.vmem [shape: f32[16,96], index: 3, kind: input, shape index: {}]
  %s4 = inlined_call_operand.hbm [shape: f32[16,32], index: 4, kind: output, shape index: {}]
  %s5 = sld [smem:[#allocation0]]
  $region26: #{_lambda_.7} parent=0
    _
  %s7 = ssub.s32 1, %s5
  %s8 = scalar_select 0, %s7, %s5
  $region1: #{_lambda_.7} parent=0
    #allocation2 [shape = 'u8[8192]{0}', space=vmem, size = 0x2000, scoped, tag = 'output window, operand 0, single buffered']
    #allocation3 [shape = 's32[1]{0}', space=sflag, size = 0x4, scoped, tag = 'scoped memory for _lambda_.7']
    %9 = vsyncpa [#allocation3], 0
    // Predicated region
    $region2: #{_lambda_.7} parent=1 // pred_check
      _
    $region3: #{_lambda_.7} parent=1 // pred_check_branch
      %11 = sbr.rel (0) target = $region5
    $region4: #{_lambda_.7} parent=1 // pred_region
      _
    $region5: #{_lambda_.7} parent=1 // pred_fallthru
      _
    // Predicated region
    $region6: #{_lambda_.7} parent=1 // pred_check
      _
    $region7: #{_lambda_.7} parent=1 // pred_check_branch
      %13 = sbr.rel (0) target = $region9
    $region8: #{_lambda_.7} parent=1 // pred_region
      _
    $region9: #{_lambda_.7} parent=1 // pred_fallthru
      _
    // Predicated region
    $region10: #{_lambda_.7} parent=1 // pred_check
      _
    $region11: #{_lambda_.7} parent=1 // pred_check_branch
      %15 = sbr.rel (0) target = $region13
    $region12: #{_lambda_.7} parent=1 // pred_region
      _
    $region13: #{_lambda_.7} parent=1 // pred_fallthru
      _
    // Predicated region
    $region14: #{_lambda_.7} parent=1 // pred_check
      _
    $region15: #{_lambda_.7} parent=1 // pred_check_branch
      %17 = sbr.rel (0) target = $region17
    $region16: #{_lambda_.7} parent=1 // pred_region
      _
    $region17: #{_lambda_.7} parent=1 // pred_fallthru
      _
    %v18 = vld [vmem:[%s0] sm:$0xff]
    %v19 = vld [vmem:[%s0 + $0x8] sm:$0xff]
    %v20 = vld [vmem:[%s1] sm:$0xff]
    %v21 = vld [vmem:[%s1 + $0x8] sm:$0xff]
    %v22 = vld [vmem:[%s1 + $0x10] sm:$0xff]
    %v23 = vld [vmem:[%s1 + $0x18] sm:$0xff]
    %v24 = vld [vmem:[%s1 + $0x20] sm:$0xff]
    %v25 = vld [vmem:[%s1 + $0x28] sm:$0xff]
    %v26 = vld [vmem:[%s1 + $0x30] sm:$0xff]
    %v27 = vld [vmem:[%s1 + $0x38] sm:$0xff]
    %v28 = vld [vmem:[%s1 + $0x40] sm:$0xff]
    %v29 = vld [vmem:[%s1 + $0x48] sm:$0xff]
    %v30 = vld [vmem:[%s1 + $0x50] sm:$0xff]
    %v31 = vld [vmem:[%s1 + $0x58] sm:$0xff]
    %vm32 = vcmask 785408
    %v34 = vsel %vm32, %v18, 0
    %v37 = vsel %vm32, %v19, 0
    %39 = vmatprep.subr.mxu0 0.0
    %40 = vmatpush1.msra.mxu0 %v20
    %41 = vmatprep.subr.mxu0 0.0
    %42 = vmatpush1.msra.mxu0 %v21
    %43 = vmatprep.subr.mxu0 0.0
    %44 = vmatpush1.msra.mxu0 %v22
    %45 = vmatprep.subr.mxu0 0.0
    %46 = vmatpush1.msra.mxu0 %v23
    %47 = vmatprep.subr.mxu0 0.0
    %48 = vmatpush1.msra.mxu0 %v24
    %49 = vmatprep.subr.mxu0 0.0
    %50 = vmatpush1.msra.mxu0 %v25
    %51 = vmatprep.subr.mxu0 0.0
    %52 = vmatpush1.msra.mxu0 %v26
    %53 = vmatprep.subr.mxu0 0.0
    %54 = vmatpush1.msra.mxu0 %v27
    %55 = vmatprep.subr.mxu0 0.0
    %56 = vmatpush1.msra.mxu0 %v28
    %57 = vmatprep.subr.mxu0 0.0
    %58 = vmatpush1.msra.mxu0 %v29
    %59 = vmatprep.subr.mxu0 0.0
    %60 = vmatpush1.msra.mxu0 %v30
    %61 = vmatprep.subr.mxu0 0.0
    %62 = vmatpush1.msra.mxu0 %v31
    %63 = vmatprep.subr.mxu0 0.0
    %64 = vmatpush1.msra.mxu0 0.0
    %65 = vmatprep.subr.mxu0 0.0
    %66 = vmatpush1.msra.mxu0 0.0
    %67 = vmatprep.subr.mxu0 0.0
    %68 = vmatpush1.msra.mxu0 0.0
    %69 = vmatprep.subr.mxu0 0.0
    %70 = vmatpush1.msra.mxu0 0.0
    %71 = vmatprep.subr.mxu0 0.0
    %72 = vmatpush1.msra.mxu0 0.0
    %73 = vmatprep.subr.mxu0 0.0
    %74 = vmatpush1.msra.mxu0 0.0
    %75 = vmatprep.subr.mxu0 0.0
    %76 = vmatpush1.msra.mxu0 0.0
    %77 = vmatprep.subr.mxu0 0.0
    %78 = vmatpush1.msra.mxu0 0.0
    %79 = vmatprep.subr.mxu0 0.0
    %80 = vmatpush1.msra.mxu0 0.0
    %81 = vmatprep.subr.mxu0 0.0
    %82 = vmatpush1.msra.mxu0 0.0
    %83 = vmatprep.subr.mxu0 0.0
    %84 = vmatpush1.msra.mxu0 0.0
    %85 = vmatprep.subr.mxu0 0.0
    %86 = vmatpush1.msra.mxu0 0.0
    %87 = vmatprep.subr.mxu0 0.0
    %88 = vmatpush1.msra.mxu0 0.0
    %89 = vmatprep.subr.mxu0 0.0
    %90 = vmatpush1.msra.mxu0 0.0
    %91 = vmatprep.subr.mxu0 0.0
    %92 = vmatpush1.msra.mxu0 0.0
    %93 = vmatprep.subr.mxu0 0.0
    %94 = vmatpush1.msra.mxu0 0.0
    %95 = vmatprep.subr.mxu0 0.0
    %96 = vmatpush1.msra.mxu0 0.0
    %97 = vmatprep.subr.mxu0 0.0
    %98 = vmatpush1.msra.mxu0 0.0
    %99 = vmatprep.subr.mxu0 0.0
    %100 = vmatpush1.msra.mxu0 0.0
    %101 = vmatprep.subr.mxu0 0.0
    %102 = vmatpush1.msra.mxu0 0.0
    %103 = vmatprep.mubr.f32.mxu0 0.0
    %104 = vmatmul.mubr.f32.gmra.mrb[0].mxu0 %v34
    %v105 = vpop.f32.mrb[0].mxu0
    %v106 = vadd.f32 0.0, %v105
    %v107 = vpop.f32.mrb[0].mxu0
    %108 = vmatprep.mubr.f32.mxu0 0.0
    %109 = vmatmul.mubr.f32.gmra.mrb[0].mxu0 %v37
    %v110 = vpop.f32.mrb[0].mxu0
    %v111 = vadd.f32 0.0, %v110
    %v112 = vpop.f32.mrb[0].mxu0
    %113 = vdwg.mxu0
    %v114 = vtanh.pop %v106
    %v115 = vtanh.pop %v111
    %v116 = vld [vmem:[%s2] sm:$0xff]
    %v117 = vld [vmem:[%s2 + $0x8] sm:$0xff]
    %v118 = vld [vmem:[%s2 + $0x10] sm:$0xff]
    %v119 = vld [vmem:[%s2 + $0x18] sm:$0xff]
    %v120 = vld [vmem:[%s2 + $0x20] sm:$0xff]
    %v121 = vld [vmem:[%s2 + $0x28] sm:$0xff]
    %v122 = vld [vmem:[%s2 + $0x30] sm:$0xff]
    %v123 = vld [vmem:[%s2 + $0x38] sm:$0xff]
    %v124 = vld [vmem:[%s2 + $0x40] sm:$0xff]
    %v125 = vld [vmem:[%s2 + $0x48] sm:$0xff]
    %v126 = vld [vmem:[%s2 + $0x50] sm:$0xff]
    %v127 = vld [vmem:[%s2 + $0x58] sm:$0xff]
    %128 = vmatprep.subr.mxu0 0.0
    %129 = vmatpush1.msra.mxu0 %v116
    %130 = vmatprep.subr.mxu0 0.0
    %131 = vmatpush1.msra.mxu0 %v117
    %132 = vmatprep.subr.mxu0 0.0
    %133 = vmatpush1.msra.mxu0 %v118
    %134 = vmatprep.subr.mxu0 0.0
    %135 = vmatpush1.msra.mxu0 %v119
    %136 = vmatprep.subr.mxu0 0.0
    %137 = vmatpush1.msra.mxu0 %v120
    %138 = vmatprep.subr.mxu0 0.0
    %139 = vmatpush1.msra.mxu0 %v121
    %140 = vmatprep.subr.mxu0 0.0
    %141 = vmatpush1.msra.mxu0 %v122
    %142 = vmatprep.subr.mxu0 0.0
    %143 = vmatpush1.msra.mxu0 %v123
    %144 = vmatprep.subr.mxu0 0.0
    %145 = vmatpush1.msra.mxu0 %v124
    %146 = vmatprep.subr.mxu0 0.0
    %147 = vmatpush1.msra.mxu0 %v125
    %148 = vmatprep.subr.mxu0 0.0
    %149 = vmatpush1.msra.mxu0 %v126
    %150 = vmatprep.subr.mxu0 0.0
    %151 = vmatpush1.msra.mxu0 %v127
    %152 = vmatprep.subr.mxu0 0.0
    %153 = vmatpush1.msra.mxu0 0.0
    %154 = vmatprep.subr.mxu0 0.0
    %155 = vmatpush1.msra.mxu0 0.0
    %156 = vmatprep.subr.mxu0 0.0
    %157 = vmatpush1.msra.mxu0 0.0
    %158 = vmatprep.subr.mxu0 0.0
    %159 = vmatpush1.msra.mxu0 0.0
    %160 = vmatprep.subr.mxu0 0.0
    %161 = vmatpush1.msra.mxu0 0.0
    %162 = vmatprep.subr.mxu0 0.0
    %163 = vmatpush1.msra.mxu0 0.0
    %164 = vmatprep.subr.mxu0 0.0
    %165 = vmatpush1.msra.mxu0 0.0
    %166 = vmatprep.subr.mxu0 0.0
    %167 = vmatpush1.msra.mxu0 0.0
    %168 = vmatprep.subr.mxu0 0.0
    %169 = vmatpush1.msra.mxu0 0.0
    %170 = vmatprep.subr.mxu0 0.0
    %171 = vmatpush1.msra.mxu0 0.0
    %172 = vmatprep.subr.mxu0 0.0
    %173 = vmatpush1.msra.mxu0 0.0
    %174 = vmatprep.subr.mxu0 0.0
    %175 = vmatpush1.msra.mxu0 0.0
    %176 = vmatprep.subr.mxu0 0.0
    %177 = vmatpush1.msra.mxu0 0.0
    %178 = vmatprep.subr.mxu0 0.0
    %179 = vmatpush1.msra.mxu0 0.0
    %180 = vmatprep.subr.mxu0 0.0
    %181 = vmatpush1.msra.mxu0 0.0
    %182 = vmatprep.subr.mxu0 0.0
    %183 = vmatpush1.msra.mxu0 0.0
    %184 = vmatprep.subr.mxu0 0.0
    %185 = vmatpush1.msra.mxu0 0.0
    %186 = vmatprep.subr.mxu0 0.0
    %187 = vmatpush1.msra.mxu0 0.0
    %188 = vmatprep.subr.mxu0 0.0
    %189 = vmatpush1.msra.mxu0 0.0
    %190 = vmatprep.subr.mxu0 0.0
    %191 = vmatpush1.msra.mxu0 0.0
    %192 = vmatprep.mubr.f32.mxu0 0.0
    %193 = vmatmul.mubr.f32.gmra.mrb[0].mxu0 %v34
    %v194 = vpop.f32.mrb[0].mxu0
    %v195 = vadd.f32 0.0, %v194
    %v196 = vpop.f32.mrb[0].mxu0
    %197 = vmatprep.mubr.f32.mxu0 0.0
    %198 = vmatmul.mubr.f32.gmra.mrb[0].mxu0 %v37
    %v199 = vpop.f32.mrb[0].mxu0
    %v200 = vadd.f32 0.0, %v199
    %v201 = vpop.f32.mrb[0].mxu0
    %202 = vdwg.mxu0
    %v203 = vxor.u32 %v195, 2147483648
    %v204 = vxor.u32 %v200, 2147483648
    %v205 = vmul.f32 %v203, 1.442695
    %v206 = vpow.pop %v205
    %v207 = vmul.f32 %v204, 1.442695
    %v208 = vpow.pop %v207
    %v209 = vadd.f32 %v206, 1.0
    %v210 = vadd.f32 %v208, 1.0
    %v211 = vrcp.pop %v209
    %v212 = vmul.f32 1.0, %v211
    %v213 = vrcp.pop %v210
    %v214 = vmul.f32 1.0, %v213
    %v215 = vmul.f32 %v114, %v212
    %v216 = vmul.f32 %v115, %v214
    %v217 = vld [vmem:[%s3] sm:$0xff]
    %v218 = vld [vmem:[%s3 + $0x8] sm:$0xff]
    %v219 = vmul.f32 %v215, %v217
    %v220 = vmul.f32 %v216, %v218
    %223 = vrot.lane.b32.xlu0 %v219, 96
    %v224 = vpop.permute.xlu0 %223
    %225 = vrot.lane.b32.xlu0 %v220, 96
    %v226 = vpop.permute.xlu0 %225
    %v229 = vadd.f32 %v219, %v224
    %v230 = vadd.f32 %v220, %v226
    %231 = vrot.lane.b32.xlu0 %v219, 64
    %v232 = vpop.permute.xlu0 %231
    %233 = vrot.lane.b32.xlu0 %v220, 64
    %v234 = vpop.permute.xlu0 %233
    %v237 = vadd.f32 %v229, %v232
    %v238 = vadd.f32 %v230, %v234
    %vm239 = vcmask 261120
    %240 = vst.msk [vmem:[#allocation2] sm:$0xff] %vm239, %v237
    %241 = vst.msk [vmem:[#allocation2 + $0x8] sm:$0xff] %vm239, %v238
    // Predicated region
    $region18: #{_lambda_.7} parent=1 // pred_check
      _
    $region19: #{_lambda_.7} parent=1 // pred_check_branch
      %243 = sbr.rel (0) target = $region21
    $region20: #{_lambda_.7} parent=1 // pred_region
      %s245 = ssub.s32 256, 256
      %246 = vsyncadd [#allocation3], %s245
      %s247 = sshll.u32 [#allocation2], 4
      %s248 = int_to_ptr.vmem [resolvable:$true] %s247
      %253 = dma.vmem_to_hbm [thread:$0]  %s248, 256, %s4, [#allocation3], 128, 128, 8
    $region21: #{_lambda_.7} parent=1 // pred_fallthru
      _
    // Predicated region
    $region22: #{_lambda_.7} parent=1 // pred_check
      _
    $region23: #{_lambda_.7} parent=1 // pred_check_branch
      %255 = sbr.rel (0) target = $region25
    $region24: #{_lambda_.7} parent=1 // pred_region
      %256 = dma.done [#allocation3], 256
    $region25: #{_lambda_.7} parent=1 // pred_fallthru
      _
    %257 = vsyncpa [#allocation3], 1

// kernel: _lambda_.6
$region0: #{_lambda_.6}
  #allocation0 [shape = 'u32[]', space=smem, size = 0x4, offset = 0x4, fixed_abs, tag = 'smem constant byte address 0x4 - core index']
  #allocation1 [shape = 'u32[144,128]{1,0:T(1,128)}', space=vmem, size = 0x12000, scoped, tag = 'internal scratch']
  %s0 = inlined_call_operand.vmem [shape: f32[16,32], index: 0, kind: input, shape index: {}]
  %s1 = inlined_call_operand.vmem [shape: f32[16,32], index: 1, kind: input, shape index: {}]
  %s2 = inlined_call_operand.vmem [shape: f32[8,32], index: 2, kind: input, shape index: {}]
  %s3 = inlined_call_operand.vmem [shape: f32[16,16], index: 3, kind: input, shape index: {}]
  %s4 = inlined_call_operand.vmem [shape: f32[16,8], index: 4, kind: input, shape index: {}]
  %s5 = inlined_call_operand.vmem [shape: f32[64,192], index: 5, kind: input, shape index: {}]
  %s6 = inlined_call_operand.vmem [shape: f32[64,32], index: 6, kind: input, shape index: {}]
  %s7 = inlined_call_operand.vmem [shape: f32[1,32], index: 7, kind: input, shape index: {}]
  %s8 = inlined_call_operand.vmem [shape: f32[1,32], index: 8, kind: input, shape index: {}]
  %s9 = inlined_call_operand.vmem [shape: f32[32,64], index: 9, kind: input, shape index: {}]
  %s10 = inlined_call_operand.vmem [shape: f32[32,128], index: 10, kind: input, shape index: {}]
  %s11 = inlined_call_operand.vmem [shape: f32[64,32], index: 11, kind: input, shape index: {}]
  %s12 = inlined_call_operand.vmem [shape: f32[1,32], index: 12, kind: input, shape index: {}]
  %s13 = inlined_call_operand.vmem [shape: f32[1,32], index: 13, kind: input, shape index: {}]
  %s14 = inlined_call_operand.vmem [shape: f32[32,64], index: 14, kind: input, shape index: {}]
  %s15 = inlined_call_operand.vmem [shape: f32[1,64], index: 15, kind: input, shape index: {}]
  %s16 = inlined_call_operand.vmem [shape: f32[64,32], index: 16, kind: input, shape index: {}]
  %s17 = inlined_call_operand.vmem [shape: f32[1,32], index: 17, kind: input, shape index: {}]
  %s18 = inlined_call_operand.vmem [shape: f32[1,32], index: 18, kind: input, shape index: {}]
  %s19 = inlined_call_operand.vmem [shape: f32[1,32], index: 19, kind: input, shape index: {}]
  %s20 = inlined_call_operand.vmem [shape: f32[16,32], index: 20, kind: output, shape index: {}]
  %s21 = sld [smem:[#allocation0]]
  $region90: #{_lambda_.6} parent=0
    _
  %s23 = ssub.s32 1, %s21
  %s24 = scalar_select 0, %s23, %s21
  // Predicated region
  $region2: #{_lambda_.6} parent=0 // pred_check
    _
  $region3: #{_lambda_.6} parent=0 // pred_check_branch
    %26 = sbr.rel (0) target = $region5
  $region4: #{_lambda_.6} parent=0 // pred_region
    _
  $region5: #{_lambda_.6} parent=0 // pred_fallthru
    _
  // Predicated region
  $region6: #{_lambda_.6} parent=0 // pred_check
    _
  $region7: #{_lambda_.6} parent=0 // pred_check_branch
    %28 = sbr.rel (0) target = $region9
  $region8: #{_lambda_.6} parent=0 // pred_region
    _
  $region9: #{_lambda_.6} parent=0 // pred_fallthru
    _
  // Predicated region
  $region10: #{_lambda_.6} parent=0 // pred_check
    _
  $region11: #{_lambda_.6} parent=0 // pred_check_branch
    %30 = sbr.rel (0) target = $region13
  $region12: #{_lambda_.6} parent=0 // pred_region
    _
  $region13: #{_lambda_.6} parent=0 // pred_fallthru
    _
  // Predicated region
  $region14: #{_lambda_.6} parent=0 // pred_check
    _
  $region15: #{_lambda_.6} parent=0 // pred_check_branch
    %32 = sbr.rel (0) target = $region17
  $region16: #{_lambda_.6} parent=0 // pred_region
    _
  $region17: #{_lambda_.6} parent=0 // pred_fallthru
    _
  // Predicated region
  $region18: #{_lambda_.6} parent=0 // pred_check
    _
  $region19: #{_lambda_.6} parent=0 // pred_check_branch
    %34 = sbr.rel (0) target = $region21
  $region20: #{_lambda_.6} parent=0 // pred_region
    _
  $region21: #{_lambda_.6} parent=0 // pred_fallthru
    _
  // Predicated region
  $region22: #{_lambda_.6} parent=0 // pred_check
    _
  $region23: #{_lambda_.6} parent=0 // pred_check_branch
    %36 = sbr.rel (0) target = $region25
  $region24: #{_lambda_.6} parent=0 // pred_region
    _
  $region25: #{_lambda_.6} parent=0 // pred_fallthru
    _
  // Predicated region
  $region26: #{_lambda_.6} parent=0 // pred_check
    _
  $region27: #{_lambda_.6} parent=0 // pred_check_branch
    %38 = sbr.rel (0) target = $region29
  $region28: #{_lambda_.6} parent=0 // pred_region
    _
  $region29: #{_lambda_.6} parent=0 // pred_fallthru
    _
  // Predicated region
  $region30: #{_lambda_.6} parent=0 // pred_check
    _
  $region31: #{_lambda_.6} parent=0 // pred_check_branch
    %40 = sbr.rel (0) target = $region33
  $region32: #{_lambda_.6} parent=0 // pred_region
    _
  $region33: #{_lambda_.6} parent=0 // pred_fallthru
    _
  // Predicated region
  $region34: #{_lambda_.6} parent=0 // pred_check
    _
  $region35: #{_lambda_.6} parent=0 // pred_check_branch
    %42 = sbr.rel (0) target = $region37
  $region36: #{_lambda_.6} parent=0 // pred_region
    _
  $region37: #{_lambda_.6} parent=0 // pred_fallthru
    _
  // Predicated region
  $region38: #{_lambda_.6} parent=0 // pred_check
    _
  $region39: #{_lambda_.6} parent=0 // pred_check_branch
    %44 = sbr.rel (0) target = $region41
  $region40: #{_lambda_.6} parent=0 // pred_region
    _
  $region41: #{_lambda_.6} parent=0 // pred_fallthru
    _
  // Predicated region
  $region42: #{_lambda_.6} parent=0 // pred_check
    _
  $region43: #{_lambda_.6} parent=0 // pred_check_branch
    %46 = sbr.rel (0) target = $region45
  $region44: #{_lambda_.6} parent=0 // pred_region
    _
  $region45: #{_lambda_.6} parent=0 // pred_fallthru
    _
  // Predicated region
  $region46: #{_lambda_.6} parent=0 // pred_check
    _
  $region47: #{_lambda_.6} parent=0 // pred_check_branch
    %48 = sbr.rel (0) target = $region49
  $region48: #{_lambda_.6} parent=0 // pred_region
    _
  $region49: #{_lambda_.6} parent=0 // pred_fallthru
    _
  // Predicated region
  $region50: #{_lambda_.6} parent=0 // pred_check
    _
  $region51: #{_lambda_.6} parent=0 // pred_check_branch
    %50 = sbr.rel (0) target = $region53
  $region52: #{_lambda_.6} parent=0 // pred_region
    _
  $region53: #{_lambda_.6} parent=0 // pred_fallthru
    _
  // Predicated region
  $region54: #{_lambda_.6} parent=0 // pred_check
    _
  $region55: #{_lambda_.6} parent=0 // pred_check_branch
    %52 = sbr.rel (0) target = $region57
  $region56: #{_lambda_.6} parent=0 // pred_region
    _
  $region57: #{_lambda_.6} parent=0 // pred_fallthru
    _
  // Predicated region
  $region58: #{_lambda_.6} parent=0 // pred_check
    _
  $region59: #{_lambda_.6} parent=0 // pred_check_branch
    %54 = sbr.rel (0) target = $region61
  $region60: #{_lambda_.6} parent=0 // pred_region
    _
  $region61: #{_lambda_.6} parent=0 // pred_fallthru
    _
  // Predicated region
  $region62: #{_lambda_.6} parent=0 // pred_check
    _
  $region63: #{_lambda_.6} parent=0 // pred_check_branch
    %56 = sbr.rel (0) target = $region65
  $region64: #{_lambda_.6} parent=0 // pred_region
    _
  $region65: #{_lambda_.6} parent=0 // pred_fallthru
    _
  // Predicated region
  $region66: #{_lambda_.6} parent=0 // pred_check
    _
  $region67: #{_lambda_.6} parent=0 // pred_check_branch
    %58 = sbr.rel (0) target = $region69
  $region68: #{_lambda_.6} parent=0 // pred_region
    _
  $region69: #{_lambda_.6} parent=0 // pred_fallthru
    _
  // Predicated region
  $region70: #{_lambda_.6} parent=0 // pred_check
    _
  $region71: #{_lambda_.6} parent=0 // pred_check_branch
    %60 = sbr.rel (0) target = $region73
  $region72: #{_lambda_.6} parent=0 // pred_region
    _
  $region73: #{_lambda_.6} parent=0 // pred_fallthru
    _
  // Predicated region
  $region74: #{_lambda_.6} parent=0 // pred_check
    _
  $region75: #{_lambda_.6} parent=0 // pred_check_branch
    %62 = sbr.rel (0) target = $region77
  $region76: #{_lambda_.6} parent=0 // pred_region
    _
  $region77: #{_lambda_.6} parent=0 // pred_fallthru
    _
  // Predicated region
  $region78: #{_lambda_.6} parent=0 // pred_check
    _
  $region79: #{_lambda_.6} parent=0 // pred_check_branch
    %64 = sbr.rel (0) target = $region81
  $region80: #{_lambda_.6} parent=0 // pred_region
    _
  $region81: #{_lambda_.6} parent=0 // pred_fallthru
    _
  %v65 = vld [vmem:[%s0] sm:$0xff]
  %v66 = vld [vmem:[%s0 + $0x8] sm:$0xff]
  %v67 = vld [vmem:[%s1] sm:$0xff]
  %v68 = vld [vmem:[%s1 + $0x8] sm:$0xff]
  %71 = vrot.lane.b32.xlu0 %v67, 32
  %v72 = vpop.permute.xlu0 %71
  %73 = vrot.lane.b32.xlu0 %v68, 32
  %v74 = vpop.permute.xlu0 %73
  %vm77 = vcmask 261120
  %v78 = vsel %vm77, %v65, %v72
  %v79 = vsel %vm77, %v66, %v74
  %v80 = vld [vmem:[%s5] sm:$0xff]
  %v81 = vld [vmem:[%s5 + $0x8] sm:$0xff]
  %v82 = vld [vmem:[%s5 + $0x10] sm:$0xff]
  %v83 = vld [vmem:[%s5 + $0x18] sm:$0xff]
  %v84 = vld [vmem:[%s5 + $0x20] sm:$0xff]
  %v85 = vld [vmem:[%s5 + $0x28] sm:$0xff]
  %v86 = vld [vmem:[%s5 + $0x30] sm:$0xff]
  %v87 = vld [vmem:[%s5 + $0x38] sm:$0xff]
  %v88 = vld [vmem:[%s5 + $0x40] sm:$0xff]
  %v89 = vld [vmem:[%s5 + $0x48] sm:$0xff]
  %v90 = vld [vmem:[%s5 + $0x50] sm:$0xff]
  %v91 = vld [vmem:[%s5 + $0x58] sm:$0xff]
  %v92 = vld [vmem:[%s5 + $0x60] sm:$0xff]
  %v93 = vld [vmem:[%s5 + $0x68] sm:$0xff]
  %v94 = vld [vmem:[%s5 + $0x70] sm:$0xff]
  %v95 = vld [vmem:[%s5 + $0x78] sm:$0xff]
  %vm96 = vcmask 523264
  %v98 = vsel %vm96, %v78, 0
  %v101 = vsel %vm96, %v79, 0
  %103 = vmatprep.subr.mxu0 %v81
  %104 = vmatpush1.msra.mxu0 %v80
  %105 = vmatprep.subr.mxu0 %v83
  %106 = vmatpush1.msra.mxu0 %v82
  %107 = vmatprep.subr.mxu0 %v85
  %108 = vmatpush1.msra.mxu0 %v84
  %109 = vmatprep.subr.mxu0 %v87
  %110 = vmatpush1.msra.mxu0 %v86
  %111 = vmatprep.subr.mxu0 %v89
  %112 = vmatpush1.msra.mxu0 %v88
  %113 = vmatprep.subr.mxu0 %v91
  %114 = vmatpush1.msra.mxu0 %v90
  %115 = vmatprep.subr.mxu0 %v93
  %116 = vmatpush1.msra.mxu0 %v92
  %117 = vmatprep.subr.mxu0 %v95
  %118 = vmatpush1.msra.mxu0 %v94
  %119 = vmatprep.subr.mxu0 0.0
  %120 = vmatpush1.msra.mxu0 0.0
  %121 = vmatprep.subr.mxu0 0.0
  %122 = vmatpush1.msra.mxu0 0.0
  %123 = vmatprep.subr.mxu0 0.0
  %124 = vmatpush1.msra.mxu0 0.0
  %125 = vmatprep.subr.mxu0 0.0
  %126 = vmatpush1.msra.mxu0 0.0
  %127 = vmatprep.subr.mxu0 0.0
  %128 = vmatpush1.msra.mxu0 0.0
  %129 = vmatprep.subr.mxu0 0.0
  %130 = vmatpush1.msra.mxu0 0.0
  %131 = vmatprep.subr.mxu0 0.0
  %132 = vmatpush1.msra.mxu0 0.0
  %133 = vmatprep.subr.mxu0 0.0
  %134 = vmatpush1.msra.mxu0 0.0
  %135 = vmatprep.subr.mxu0 0.0
  %136 = vmatpush1.msra.mxu0 0.0
  %137 = vmatprep.subr.mxu0 0.0
  %138 = vmatpush1.msra.mxu0 0.0
  %139 = vmatprep.subr.mxu0 0.0
  %140 = vmatpush1.msra.mxu0 0.0
  %141 = vmatprep.subr.mxu0 0.0
  %142 = vmatpush1.msra.mxu0 0.0
  %143 = vmatprep.subr.mxu0 0.0
  %144 = vmatpush1.msra.mxu0 0.0
  %145 = vmatprep.subr.mxu0 0.0
  %146 = vmatpush1.msra.mxu0 0.0
  %147 = vmatprep.subr.mxu0 0.0
  %148 = vmatpush1.msra.mxu0 0.0
  %149 = vmatprep.subr.mxu0 0.0
  %150 = vmatpush1.msra.mxu0 0.0
  %151 = vmatprep.subr.mxu0 0.0
  %152 = vmatpush1.msra.mxu0 0.0
  %153 = vmatprep.subr.mxu0 0.0
  %154 = vmatpush1.msra.mxu0 0.0
  %155 = vmatprep.subr.mxu0 0.0
  %156 = vmatpush1.msra.mxu0 0.0
  %157 = vmatprep.subr.mxu0 0.0
  %158 = vmatpush1.msra.mxu0 0.0
  %159 = vmatprep.subr.mxu0 0.0
  %160 = vmatpush1.msra.mxu0 0.0
  %161 = vmatprep.subr.mxu0 0.0
  %162 = vmatpush1.msra.mxu0 0.0
  %163 = vmatprep.subr.mxu0 0.0
  %164 = vmatpush1.msra.mxu0 0.0
  %165 = vmatprep.subr.mxu0 0.0
  %166 = vmatpush1.msra.mxu0 0.0
  %167 = vmatprep.mubr.f32.mxu0 0.0
  %168 = vmatmul.mubr.f32.gmra.mrb[0].mxu0 %v98
  %v169 = vpop.f32.mrb[0].mxu0
  %v170 = vadd.f32 0.0, %v169
  %v171 = vpop.f32.mrb[0].mxu0
  %v172 = vadd.f32 0.0, %v171
  %173 = vmatprep.mubr.f32.mxu0 0.0
  %174 = vmatmul.mubr.f32.gmra.mrb[0].mxu0 %v101
  %v175 = vpop.f32.mrb[0].mxu0
  %v176 = vadd.f32 0.0, %v175
  %v177 = vpop.f32.mrb[0].mxu0
  %v178 = vadd.f32 0.0, %v177
  %179 = vdwg.mxu0
  %v180 = vld [vmem:[%s3] sm:$0xff]
  %v181 = vld [vmem:[%s3 + $0x8] sm:$0xff]
  %184 = vrot.lane.b32.xlu0 %v170, 64
  %v185 = vpop.permute.xlu0 %184
  %186 = vrot.lane.b32.xlu0 %v176, 64
  %v187 = vpop.permute.xlu0 %186
  %v188 = vsel %vm77, %v170, 0
  %v190 = vsel %vm77, %v176, 0
  %v192 = vsel %vm77, %v185, 0
  %v194 = vsel %vm77, %v187, 0
  %196 = vmatprep.subr.mxu0 0.0
  %197 = vmatpush1.xpose.msra.mxu0 %v192
  %198 = vmatprep.subr.mxu0 0.0
  %199 = vmatpush1.xpose.msra.mxu0 %v194
  %200 = vmatprep.subr.mxu0 0.0
  %201 = vmatpush1.xpose.msra.mxu0 0.0
  %202 = vmatprep.subr.mxu0 0.0
  %203 = vmatpush1.xpose.msra.mxu0 0.0
  %204 = vmatprep.subr.mxu0 0.0
  %205 = vmatpush1.xpose.msra.mxu0 0.0
  %206 = vmatprep.subr.mxu0 0.0
  %207 = vmatpush1.xpose.msra.mxu0 0.0
  %208 = vmatprep.subr.mxu0 0.0
  %209 = vmatpush1.xpose.msra.mxu0 0.0
  %210 = vmatprep.subr.mxu0 0.0
  %211 = vmatpush1.xpose.msra.mxu0 0.0
  %212 = vmatprep.subr.mxu0 0.0
  %213 = vmatpush1.xpose.msra.mxu0 0.0
  %214 = vmatprep.subr.mxu0 0.0
  %215 = vmatpush1.xpose.msra.mxu0 0.0
  %216 = vmatprep.subr.mxu0 0.0
  %217 = vmatpush1.xpose.msra.mxu0 0.0
  %218 = vmatprep.subr.mxu0 0.0
  %219 = vmatpush1.xpose.msra.mxu0 0.0
  %220 = vmatprep.subr.mxu0 0.0
  %221 = vmatpush1.xpose.msra.mxu0 0.0
  %222 = vmatprep.subr.mxu0 0.0
  %223 = vmatpush1.xpose.msra.mxu0 0.0
  %224 = vmatprep.subr.mxu0 0.0
  %225 = vmatpush1.xpose.msra.mxu0 0.0
  %226 = vmatprep.subr.mxu0 0.0
  %227 = vmatpush1.xpose.msra.mxu0 0.0
  %228 = vmatprep.subr.mxu0 0.0
  %229 = vmatpush1.xpose.msra.mxu0 0.0
  %230 = vmatprep.subr.mxu0 0.0
  %231 = vmatpush1.xpose.msra.mxu0 0.0
  %232 = vmatprep.subr.mxu0 0.0
  %233 = vmatpush1.xpose.msra.mxu0 0.0
  %234 = vmatprep.subr.mxu0 0.0
  %235 = vmatpush1.xpose.msra.mxu0 0.0
  %236 = vmatprep.subr.mxu0 0.0
  %237 = vmatpush1.xpose.msra.mxu0 0.0
  %238 = vmatprep.subr.mxu0 0.0
  %239 = vmatpush1.xpose.msra.mxu0 0.0
  %240 = vmatprep.subr.mxu0 0.0
  %241 = vmatpush1.xpose.msra.mxu0 0.0
  %242 = vmatprep.subr.mxu0 0.0
  %243 = vmatpush1.xpose.msra.mxu0 0.0
  %244 = vmatprep.subr.mxu0 0.0
  %245 = vmatpush1.xpose.msra.mxu0 0.0
  %246 = vmatprep.subr.mxu0 0.0
  %247 = vmatpush1.xpose.msra.mxu0 0.0
  %248 = vmatprep.subr.mxu0 0.0
  %249 = vmatpush1.xpose.msra.mxu0 0.0
  %250 = vmatprep.subr.mxu0 0.0
  %251 = vmatpush1.xpose.msra.mxu0 0.0
  %252 = vmatprep.subr.mxu0 0.0
  %253 = vmatpush1.xpose.msra.mxu0 0.0
  %254 = vmatprep.subr.mxu0 0.0
  %255 = vmatpush1.xpose.msra.mxu0 0.0
  %256 = vmatprep.subr.mxu0 0.0
  %257 = vmatpush1.xpose.msra.mxu0 0.0
  %258 = vmatprep.subr.mxu0 0.0
  %259 = vmatpush1.xpose.msra.mxu0 0.0
  %260 = vmatprep.mubr.f32.mxu0 0.0
  %261 = vmatmul.mubr.f32.gmra.mrb[0].mxu0 %v188
  %v262 = vpop.f32.mrb[0].mxu0
  %v263 = vadd.f32 0.0, %v262
  %v264 = vpop.f32.mrb[0].mxu0
  %265 = vmatprep.mubr.f32.mxu0 0.0
  %266 = vmatmul.mubr.f32.gmra.mrb[0].mxu0 %v190
  %v267 = vpop.f32.mrb[0].mxu0
  %v268 = vadd.f32 0.0, %v267
  %v269 = vpop.f32.mrb[0].mxu0
  %270 = vdwg.mxu0
  %vm271 = vcmp.gt.f32.partialorder %v180, 0.5
  %vm272 = vcmp.gt.f32.partialorder %v181, 0.5
  %v273 = vsel %vm271, %v263, -1e+09
  %v274 = vsel %vm272, %v268, -1e+09
  %vm275 = vcmask 130048
  %v276 = vsel %vm275, %v273, -inf
  %277 = vmax.xlane.f32.xlu0 %v276
  %v278 = vpop.xlane.xlu0 %277
  %v279 = vsel %vm275, %v274, -inf
  %280 = vmax.xlane.f32.xlu0 %v279
  %v281 = vpop.xlane.xlu0 %280
  %v282 = vsub.f32 %v273, %v278
  %v283 = vsub.f32 %v274, %v281
  %v284 = vmul.f32 %v282, 1.442695
  %v285 = vpow.pop %v284
  %v286 = vmul.f32 %v283, 1.442695
  %v287 = vpow.pop %v286
  %v288 = vsel %vm275, %v285, 0.0
  %289 = vadd.xlane.f32.xlu0 %v288
  %v290 = vpop.xlane.xlu0 %289
  %v291 = vsel %vm275, %v287, 0.0
  %292 = vadd.xlane.f32.xlu0 %v291
  %v293 = vpop.xlane.xlu0 %292
  %v294 = vrcp.pop %v290
  %v295 = vmul.f32 %v285, %v294
  %v296 = vrcp.pop %v293
  %v297 = vmul.f32 %v287, %v296
  %v299 = vsel %vm275, %v295, 0
  %v302 = vsel %vm275, %v297, 0
  %304 = vmatprep.subr.mxu0 0.0
  %305 = vmatpush1.msra.mxu0 %v172
  %306 = vmatprep.subr.mxu0 0.0
  %307 = vmatpush1.msra.mxu0 %v178
  %308 = vmatprep.subr.mxu0 0.0
  %309 = vmatpush1.msra.mxu0 0.0
  %310 = vmatprep.subr.mxu0 0.0
  %311 = vmatpush1.msra.mxu0 0.0
  %312 = vmatprep.subr.mxu0 0.0
  %313 = vmatpush1.msra.mxu0 0.0
  %314 = vmatprep.subr.mxu0 0.0
  %315 = vmatpush1.msra.mxu0 0.0
  %316 = vmatprep.subr.mxu0 0.0
  %317 = vmatpush1.msra.mxu0 0.0
  %318 = vmatprep.subr.mxu0 0.0
  %319 = vmatpush1.msra.mxu0 0.0
  %320 = vmatprep.subr.mxu0 0.0
  %321 = vmatpush1.msra.mxu0 0.0
  %322 = vmatprep.subr.mxu0 0.0
  %323 = vmatpush1.msra.mxu0 0.0
  %324 = vmatprep.subr.mxu0 0.0
  %325 = vmatpush1.msra.mxu0 0.0
  %326 = vmatprep.subr.mxu0 0.0
  %327 = vmatpush1.msra.mxu0 0.0
  %328 = vmatprep.subr.mxu0 0.0
  %329 = vmatpush1.msra.mxu0 0.0
  %330 = vmatprep.subr.mxu0 0.0
  %331 = vmatpush1.msra.mxu0 0.0
  %332 = vmatprep.subr.mxu0 0.0
  %333 = vmatpush1.msra.mxu0 0.0
  %334 = vmatprep.subr.mxu0 0.0
  %335 = vmatpush1.msra.mxu0 0.0
  %336 = vmatprep.subr.mxu0 0.0
  %337 = vmatpush1.msra.mxu0 0.0
  %338 = vmatprep.subr.mxu0 0.0
  %339 = vmatpush1.msra.mxu0 0.0
  %340 = vmatprep.subr.mxu0 0.0
  %341 = vmatpush1.msra.mxu0 0.0
  %342 = vmatprep.subr.mxu0 0.0
  %343 = vmatpush1.msra.mxu0 0.0
  %344 = vmatprep.subr.mxu0 0.0
  %345 = vmatpush1.msra.mxu0 0.0
  %346 = vmatprep.subr.mxu0 0.0
  %347 = vmatpush1.msra.mxu0 0.0
  %348 = vmatprep.subr.mxu0 0.0
  %349 = vmatpush1.msra.mxu0 0.0
  %350 = vmatprep.subr.mxu0 0.0
  %351 = vmatpush1.msra.mxu0 0.0
  %352 = vmatprep.subr.mxu0 0.0
  %353 = vmatpush1.msra.mxu0 0.0
  %354 = vmatprep.subr.mxu0 0.0
  %355 = vmatpush1.msra.mxu0 0.0
  %356 = vmatprep.subr.mxu0 0.0
  %357 = vmatpush1.msra.mxu0 0.0
  %358 = vmatprep.subr.mxu0 0.0
  %359 = vmatpush1.msra.mxu0 0.0
  %360 = vmatprep.subr.mxu0 0.0
  %361 = vmatpush1.msra.mxu0 0.0
  %362 = vmatprep.subr.mxu0 0.0
  %363 = vmatpush1.msra.mxu0 0.0
  %364 = vmatprep.subr.mxu0 0.0
  %365 = vmatpush1.msra.mxu0 0.0
  %366 = vmatprep.subr.mxu0 0.0
  %367 = vmatpush1.msra.mxu0 0.0
  %368 = vmatprep.mubr.f32.mxu0 0.0
  %369 = vmatmul.mubr.f32.gmra.mrb[0].mxu0 %v299
  %v370 = vpop.f32.mrb[0].mxu0
  %v371 = vadd.f32 0.0, %v370
  %v372 = vpop.f32.mrb[0].mxu0
  %373 = vmatprep.mubr.f32.mxu0 0.0
  %374 = vmatmul.mubr.f32.gmra.mrb[0].mxu0 %v302
  %v375 = vpop.f32.mrb[0].mxu0
  %v376 = vadd.f32 0.0, %v375
  %v377 = vpop.f32.mrb[0].mxu0
  %378 = vdwg.mxu0
  %379 = vrot.lane.b32.xlu0 %v170, 96
  %v380 = vpop.permute.xlu0 %379
  %381 = vrot.lane.b32.xlu0 %v176, 96
  %v382 = vpop.permute.xlu0 %381
  %383 = vrot.lane.b32.xlu0 %v170, 32
  %v384 = vpop.permute.xlu0 %383
  %385 = vrot.lane.b32.xlu0 %v176, 32
  %v386 = vpop.permute.xlu0 %385
  %v387 = vsel %vm77, %v380, 0
  %v389 = vsel %vm77, %v382, 0
  %v391 = vsel %vm77, %v384, 0
  %v393 = vsel %vm77, %v386, 0
  %395 = vmatprep.subr.mxu0 0.0
  %396 = vmatpush1.xpose.msra.mxu0 %v391
  %397 = vmatprep.subr.mxu0 0.0
  %398 = vmatpush1.xpose.msra.mxu0 %v393
  %399 = vmatprep.subr.mxu0 0.0
  %400 = vmatpush1.xpose.msra.mxu0 0.0
  %401 = vmatprep.subr.mxu0 0.0
  %402 = vmatpush1.xpose.msra.mxu0 0.0
  %403 = vmatprep.subr.mxu0 0.0
  %404 = vmatpush1.xpose.msra.mxu0 0.0
  %405 = vmatprep.subr.mxu0 0.0
  %406 = vmatpush1.xpose.msra.mxu0 0.0
  %407 = vmatprep.subr.mxu0 0.0
  %408 = vmatpush1.xpose.msra.mxu0 0.0
  %409 = vmatprep.subr.mxu0 0.0
  %410 = vmatpush1.xpose.msra.mxu0 0.0
  %411 = vmatprep.subr.mxu0 0.0
  %412 = vmatpush1.xpose.msra.mxu0 0.0
  %413 = vmatprep.subr.mxu0 0.0
  %414 = vmatpush1.xpose.msra.mxu0 0.0
  %415 = vmatprep.subr.mxu0 0.0
  %416 = vmatpush1.xpose.msra.mxu0 0.0
  %417 = vmatprep.subr.mxu0 0.0
  %418 = vmatpush1.xpose.msra.mxu0 0.0
  %419 = vmatprep.subr.mxu0 0.0
  %420 = vmatpush1.xpose.msra.mxu0 0.0
  %421 = vmatprep.subr.mxu0 0.0
  %422 = vmatpush1.xpose.msra.mxu0 0.0
  %423 = vmatprep.subr.mxu0 0.0
  %424 = vmatpush1.xpose.msra.mxu0 0.0
  %425 = vmatprep.subr.mxu0 0.0
  %426 = vmatpush1.xpose.msra.mxu0 0.0
  %427 = vmatprep.subr.mxu0 0.0
  %428 = vmatpush1.xpose.msra.mxu0 0.0
  %429 = vmatprep.subr.mxu0 0.0
  %430 = vmatpush1.xpose.msra.mxu0 0.0
  %431 = vmatprep.subr.mxu0 0.0
  %432 = vmatpush1.xpose.msra.mxu0 0.0
  %433 = vmatprep.subr.mxu0 0.0
  %434 = vmatpush1.xpose.msra.mxu0 0.0
  %435 = vmatprep.subr.mxu0 0.0
  %436 = vmatpush1.xpose.msra.mxu0 0.0
  %437 = vmatprep.subr.mxu0 0.0
  %438 = vmatpush1.xpose.msra.mxu0 0.0
  %439 = vmatprep.subr.mxu0 0.0
  %440 = vmatpush1.xpose.msra.mxu0 0.0
  %441 = vmatprep.subr.mxu0 0.0
  %442 = vmatpush1.xpose.msra.mxu0 0.0
  %443 = vmatprep.subr.mxu0 0.0
  %444 = vmatpush1.xpose.msra.mxu0 0.0
  %445 = vmatprep.subr.mxu0 0.0
  %446 = vmatpush1.xpose.msra.mxu0 0.0
  %447 = vmatprep.subr.mxu0 0.0
  %448 = vmatpush1.xpose.msra.mxu0 0.0
  %449 = vmatprep.subr.mxu0 0.0
  %450 = vmatpush1.xpose.msra.mxu0 0.0
  %451 = vmatprep.subr.mxu0 0.0
  %452 = vmatpush1.xpose.msra.mxu0 0.0
  %453 = vmatprep.subr.mxu0 0.0
  %454 = vmatpush1.xpose.msra.mxu0 0.0
  %455 = vmatprep.subr.mxu0 0.0
  %456 = vmatpush1.xpose.msra.mxu0 0.0
  %457 = vmatprep.subr.mxu0 0.0
  %458 = vmatpush1.xpose.msra.mxu0 0.0
  %459 = vmatprep.mubr.f32.mxu0 0.0
  %460 = vmatmul.mubr.f32.gmra.mrb[0].mxu0 %v387
  %v461 = vpop.f32.mrb[0].mxu0
  %v462 = vadd.f32 0.0, %v461
  %v463 = vpop.f32.mrb[0].mxu0
  %464 = vmatprep.mubr.f32.mxu0 0.0
  %465 = vmatmul.mubr.f32.gmra.mrb[0].mxu0 %v389
  %v466 = vpop.f32.mrb[0].mxu0
  %v467 = vadd.f32 0.0, %v466
  %v468 = vpop.f32.mrb[0].mxu0
  %469 = vdwg.mxu0
  %v470 = vsel %vm271, %v462, -1e+09
  %v471 = vsel %vm272, %v467, -1e+09
  %v472 = vsel %vm275, %v470, -inf
  %473 = vmax.xlane.f32.xlu0 %v472
  %v474 = vpop.xlane.xlu0 %473
  %v475 = vsel %vm275, %v471, -inf
  %476 = vmax.xlane.f32.xlu0 %v475
  %v477 = vpop.xlane.xlu0 %476
  %v478 = vsub.f32 %v470, %v474
  %v479 = vsub.f32 %v471, %v477
  %v480 = vmul.f32 %v478, 1.442695
  %v481 = vpow.pop %v480
  %v482 = vmul.f32 %v479, 1.442695
  %v483 = vpow.pop %v482
  %v484 = vsel %vm275, %v481, 0.0
  %485 = vadd.xlane.f32.xlu0 %v484
  %v486 = vpop.xlane.xlu0 %485
  %v487 = vsel %vm275, %v483, 0.0
  %488 = vadd.xlane.f32.xlu0 %v487
  %v489 = vpop.xlane.xlu0 %488
  %v490 = vrcp.pop %v486
  %v491 = vmul.f32 %v481, %v490
  %v492 = vrcp.pop %v489
  %v493 = vmul.f32 %v483, %v492
  %496 = vrot.lane.b32.xlu0 %v172, 96
  %v497 = vpop.permute.xlu0 %496
  %498 = vrot.lane.b32.xlu0 %v178, 96
  %v499 = vpop.permute.xlu0 %498
  %v503 = vsel %vm275, %v491, 0
  %v506 = vsel %vm275, %v493, 0
  %508 = vmatprep.subr.mxu0 0.0
  %509 = vmatpush1.msra.mxu0 %v497
  %510 = vmatprep.subr.mxu0 0.0
  %511 = vmatpush1.msra.mxu0 %v499
  %512 = vmatprep.subr.mxu0 0.0
  %513 = vmatpush1.msra.mxu0 0.0
  %514 = vmatprep.subr.mxu0 0.0
  %515 = vmatpush1.msra.mxu0 0.0
  %516 = vmatprep.subr.mxu0 0.0
  %517 = vmatpush1.msra.mxu0 0.0
  %518 = vmatprep.subr.mxu0 0.0
  %519 = vmatpush1.msra.mxu0 0.0
  %520 = vmatprep.subr.mxu0 0.0
  %521 = vmatpush1.msra.mxu0 0.0
  %522 = vmatprep.subr.mxu0 0.0
  %523 = vmatpush1.msra.mxu0 0.0
  %524 = vmatprep.subr.mxu0 0.0
  %525 = vmatpush1.msra.mxu0 0.0
  %526 = vmatprep.subr.mxu0 0.0
  %527 = vmatpush1.msra.mxu0 0.0
  %528 = vmatprep.subr.mxu0 0.0
  %529 = vmatpush1.msra.mxu0 0.0
  %530 = vmatprep.subr.mxu0 0.0
  %531 = vmatpush1.msra.mxu0 0.0
  %532 = vmatprep.subr.mxu0 0.0
  %533 = vmatpush1.msra.mxu0 0.0
  %534 = vmatprep.subr.mxu0 0.0
  %535 = vmatpush1.msra.mxu0 0.0
  %536 = vmatprep.subr.mxu0 0.0
  %537 = vmatpush1.msra.mxu0 0.0
  %538 = vmatprep.subr.mxu0 0.0
  %539 = vmatpush1.msra.mxu0 0.0
  %540 = vmatprep.subr.mxu0 0.0
  %541 = vmatpush1.msra.mxu0 0.0
  %542 = vmatprep.subr.mxu0 0.0
  %543 = vmatpush1.msra.mxu0 0.0
  %544 = vmatprep.subr.mxu0 0.0
  %545 = vmatpush1.msra.mxu0 0.0
  %546 = vmatprep.subr.mxu0 0.0
  %547 = vmatpush1.msra.mxu0 0.0
  %548 = vmatprep.subr.mxu0 0.0
  %549 = vmatpush1.msra.mxu0 0.0
  %550 = vmatprep.subr.mxu0 0.0
  %551 = vmatpush1.msra.mxu0 0.0
  %552 = vmatprep.subr.mxu0 0.0
  %553 = vmatpush1.msra.mxu0 0.0
  %554 = vmatprep.subr.mxu0 0.0
  %555 = vmatpush1.msra.mxu0 0.0
  %556 = vmatprep.subr.mxu0 0.0
  %557 = vmatpush1.msra.mxu0 0.0
  %558 = vmatprep.subr.mxu0 0.0
  %559 = vmatpush1.msra.mxu0 0.0
  %560 = vmatprep.subr.mxu0 0.0
  %561 = vmatpush1.msra.mxu0 0.0
  %562 = vmatprep.subr.mxu0 0.0
  %563 = vmatpush1.msra.mxu0 0.0
  %564 = vmatprep.subr.mxu0 0.0
  %565 = vmatpush1.msra.mxu0 0.0
  %566 = vmatprep.subr.mxu0 0.0
  %567 = vmatpush1.msra.mxu0 0.0
  %568 = vmatprep.subr.mxu0 0.0
  %569 = vmatpush1.msra.mxu0 0.0
  %570 = vmatprep.subr.mxu0 0.0
  %571 = vmatpush1.msra.mxu0 0.0
  %572 = vmatprep.mubr.f32.mxu0 0.0
  %573 = vmatmul.mubr.f32.gmra.mrb[0].mxu0 %v503
  %v574 = vpop.f32.mrb[0].mxu0
  %v575 = vadd.f32 0.0, %v574
  %v576 = vpop.f32.mrb[0].mxu0
  %577 = vmatprep.mubr.f32.mxu0 0.0
  %578 = vmatmul.mubr.f32.gmra.mrb[0].mxu0 %v506
  %v579 = vpop.f32.mrb[0].mxu0
  %v580 = vadd.f32 0.0, %v579
  %v581 = vpop.f32.mrb[0].mxu0
  %582 = vdwg.mxu0
  %585 = vrot.lane.b32.xlu0 %v575, 32
  %v586 = vpop.permute.xlu0 %585
  %587 = vrot.lane.b32.xlu0 %v580, 32
  %v588 = vpop.permute.xlu0 %587
  %v591 = vsel %vm77, %v371, %v586
  %v592 = vsel %vm77, %v376, %v588
  %v593 = vld [vmem:[%s6] sm:$0xff]
  %v594 = vld [vmem:[%s6 + $0x8] sm:$0xff]
  %v595 = vld [vmem:[%s6 + $0x10] sm:$0xff]
  %v596 = vld [vmem:[%s6 + $0x18] sm:$0xff]
  %v597 = vld [vmem:[%s6 + $0x20] sm:$0xff]
  %v598 = vld [vmem:[%s6 + $0x28] sm:$0xff]
  %v599 = vld [vmem:[%s6 + $0x30] sm:$0xff]
  %v600 = vld [vmem:[%s6 + $0x38] sm:$0xff]
  %v601 = vadd.f32 %v65, %v67
  %v602 = vadd.f32 %v66, %v68
  %v604 = vsel %vm96, %v591, 0
  %v607 = vsel %vm96, %v592, 0
  %609 = vmatprep.subr.mxu0 0.0
  %610 = vmatpush1.msra.mxu0 %v593
  %611 = vmatprep.subr.mxu0 0.0
  %612 = vmatpush1.msra.mxu0 %v594
  %613 = vmatprep.subr.mxu0 0.0
  %614 = vmatpush1.msra.mxu0 %v595
  %615 = vmatprep.subr.mxu0 0.0
  %616 = vmatpush1.msra.mxu0 %v596
  %617 = vmatprep.subr.mxu0 0.0
  %618 = vmatpush1.msra.mxu0 %v597
  %619 = vmatprep.subr.mxu0 0.0
  %620 = vmatpush1.msra.mxu0 %v598
  %621 = vmatprep.subr.mxu0 0.0
  %622 = vmatpush1.msra.mxu0 %v599
  %623 = vmatprep.subr.mxu0 0.0
  %624 = vmatpush1.msra.mxu0 %v600
  %625 = vmatprep.subr.mxu0 0.0
  %626 = vmatpush1.msra.mxu0 0.0
  %627 = vmatprep.subr.mxu0 0.0
  %628 = vmatpush1.msra.mxu0 0.0
  %629 = vmatprep.subr.mxu0 0.0
  %630 = vmatpush1.msra.mxu0 0.0
  %631 = vmatprep.subr.mxu0 0.0
  %632 = vmatpush1.msra.mxu0 0.0
  %633 = vmatprep.subr.mxu0 0.0
  %634 = vmatpush1.msra.mxu0 0.0
  %635 = vmatprep.subr.mxu0 0.0
  %636 = vmatpush1.msra.mxu0 0.0
  %637 = vmatprep.subr.mxu0 0.0
  %638 = vmatpush1.msra.mxu0 0.0
  %639 = vmatprep.subr.mxu0 0.0
  %640 = vmatpush1.msra.mxu0 0.0
  %641 = vmatprep.subr.mxu0 0.0
  %642 = vmatpush1.msra.mxu0 0.0
  %643 = vmatprep.subr.mxu0 0.0
  %644 = vmatpush1.msra.mxu0 0.0
  %645 = vmatprep.subr.mxu0 0.0
  %646 = vmatpush1.msra.mxu0 0.0
  %647 = vmatprep.subr.mxu0 0.0
  %648 = vmatpush1.msra.mxu0 0.0
  %649 = vmatprep.subr.mxu0 0.0
  %650 = vmatpush1.msra.mxu0 0.0
  %651 = vmatprep.subr.mxu0 0.0
  %652 = vmatpush1.msra.mxu0 0.0
  %653 = vmatprep.subr.mxu0 0.0
  %654 = vmatpush1.msra.mxu0 0.0
  %655 = vmatprep.subr.mxu0 0.0
  %656 = vmatpush1.msra.mxu0 0.0
  %657 = vmatprep.subr.mxu0 0.0
  %658 = vmatpush1.msra.mxu0 0.0
  %659 = vmatprep.subr.mxu0 0.0
  %660 = vmatpush1.msra.mxu0 0.0
  %661 = vmatprep.subr.mxu0 0.0
  %662 = vmatpush1.msra.mxu0 0.0
  %663 = vmatprep.subr.mxu0 0.0
  %664 = vmatpush1.msra.mxu0 0.0
  %665 = vmatprep.subr.mxu0 0.0
  %666 = vmatpush1.msra.mxu0 0.0
  %667 = vmatprep.subr.mxu0 0.0
  %668 = vmatpush1.msra.mxu0 0.0
  %669 = vmatprep.subr.mxu0 0.0
  %670 = vmatpush1.msra.mxu0 0.0
  %671 = vmatprep.subr.mxu0 0.0
  %672 = vmatpush1.msra.mxu0 0.0
  %673 = vmatprep.mubr.f32.mxu0 0.0
  %674 = vmatmul.mubr.f32.gmra.mrb[0].mxu0 %v604
  %v675 = vpop.f32.mrb[0].mxu0
  %v676 = vadd.f32 %v601, %v675
  %v677 = vpop.f32.mrb[0].mxu0
  %678 = vmatprep.mubr.f32.mxu0 0.0
  %679 = vmatmul.mubr.f32.gmra.mrb[0].mxu0 %v607
  %v680 = vpop.f32.mrb[0].mxu0
  %v681 = vadd.f32 %v602, %v680
  %v682 = vpop.f32.mrb[0].mxu0
  %683 = vdwg.mxu0
  %v684 = vld [vmem:[%s7] sm:$0x1]
  %v685 = vld [vmem:[%s8] sm:$0x1]
  %v686 = vsel %vm77, %v676, 0.0
  %687 = vadd.xlane.f32.xlu0 %v686
  %v688 = vpop.xlane.xlu0 %687
  %v689 = vsel %vm77, %v681, 0.0
  %690 = vadd.xlane.f32.xlu0 %v689
  %v691 = vpop.xlane.xlu0 %690
  %v692 = vrcp.pop 32.0
  %v693 = vmul.f32 %v688, %v692
  %v694 = vmul.f32 %v691, %v692
  %v695 = vsub.f32 %v676, %v693
  %v696 = vsub.f32 %v681, %v694
  %v697 = vmul.f32 %v695, %v695
  %v698 = vmul.f32 %v696, %v696
  %v699 = vsel %vm77, %v697, 0.0
  %700 = vadd.xlane.f32.xlu0 %v699
  %v701 = vpop.xlane.xlu0 %700
  %v702 = vsel %vm77, %v698, 0.0
  %703 = vadd.xlane.f32.xlu0 %v702
  %v704 = vpop.xlane.xlu0 %703
  %v705 = vmul.f32 %v701, %v692
  %v706 = vmul.f32 %v704, %v692
  %v707 = vadd.f32 %v705, 1e-06
  %v708 = vadd.f32 %v706, 1e-06
  %v709 = vrsqrt.pop %v707
  %v710 = vrsqrt.pop %v708
  %v711 = vmul.f32 %v695, %v709
  %v712 = vmul.f32 %v696, %v710
  %v714 = vlaneseq
  %v715 = vshrl.u32 %v714, 7
  %v716 = vsub.s32 0, %v715
  %v717 = vrot.slane %v684, %v716
  %v719 = vmul.f32 %v711, %v717
  %v720 = vmul.f32 %v712, %v717
  %v722 = vlaneseq
  %v723 = vshrl.u32 %v722, 7
  %v724 = vsub.s32 0, %v723
  %v725 = vrot.slane %v685, %v724
  %v727 = vadd.f32 %v719, %v725
  %v728 = vadd.f32 %v720, %v725
  %v729 = vld [vmem:[%s9] sm:$0xff]
  %v730 = vld [vmem:[%s9 + $0x8] sm:$0xff]
  %v731 = vld [vmem:[%s9 + $0x10] sm:$0xff]
  %v732 = vld [vmem:[%s9 + $0x18] sm:$0xff]
  %v734 = vsel %vm77, %v727, 0
  %v737 = vsel %vm77, %v728, 0
  %739 = vmatprep.subr.mxu0 0.0
  %740 = vmatpush1.msra.mxu0 %v729
  %741 = vmatprep.subr.mxu0 0.0
  %742 = vmatpush1.msra.mxu0 %v730
  %743 = vmatprep.subr.mxu0 0.0
  %744 = vmatpush1.msra.mxu0 %v731
  %745 = vmatprep.subr.mxu0 0.0
  %746 = vmatpush1.msra.mxu0 %v732
  %747 = vmatprep.subr.mxu0 0.0
  %748 = vmatpush1.msra.mxu0 0.0
  %749 = vmatprep.subr.mxu0 0.0
  %750 = vmatpush1.msra.mxu0 0.0
  %751 = vmatprep.subr.mxu0 0.0
  %752 = vmatpush1.msra.mxu0 0.0
  %753 = vmatprep.subr.mxu0 0.0
  %754 = vmatpush1.msra.mxu0 0.0
  %755 = vmatprep.subr.mxu0 0.0
  %756 = vmatpush1.msra.mxu0 0.0
  %757 = vmatprep.subr.mxu0 0.0
  %758 = vmatpush1.msra.mxu0 0.0
  %759 = vmatprep.subr.mxu0 0.0
  %760 = vmatpush1.msra.mxu0 0.0
  %761 = vmatprep.subr.mxu0 0.0
  %762 = vmatpush1.msra.mxu0 0.0
  %763 = vmatprep.subr.mxu0 0.0
  %764 = vmatpush1.msra.mxu0 0.0
  %765 = vmatprep.subr.mxu0 0.0
  %766 = vmatpush1.msra.mxu0 0.0
  %767 = vmatprep.subr.mxu0 0.0
  %768 = vmatpush1.msra.mxu0 0.0
  %769 = vmatprep.subr.mxu0 0.0
  %770 = vmatpush1.msra.mxu0 0.0
  %771 = vmatprep.subr.mxu0 0.0
  %772 = vmatpush1.msra.mxu0 0.0
  %773 = vmatprep.subr.mxu0 0.0
  %774 = vmatpush1.msra.mxu0 0.0
  %775 = vmatprep.subr.mxu0 0.0
  %776 = vmatpush1.msra.mxu0 0.0
  %777 = vmatprep.subr.mxu0 0.0
  %778 = vmatpush1.msra.mxu0 0.0
  %779 = vmatprep.subr.mxu0 0.0
  %780 = vmatpush1.msra.mxu0 0.0
  %781 = vmatprep.subr.mxu0 0.0
  %782 = vmatpush1.msra.mxu0 0.0
  %783 = vmatprep.subr.mxu0 0.0
  %784 = vmatpush1.msra.mxu0 0.0
  %785 = vmatprep.subr.mxu0 0.0
  %786 = vmatpush1.msra.mxu0 0.0
  %787 = vmatprep.subr.mxu0 0.0
  %788 = vmatpush1.msra.mxu0 0.0
  %789 = vmatprep.subr.mxu0 0.0
  %790 = vmatpush1.msra.mxu0 0.0
  %791 = vmatprep.subr.mxu0 0.0
  %792 = vmatpush1.msra.mxu0 0.0
  %793 = vmatprep.subr.mxu0 0.0
  %794 = vmatpush1.msra.mxu0 0.0
  %795 = vmatprep.subr.mxu0 0.0
  %796 = vmatpush1.msra.mxu0 0.0
  %797 = vmatprep.subr.mxu0 0.0
  %798 = vmatpush1.msra.mxu0 0.0
  %799 = vmatprep.subr.mxu0 0.0
  %800 = vmatpush1.msra.mxu0 0.0
  %801 = vmatprep.subr.mxu0 0.0
  %802 = vmatpush1.msra.mxu0 0.0
  %803 = vmatprep.mubr.f32.mxu0 0.0
  %804 = vmatmul.mubr.f32.gmra.mrb[0].mxu0 %v734
  %v805 = vpop.f32.mrb[0].mxu0
  %v806 = vadd.f32 0.0, %v805
  %v807 = vpop.f32.mrb[0].mxu0
  %808 = vmatprep.mubr.f32.mxu0 0.0
  %809 = vmatmul.mubr.f32.gmra.mrb[0].mxu0 %v737
  %v810 = vpop.f32.mrb[0].mxu0
  %v811 = vadd.f32 0.0, %v810
  %v812 = vpop.f32.mrb[0].mxu0
  %813 = vdwg.mxu0
  %v814 = vld [vmem:[%s2] sm:$0xff]
  %v815 = vld [vmem:[%s10] sm:$0xff]
  %v816 = vld [vmem:[%s10 + $0x8] sm:$0xff]
  %v817 = vld [vmem:[%s10 + $0x10] sm:$0xff]
  %v818 = vld [vmem:[%s10 + $0x18] sm:$0xff]
  %v820 = vsel %vm77, %v814, 0
  %822 = vmatprep.subr.mxu0 0.0
  %823 = vmatpush1.msra.mxu0 %v815
  %824 = vmatprep.subr.mxu0 0.0
  %825 = vmatpush1.msra.mxu0 %v816
  %826 = vmatprep.subr.mxu0 0.0
  %827 = vmatpush1.msra.mxu0 %v817
  %828 = vmatprep.subr.mxu0 0.0
  %829 = vmatpush1.msra.mxu0 %v818
  %830 = vmatprep.subr.mxu0 0.0
  %831 = vmatpush1.msra.mxu0 0.0
  %832 = vmatprep.subr.mxu0 0.0
  %833 = vmatpush1.msra.mxu0 0.0
  %834 = vmatprep.subr.mxu0 0.0
  %835 = vmatpush1.msra.mxu0 0.0
  %836 = vmatprep.subr.mxu0 0.0
  %837 = vmatpush1.msra.mxu0 0.0
  %838 = vmatprep.subr.mxu0 0.0
  %839 = vmatpush1.msra.mxu0 0.0
  %840 = vmatprep.subr.mxu0 0.0
  %841 = vmatpush1.msra.mxu0 0.0
  %842 = vmatprep.subr.mxu0 0.0
  %843 = vmatpush1.msra.mxu0 0.0
  %844 = vmatprep.subr.mxu0 0.0
  %845 = vmatpush1.msra.mxu0 0.0
  %846 = vmatprep.subr.mxu0 0.0
  %847 = vmatpush1.msra.mxu0 0.0
  %848 = vmatprep.subr.mxu0 0.0
  %849 = vmatpush1.msra.mxu0 0.0
  %850 = vmatprep.subr.mxu0 0.0
  %851 = vmatpush1.msra.mxu0 0.0
  %852 = vmatprep.subr.mxu0 0.0
  %853 = vmatpush1.msra.mxu0 0.0
  %854 = vmatprep.subr.mxu0 0.0
  %855 = vmatpush1.msra.mxu0 0.0
  %856 = vmatprep.subr.mxu0 0.0
  %857 = vmatpush1.msra.mxu0 0.0
  %858 = vmatprep.subr.mxu0 0.0
  %859 = vmatpush1.msra.mxu0 0.0
  %860 = vmatprep.subr.mxu0 0.0
  %861 = vmatpush1.msra.mxu0 0.0
  %862 = vmatprep.subr.mxu0 0.0
  %863 = vmatpush1.msra.mxu0 0.0
  %864 = vmatprep.subr.mxu0 0.0
  %865 = vmatpush1.msra.mxu0 0.0
  %866 = vmatprep.subr.mxu0 0.0
  %867 = vmatpush1.msra.mxu0 0.0
  %868 = vmatprep.subr.mxu0 0.0
  %869 = vmatpush1.msra.mxu0 0.0
  %870 = vmatprep.subr.mxu0 0.0
  %871 = vmatpush1.msra.mxu0 0.0
  %872 = vmatprep.subr.mxu0 0.0
  %873 = vmatpush1.msra.mxu0 0.0
  %874 = vmatprep.subr.mxu0 0.0
  %875 = vmatpush1.msra.mxu0 0.0
  %876 = vmatprep.subr.mxu0 0.0
  %877 = vmatpush1.msra.mxu0 0.0
  %878 = vmatprep.subr.mxu0 0.0
  %879 = vmatpush1.msra.mxu0 0.0
  %880 = vmatprep.subr.mxu0 0.0
  %881 = vmatpush1.msra.mxu0 0.0
  %882 = vmatprep.subr.mxu0 0.0
  %883 = vmatpush1.msra.mxu0 0.0
  %884 = vmatprep.subr.mxu0 0.0
  %885 = vmatpush1.msra.mxu0 0.0
  %886 = vmatprep.mubr.f32.mxu0 0.0
  %887 = vmatmul.mubr.f32.gmra.mrb[0].mxu0 %v820
  %v888 = vpop.f32.mrb[0].mxu0
  %v889 = vadd.f32 0.0, %v888
  %v890 = vpop.f32.mrb[0].mxu0
  %891 = vdwg.mxu0
  %v892 = vld [vmem:[%s4] sm:$0xff]
  %v893 = vld [vmem:[%s4 + $0x8] sm:$0xff]
  %v895 = vsel %vm77, %v806, 0
  %v898 = vsel %vm77, %v811, 0
  %v901 = vsel %vm77, %v889, 0
  %903 = vmatprep.subr.mxu0 0.0
  %904 = vmatpush1.xpose.msra.mxu0 %v901
  %905 = vmatprep.subr.mxu0 0.0
  %906 = vmatpush1.xpose.msra.mxu0 0.0
  %907 = vmatprep.subr.mxu0 0.0
  %908 = vmatpush1.xpose.msra.mxu0 0.0
  %909 = vmatprep.subr.mxu0 0.0
  %910 = vmatpush1.xpose.msra.mxu0 0.0
  %911 = vmatprep.subr.mxu0 0.0
  %912 = vmatpush1.xpose.msra.mxu0 0.0
  %913 = vmatprep.subr.mxu0 0.0
  %914 = vmatpush1.xpose.msra.mxu0 0.0
  %915 = vmatprep.subr.mxu0 0.0
  %916 = vmatpush1.xpose.msra.mxu0 0.0
  %917 = vmatprep.subr.mxu0 0.0
  %918 = vmatpush1.xpose.msra.mxu0 0.0
  %919 = vmatprep.subr.mxu0 0.0
  %920 = vmatpush1.xpose.msra.mxu0 0.0
  %921 = vmatprep.subr.mxu0 0.0
  %922 = vmatpush1.xpose.msra.mxu0 0.0
  %923 = vmatprep.subr.mxu0 0.0
  %924 = vmatpush1.xpose.msra.mxu0 0.0
  %925 = vmatprep.subr.mxu0 0.0
  %926 = vmatpush1.xpose.msra.mxu0 0.0
  %927 = vmatprep.subr.mxu0 0.0
  %928 = vmatpush1.xpose.msra.mxu0 0.0
  %929 = vmatprep.subr.mxu0 0.0
  %930 = vmatpush1.xpose.msra.mxu0 0.0
  %931 = vmatprep.subr.mxu0 0.0
  %932 = vmatpush1.xpose.msra.mxu0 0.0
  %933 = vmatprep.subr.mxu0 0.0
  %934 = vmatpush1.xpose.msra.mxu0 0.0
  %935 = vmatprep.subr.mxu0 0.0
  %936 = vmatpush1.xpose.msra.mxu0 0.0
  %937 = vmatprep.subr.mxu0 0.0
  %938 = vmatpush1.xpose.msra.mxu0 0.0
  %939 = vmatprep.subr.mxu0 0.0
  %940 = vmatpush1.xpose.msra.mxu0 0.0
  %941 = vmatprep.subr.mxu0 0.0
  %942 = vmatpush1.xpose.msra.mxu0 0.0
  %943 = vmatprep.subr.mxu0 0.0
  %944 = vmatpush1.xpose.msra.mxu0 0.0
  %945 = vmatprep.subr.mxu0 0.0
  %946 = vmatpush1.xpose.msra.mxu0 0.0
  %947 = vmatprep.subr.mxu0 0.0
  %948 = vmatpush1.xpose.msra.mxu0 0.0
  %949 = vmatprep.subr.mxu0 0.0
  %950 = vmatpush1.xpose.msra.mxu0 0.0
  %951 = vmatprep.subr.mxu0 0.0
  %952 = vmatpush1.xpose.msra.mxu0 0.0
  %953 = vmatprep.subr.mxu0 0.0
  %954 = vmatpush1.xpose.msra.mxu0 0.0
  %955 = vmatprep.subr.mxu0 0.0
  %956 = vmatpush1.xpose.msra.mxu0 0.0
  %957 = vmatprep.subr.mxu0 0.0
  %958 = vmatpush1.xpose.msra.mxu0 0.0
  %959 = vmatprep.subr.mxu0 0.0
  %960 = vmatpush1.xpose.msra.mxu0 0.0
  %961 = vmatprep.subr.mxu0 0.0
  %962 = vmatpush1.xpose.msra.mxu0 0.0
  %963 = vmatprep.subr.mxu0 0.0
  %964 = vmatpush1.xpose.msra.mxu0 0.0
  %965 = vmatprep.subr.mxu0 0.0
  %966 = vmatpush1.xpose.msra.mxu0 0.0
  %967 = vmatprep.mubr.f32.mxu0 0.0
  %968 = vmatmul.mubr.f32.gmra.mrb[0].mxu0 %v895
  %v969 = vpop.f32.mrb[0].mxu0
  %v970 = vadd.f32 0.0, %v969
  %v971 = vpop.f32.mrb[0].mxu0
  %972 = vmatprep.mubr.f32.mxu0 0.0
  %973 = vmatmul.mubr.f32.gmra.mrb[0].mxu0 %v898
  %v974 = vpop.f32.mrb[0].mxu0
  %v975 = vadd.f32 0.0, %v974
  %v976 = vpop.f32.mrb[0].mxu0
  %977 = vdwg.mxu0
  %vm978 = vcmp.gt.f32.partialorder %v892, 0.5
  %vm979 = vcmp.gt.f32.partialorder %v893, 0.5
  %v980 = vsel %vm978, %v970, -1e+09
  %v981 = vsel %vm979, %v975, -1e+09
  %vm982 = vcmask 64512
  %v983 = vsel %vm982, %v980, -inf
  %984 = vmax.xlane.f32.xlu0 %v983
  %v985 = vpop.xlane.xlu0 %984
  %v986 = vsel %vm982, %v981, -inf
  %987 = vmax.xlane.f32.xlu0 %v986
  %v988 = vpop.xlane.xlu0 %987
  %v989 = vsub.f32 %v980, %v985
  %v990 = vsub.f32 %v981, %v988
  %v991 = vmul.f32 %v989, 1.442695
  %v992 = vpow.pop %v991
  %v993 = vmul.f32 %v990, 1.442695
  %v994 = vpow.pop %v993
  %v995 = vsel %vm982, %v992, 0.0
  %996 = vadd.xlane.f32.xlu0 %v995
  %v997 = vpop.xlane.xlu0 %996
  %v998 = vsel %vm982, %v994, 0.0
  %999 = vadd.xlane.f32.xlu0 %v998
  %v1000 = vpop.xlane.xlu0 %999
  %v1001 = vrcp.pop %v997
  %v1002 = vmul.f32 %v992, %v1001
  %v1003 = vrcp.pop %v1000
  %v1004 = vmul.f32 %v994, %v1003
  %1005 = vrot.lane.b32.xlu0 %v889, 64
  %v1006 = vpop.permute.xlu0 %1005
  %v1009 = vsel %vm982, %v1002, 0
  %v1012 = vsel %vm982, %v1004, 0
  %1014 = vmatprep.subr.mxu0 0.0
  %1015 = vmatpush1.msra.mxu0 %v1006
  %1016 = vmatprep.subr.mxu0 0.0
  %1017 = vmatpush1.msra.mxu0 0.0
  %1018 = vmatprep.subr.mxu0 0.0
  %1019 = vmatpush1.msra.mxu0 0.0
  %1020 = vmatprep.subr.mxu0 0.0
  %1021 = vmatpush1.msra.mxu0 0.0
  %1022 = vmatprep.subr.mxu0 0.0
  %1023 = vmatpush1.msra.mxu0 0.0
  %1024 = vmatprep.subr.mxu0 0.0
  %1025 = vmatpush1.msra.mxu0 0.0
  %1026 = vmatprep.subr.mxu0 0.0
  %1027 = vmatpush1.msra.mxu0 0.0
  %1028 = vmatprep.subr.mxu0 0.0
  %1029 = vmatpush1.msra.mxu0 0.0
  %1030 = vmatprep.subr.mxu0 0.0
  %1031 = vmatpush1.msra.mxu0 0.0
  %1032 = vmatprep.subr.mxu0 0.0
  %1033 = vmatpush1.msra.mxu0 0.0
  %1034 = vmatprep.subr.mxu0 0.0
  %1035 = vmatpush1.msra.mxu0 0.0
  %1036 = vmatprep.subr.mxu0 0.0
  %1037 = vmatpush1.msra.mxu0 0.0
  %1038 = vmatprep.subr.mxu0 0.0
  %1039 = vmatpush1.msra.mxu0 0.0
  %1040 = vmatprep.subr.mxu0 0.0
  %1041 = vmatpush1.msra.mxu0 0.0
  %1042 = vmatprep.subr.mxu0 0.0
  %1043 = vmatpush1.msra.mxu0 0.0
  %1044 = vmatprep.subr.mxu0 0.0
  %1045 = vmatpush1.msra.mxu0 0.0
  %1046 = vmatprep.subr.mxu0 0.0
  %1047 = vmatpush1.msra.mxu0 0.0
  %1048 = vmatprep.subr.mxu0 0.0
  %1049 = vmatpush1.msra.mxu0 0.0
  %1050 = vmatprep.subr.mxu0 0.0
  %1051 = vmatpush1.msra.mxu0 0.0
  %1052 = vmatprep.subr.mxu0 0.0
  %1053 = vmatpush1.msra.mxu0 0.0
  %1054 = vmatprep.subr.mxu0 0.0
  %1055 = vmatpush1.msra.mxu0 0.0
  %1056 = vmatprep.subr.mxu0 0.0
  %1057 = vmatpush1.msra.mxu0 0.0
  %1058 = vmatprep.subr.mxu0 0.0
  %1059 = vmatpush1.msra.mxu0 0.0
  %1060 = vmatprep.subr.mxu0 0.0
  %1061 = vmatpush1.msra.mxu0 0.0
  %1062 = vmatprep.subr.mxu0 0.0
  %1063 = vmatpush1.msra.mxu0 0.0
  %1064 = vmatprep.subr.mxu0 0.0
  %1065 = vmatpush1.msra.mxu0 0.0
  %1066 = vmatprep.subr.mxu0 0.0
  %1067 = vmatpush1.msra.mxu0 0.0
  %1068 = vmatprep.subr.mxu0 0.0
  %1069 = vmatpush1.msra.mxu0 0.0
  %1070 = vmatprep.subr.mxu0 0.0
  %1071 = vmatpush1.msra.mxu0 0.0
  %1072 = vmatprep.subr.mxu0 0.0
  %1073 = vmatpush1.msra.mxu0 0.0
  %1074 = vmatprep.subr.mxu0 0.0
  %1075 = vmatpush1.msra.mxu0 0.0
  %1076 = vmatprep.subr.mxu0 0.0
  %1077 = vmatpush1.msra.mxu0 0.0
  %1078 = vmatprep.mubr.f32.mxu0 0.0
  %1079 = vmatmul.mubr.f32.gmra.mrb[0].mxu0 %v1009
  %v1080 = vpop.f32.mrb[0].mxu0
  %v1081 = vadd.f32 0.0, %v1080
  %v1082 = vpop.f32.mrb[0].mxu0
  %1083 = vmatprep.mubr.f32.mxu0 0.0
  %1084 = vmatmul.mubr.f32.gmra.mrb[0].mxu0 %v1012
  %v1085 = vpop.f32.mrb[0].mxu0
  %v1086 = vadd.f32 0.0, %v1085
  %v1087 = vpop.f32.mrb[0].mxu0
  %1088 = vdwg.mxu0
  %1089 = vrot.lane.b32.xlu0 %v806, 96
  %v1090 = vpop.permute.xlu0 %1089
  %1091 = vrot.lane.b32.xlu0 %v811, 96
  %v1092 = vpop.permute.xlu0 %1091
  %1093 = vrot.lane.b32.xlu0 %v889, 96
  %v1094 = vpop.permute.xlu0 %1093
  %v1095 = vsel %vm77, %v1090, 0
  %v1097 = vsel %vm77, %v1092, 0
  %v1099 = vsel %vm77, %v1094, 0
  %1101 = vmatprep.subr.mxu0 0.0
  %1102 = vmatpush1.xpose.msra.mxu0 %v1099
  %1103 = vmatprep.subr.mxu0 0.0
  %1104 = vmatpush1.xpose.msra.mxu0 0.0
  %1105 = vmatprep.subr.mxu0 0.0
  %1106 = vmatpush1.xpose.msra.mxu0 0.0
  %1107 = vmatprep.subr.mxu0 0.0
  %1108 = vmatpush1.xpose.msra.mxu0 0.0
  %1109 = vmatprep.subr.mxu0 0.0
  %1110 = vmatpush1.xpose.msra.mxu0 0.0
  %1111 = vmatprep.subr.mxu0 0.0
  %1112 = vmatpush1.xpose.msra.mxu0 0.0
  %1113 = vmatprep.subr.mxu0 0.0
  %1114 = vmatpush1.xpose.msra.mxu0 0.0
  %1115 = vmatprep.subr.mxu0 0.0
  %1116 = vmatpush1.xpose.msra.mxu0 0.0
  %1117 = vmatprep.subr.mxu0 0.0
  %1118 = vmatpush1.xpose.msra.mxu0 0.0
  %1119 = vmatprep.subr.mxu0 0.0
  %1120 = vmatpush1.xpose.msra.mxu0 0.0
  %1121 = vmatprep.subr.mxu0 0.0
  %1122 = vmatpush1.xpose.msra.mxu0 0.0
  %1123 = vmatprep.subr.mxu0 0.0
  %1124 = vmatpush1.xpose.msra.mxu0 0.0
  %1125 = vmatprep.subr.mxu0 0.0
  %1126 = vmatpush1.xpose.msra.mxu0 0.0
  %1127 = vmatprep.subr.mxu0 0.0
  %1128 = vmatpush1.xpose.msra.mxu0 0.0
  %1129 = vmatprep.subr.mxu0 0.0
  %1130 = vmatpush1.xpose.msra.mxu0 0.0
  %1131 = vmatprep.subr.mxu0 0.0
  %1132 = vmatpush1.xpose.msra.mxu0 0.0
  %1133 = vmatprep.subr.mxu0 0.0
  %1134 = vmatpush1.xpose.msra.mxu0 0.0
  %1135 = vmatprep.subr.mxu0 0.0
  %1136 = vmatpush1.xpose.msra.mxu0 0.0
  %1137 = vmatprep.subr.mxu0 0.0
  %1138 = vmatpush1.xpose.msra.mxu0 0.0
  %1139 = vmatprep.subr.mxu0 0.0
  %1140 = vmatpush1.xpose.msra.mxu0 0.0
  %1141 = vmatprep.subr.mxu0 0.0
  %1142 = vmatpush1.xpose.msra.mxu0 0.0
  %1143 = vmatprep.subr.mxu0 0.0
  %1144 = vmatpush1.xpose.msra.mxu0 0.0
  %1145 = vmatprep.subr.mxu0 0.0
  %1146 = vmatpush1.xpose.msra.mxu0 0.0
  %1147 = vmatprep.subr.mxu0 0.0
  %1148 = vmatpush1.xpose.msra.mxu0 0.0
  %1149 = vmatprep.subr.mxu0 0.0
  %1150 = vmatpush1.xpose.msra.mxu0 0.0
  %1151 = vmatprep.subr.mxu0 0.0
  %1152 = vmatpush1.xpose.msra.mxu0 0.0
  %1153 = vmatprep.subr.mxu0 0.0
  %1154 = vmatpush1.xpose.msra.mxu0 0.0
  %1155 = vmatprep.subr.mxu0 0.0
  %1156 = vmatpush1.xpose.msra.mxu0 0.0
  %1157 = vmatprep.subr.mxu0 0.0
  %1158 = vmatpush1.xpose.msra.mxu0 0.0
  %1159 = vmatprep.subr.mxu0 0.0
  %1160 = vmatpush1.xpose.msra.mxu0 0.0
  %1161 = vmatprep.subr.mxu0 0.0
  %1162 = vmatpush1.xpose.msra.mxu0 0.0
  %1163 = vmatprep.subr.mxu0 0.0
  %1164 = vmatpush1.xpose.msra.mxu0 0.0
  %1165 = vmatprep.mubr.f32.mxu0 0.0
  %1166 = vmatmul.mubr.f32.gmra.mrb[0].mxu0 %v1095
  %v1167 = vpop.f32.mrb[0].mxu0
  %v1168 = vadd.f32 0.0, %v1167
  %v1169 = vpop.f32.mrb[0].mxu0
  %1170 = vmatprep.mubr.f32.mxu0 0.0
  %1171 = vmatmul.mubr.f32.gmra.mrb[0].mxu0 %v1097
  %v1172 = vpop.f32.mrb[0].mxu0
  %v1173 = vadd.f32 0.0, %v1172
  %v1174 = vpop.f32.mrb[0].mxu0
  %1175 = vdwg.mxu0
  %v1176 = vsel %vm978, %v1168, -1e+09
  %v1177 = vsel %vm979, %v1173, -1e+09
  %v1178 = vsel %vm982, %v1176, -inf
  %1179 = vmax.xlane.f32.xlu0 %v1178
  %v1180 = vpop.xlane.xlu0 %1179
  %v1181 = vsel %vm982, %v1177, -inf
  %1182 = vmax.xlane.f32.xlu0 %v1181
  %v1183 = vpop.xlane.xlu0 %1182
  %v1184 = vsub.f32 %v1176, %v1180
  %v1185 = vsub.f32 %v1177, %v1183
  %v1186 = vmul.f32 %v1184, 1.442695
  %v1187 = vpow.pop %v1186
  %v1188 = vmul.f32 %v1185, 1.442695
  %v1189 = vpow.pop %v1188
  %v1190 = vsel %vm982, %v1187, 0.0
  %1191 = vadd.xlane.f32.xlu0 %v1190
  %v1192 = vpop.xlane.xlu0 %1191
  %v1193 = vsel %vm982, %v1189, 0.0
  %1194 = vadd.xlane.f32.xlu0 %v1193
  %v1195 = vpop.xlane.xlu0 %1194
  %v1196 = vrcp.pop %v1192
  %v1197 = vmul.f32 %v1187, %v1196
  %v1198 = vrcp.pop %v1195
  %v1199 = vmul.f32 %v1189, %v1198
  %1200 = vrot.lane.b32.xlu0 %v889, 32
  %v1201 = vpop.permute.xlu0 %1200
  %v1204 = vsel %vm982, %v1197, 0
  %v1207 = vsel %vm982, %v1199, 0
  %1209 = vmatprep.subr.mxu0 0.0
  %1210 = vmatpush1.msra.mxu0 %v1201
  %1211 = vmatprep.subr.mxu0 0.0
  %1212 = vmatpush1.msra.mxu0 0.0
  %1213 = vmatprep.subr.mxu0 0.0
  %1214 = vmatpush1.msra.mxu0 0.0
  %1215 = vmatprep.subr.mxu0 0.0
  %1216 = vmatpush1.msra.mxu0 0.0
  %1217 = vmatprep.subr.mxu0 0.0
  %1218 = vmatpush1.msra.mxu0 0.0
  %1219 = vmatprep.subr.mxu0 0.0
  %1220 = vmatpush1.msra.mxu0 0.0
  %1221 = vmatprep.subr.mxu0 0.0
  %1222 = vmatpush1.msra.mxu0 0.0
  %1223 = vmatprep.subr.mxu0 0.0
  %1224 = vmatpush1.msra.mxu0 0.0
  %1225 = vmatprep.subr.mxu0 0.0
  %1226 = vmatpush1.msra.mxu0 0.0
  %1227 = vmatprep.subr.mxu0 0.0
  %1228 = vmatpush1.msra.mxu0 0.0
  %1229 = vmatprep.subr.mxu0 0.0
  %1230 = vmatpush1.msra.mxu0 0.0
  %1231 = vmatprep.subr.mxu0 0.0
  %1232 = vmatpush1.msra.mxu0 0.0
  %1233 = vmatprep.subr.mxu0 0.0
  %1234 = vmatpush1.msra.mxu0 0.0
  %1235 = vmatprep.subr.mxu0 0.0
  %1236 = vmatpush1.msra.mxu0 0.0
  %1237 = vmatprep.subr.mxu0 0.0
  %1238 = vmatpush1.msra.mxu0 0.0
  %1239 = vmatprep.subr.mxu0 0.0
  %1240 = vmatpush1.msra.mxu0 0.0
  %1241 = vmatprep.subr.mxu0 0.0
  %1242 = vmatpush1.msra.mxu0 0.0
  %1243 = vmatprep.subr.mxu0 0.0
  %1244 = vmatpush1.msra.mxu0 0.0
  %1245 = vmatprep.subr.mxu0 0.0
  %1246 = vmatpush1.msra.mxu0 0.0
  %1247 = vmatprep.subr.mxu0 0.0
  %1248 = vmatpush1.msra.mxu0 0.0
  %1249 = vmatprep.subr.mxu0 0.0
  %1250 = vmatpush1.msra.mxu0 0.0
  %1251 = vmatprep.subr.mxu0 0.0
  %1252 = vmatpush1.msra.mxu0 0.0
  %1253 = vmatprep.subr.mxu0 0.0
  %1254 = vmatpush1.msra.mxu0 0.0
  %1255 = vmatprep.subr.mxu0 0.0
  %1256 = vmatpush1.msra.mxu0 0.0
  %1257 = vmatprep.subr.mxu0 0.0
  %1258 = vmatpush1.msra.mxu0 0.0
  %1259 = vmatprep.subr.mxu0 0.0
  %1260 = vmatpush1.msra.mxu0 0.0
  %1261 = vmatprep.subr.mxu0 0.0
  %1262 = vmatpush1.msra.mxu0 0.0
  %1263 = vmatprep.subr.mxu0 0.0
  %1264 = vmatpush1.msra.mxu0 0.0
  %1265 = vmatprep.subr.mxu0 0.0
  %1266 = vmatpush1.msra.mxu0 0.0
  %1267 = vmatprep.subr.mxu0 0.0
  %1268 = vmatpush1.msra.mxu0 0.0
  %1269 = vmatprep.subr.mxu0 0.0
  %1270 = vmatpush1.msra.mxu0 0.0
  %1271 = vmatprep.subr.mxu0 0.0
  %1272 = vmatpush1.msra.mxu0 0.0
  %1273 = vmatprep.mubr.f32.mxu0 0.0
  %1274 = vmatmul.mubr.f32.gmra.mrb[0].mxu0 %v1204
  %v1275 = vpop.f32.mrb[0].mxu0
  %v1276 = vadd.f32 0.0, %v1275
  %v1277 = vpop.f32.mrb[0].mxu0
  %1278 = vmatprep.mubr.f32.mxu0 0.0
  %1279 = vmatmul.mubr.f32.gmra.mrb[0].mxu0 %v1207
  %v1280 = vpop.f32.mrb[0].mxu0
  %v1281 = vadd.f32 0.0, %v1280
  %v1282 = vpop.f32.mrb[0].mxu0
  %1283 = vdwg.mxu0
  %1286 = vrot.lane.b32.xlu0 %v1276, 32
  %v1287 = vpop.permute.xlu0 %1286
  %1288 = vrot.lane.b32.xlu0 %v1281, 32
  %v1289 = vpop.permute.xlu0 %1288
  %v1292 = vsel %vm77, %v1081, %v1287
  %v1293 = vsel %vm77, %v1086, %v1289
  %v1294 = vld [vmem:[%s11] sm:$0xff]
  %v1295 = vld [vmem:[%s11 + $0x8] sm:$0xff]
  %v1296 = vld [vmem:[%s11 + $0x10] sm:$0xff]
  %v1297 = vld [vmem:[%s11 + $0x18] sm:$0xff]
  %v1298 = vld [vmem:[%s11 + $0x20] sm:$0xff]
  %v1299 = vld [vmem:[%s11 + $0x28] sm:$0xff]
  %v1300 = vld [vmem:[%s11 + $0x30] sm:$0xff]
  %v1301 = vld [vmem:[%s11 + $0x38] sm:$0xff]
  %v1303 = vsel %vm96, %v1292, 0
  %v1306 = vsel %vm96, %v1293, 0
  %1308 = vmatprep.subr.mxu0 0.0
  %1309 = vmatpush1.msra.mxu0 %v1294
  %1310 = vmatprep.subr.mxu0 0.0
  %1311 = vmatpush1.msra.mxu0 %v1295
  %1312 = vmatprep.subr.mxu0 0.0
  %1313 = vmatpush1.msra.mxu0 %v1296
  %1314 = vmatprep.subr.mxu0 0.0
  %1315 = vmatpush1.msra.mxu0 %v1297
  %1316 = vmatprep.subr.mxu0 0.0
  %1317 = vmatpush1.msra.mxu0 %v1298
  %1318 = vmatprep.subr.mxu0 0.0
  %1319 = vmatpush1.msra.mxu0 %v1299
  %1320 = vmatprep.subr.mxu0 0.0
  %1321 = vmatpush1.msra.mxu0 %v1300
  %1322 = vmatprep.subr.mxu0 0.0
  %1323 = vmatpush1.msra.mxu0 %v1301
  %1324 = vmatprep.subr.mxu0 0.0
  %1325 = vmatpush1.msra.mxu0 0.0
  %1326 = vmatprep.subr.mxu0 0.0
  %1327 = vmatpush1.msra.mxu0 0.0
  %1328 = vmatprep.subr.mxu0 0.0
  %1329 = vmatpush1.msra.mxu0 0.0
  %1330 = vmatprep.subr.mxu0 0.0
  %1331 = vmatpush1.msra.mxu0 0.0
  %1332 = vmatprep.subr.mxu0 0.0
  %1333 = vmatpush1.msra.mxu0 0.0
  %1334 = vmatprep.subr.mxu0 0.0
  %1335 = vmatpush1.msra.mxu0 0.0
  %1336 = vmatprep.subr.mxu0 0.0
  %1337 = vmatpush1.msra.mxu0 0.0
  %1338 = vmatprep.subr.mxu0 0.0
  %1339 = vmatpush1.msra.mxu0 0.0
  %1340 = vmatprep.subr.mxu0 0.0
  %1341 = vmatpush1.msra.mxu0 0.0
  %1342 = vmatprep.subr.mxu0 0.0
  %1343 = vmatpush1.msra.mxu0 0.0
  %1344 = vmatprep.subr.mxu0 0.0
  %1345 = vmatpush1.msra.mxu0 0.0
  %1346 = vmatprep.subr.mxu0 0.0
  %1347 = vmatpush1.msra.mxu0 0.0
  %1348 = vmatprep.subr.mxu0 0.0
  %1349 = vmatpush1.msra.mxu0 0.0
  %1350 = vmatprep.subr.mxu0 0.0
  %1351 = vmatpush1.msra.mxu0 0.0
  %1352 = vmatprep.subr.mxu0 0.0
  %1353 = vmatpush1.msra.mxu0 0.0
  %1354 = vmatprep.subr.mxu0 0.0
  %1355 = vmatpush1.msra.mxu0 0.0
  %1356 = vmatprep.subr.mxu0 0.0
  %1357 = vmatpush1.msra.mxu0 0.0
  %1358 = vmatprep.subr.mxu0 0.0
  %1359 = vmatpush1.msra.mxu0 0.0
  %1360 = vmatprep.subr.mxu0 0.0
  %1361 = vmatpush1.msra.mxu0 0.0
  %1362 = vmatprep.subr.mxu0 0.0
  %1363 = vmatpush1.msra.mxu0 0.0
  %1364 = vmatprep.subr.mxu0 0.0
  %1365 = vmatpush1.msra.mxu0 0.0
  %1366 = vmatprep.subr.mxu0 0.0
  %1367 = vmatpush1.msra.mxu0 0.0
  %1368 = vmatprep.subr.mxu0 0.0
  %1369 = vmatpush1.msra.mxu0 0.0
  %1370 = vmatprep.subr.mxu0 0.0
  %1371 = vmatpush1.msra.mxu0 0.0
  %1372 = vmatprep.mubr.f32.mxu0 0.0
  %1373 = vmatmul.mubr.f32.gmra.mrb[0].mxu0 %v1303
  %v1374 = vpop.f32.mrb[0].mxu0
  %v1375 = vadd.f32 %v727, %v1374
  %v1376 = vpop.f32.mrb[0].mxu0
  %1377 = vmatprep.mubr.f32.mxu0 0.0
  %1378 = vmatmul.mubr.f32.gmra.mrb[0].mxu0 %v1306
  %v1379 = vpop.f32.mrb[0].mxu0
  %v1380 = vadd.f32 %v728, %v1379
  %v1381 = vpop.f32.mrb[0].mxu0
  %1382 = vdwg.mxu0
  %v1383 = vld [vmem:[%s12] sm:$0x1]
  %v1384 = vld [vmem:[%s13] sm:$0x1]
  %v1385 = vsel %vm77, %v1375, 0.0
  %1386 = vadd.xlane.f32.xlu0 %v1385
  %v1387 = vpop.xlane.xlu0 %1386
  %v1388 = vsel %vm77, %v1380, 0.0
  %1389 = vadd.xlane.f32.xlu0 %v1388
  %v1390 = vpop.xlane.xlu0 %1389
  %v1391 = vmul.f32 %v1387, %v692
  %v1392 = vmul.f32 %v1390, %v692
  %v1393 = vsub.f32 %v1375, %v1391
  %v1394 = vsub.f32 %v1380, %v1392
  %v1395 = vmul.f32 %v1393, %v1393
  %v1396 = vmul.f32 %v1394, %v1394
  %v1397 = vsel %vm77, %v1395, 0.0
  %1398 = vadd.xlane.f32.xlu0 %v1397
  %v1399 = vpop.xlane.xlu0 %1398
  %v1400 = vsel %vm77, %v1396, 0.0
  %1401 = vadd.xlane.f32.xlu0 %v1400
  %v1402 = vpop.xlane.xlu0 %1401
  %v1403 = vmul.f32 %v1399, %v692
  %v1404 = vmul.f32 %v1402, %v692
  %v1405 = vadd.f32 %v1403, 1e-06
  %v1406 = vadd.f32 %v1404, 1e-06
  %v1407 = vrsqrt.pop %v1405
  %v1408 = vrsqrt.pop %v1406
  %v1409 = vmul.f32 %v1393, %v1407
  %v1410 = vmul.f32 %v1394, %v1408
  %v1412 = vlaneseq
  %v1413 = vshrl.u32 %v1412, 7
  %v1414 = vsub.s32 0, %v1413
  %v1415 = vrot.slane %v1383, %v1414
  %v1417 = vmul.f32 %v1409, %v1415
  %v1418 = vmul.f32 %v1410, %v1415
  %v1420 = vlaneseq
  %v1421 = vshrl.u32 %v1420, 7
  %v1422 = vsub.s32 0, %v1421
  %v1423 = vrot.slane %v1384, %v1422
  %v1425 = vadd.f32 %v1417, %v1423
  %v1426 = vadd.f32 %v1418, %v1423
  %v1427 = vld [vmem:[%s14] sm:$0xff]
  %v1428 = vld [vmem:[%s14 + $0x8] sm:$0xff]
  %v1429 = vld [vmem:[%s14 + $0x10] sm:$0xff]
  %v1430 = vld [vmem:[%s14 + $0x18] sm:$0xff]
  %v1431 = vld [vmem:[%s15] sm:$0x1]
  %v1433 = vlaneseq
  %v1434 = vshrl.u32 %v1433, 7
  %v1435 = vsub.s32 0, %v1434
  %v1436 = vrot.slane %v1431, %v1435
  %v1439 = vsel %vm77, %v1425, 0
  %v1442 = vsel %vm77, %v1426, 0
  %1444 = vmatprep.subr.mxu0 0.0
  %1445 = vmatpush1.msra.mxu0 %v1427
  %1446 = vmatprep.subr.mxu0 0.0
  %1447 = vmatpush1.msra.mxu0 %v1428
  %1448 = vmatprep.subr.mxu0 0.0
  %1449 = vmatpush1.msra.mxu0 %v1429
  %1450 = vmatprep.subr.mxu0 0.0
  %1451 = vmatpush1.msra.mxu0 %v1430
  %1452 = vmatprep.subr.mxu0 0.0
  %1453 = vmatpush1.msra.mxu0 0.0
  %1454 = vmatprep.subr.mxu0 0.0
  %1455 = vmatpush1.msra.mxu0 0.0
  %1456 = vmatprep.subr.mxu0 0.0
  %1457 = vmatpush1.msra.mxu0 0.0
  %1458 = vmatprep.subr.mxu0 0.0
  %1459 = vmatpush1.msra.mxu0 0.0
  %1460 = vmatprep.subr.mxu0 0.0
  %1461 = vmatpush1.msra.mxu0 0.0
  %1462 = vmatprep.subr.mxu0 0.0
  %1463 = vmatpush1.msra.mxu0 0.0
  %1464 = vmatprep.subr.mxu0 0.0
  %1465 = vmatpush1.msra.mxu0 0.0
  %1466 = vmatprep.subr.mxu0 0.0
  %1467 = vmatpush1.msra.mxu0 0.0
  %1468 = vmatprep.subr.mxu0 0.0
  %1469 = vmatpush1.msra.mxu0 0.0
  %1470 = vmatprep.subr.mxu0 0.0
  %1471 = vmatpush1.msra.mxu0 0.0
  %1472 = vmatprep.subr.mxu0 0.0
  %1473 = vmatpush1.msra.mxu0 0.0
  %1474 = vmatprep.subr.mxu0 0.0
  %1475 = vmatpush1.msra.mxu0 0.0
  %1476 = vmatprep.subr.mxu0 0.0
  %1477 = vmatpush1.msra.mxu0 0.0
  %1478 = vmatprep.subr.mxu0 0.0
  %1479 = vmatpush1.msra.mxu0 0.0
  %1480 = vmatprep.subr.mxu0 0.0
  %1481 = vmatpush1.msra.mxu0 0.0
  %1482 = vmatprep.subr.mxu0 0.0
  %1483 = vmatpush1.msra.mxu0 0.0
  %1484 = vmatprep.subr.mxu0 0.0
  %1485 = vmatpush1.msra.mxu0 0.0
  %1486 = vmatprep.subr.mxu0 0.0
  %1487 = vmatpush1.msra.mxu0 0.0
  %1488 = vmatprep.subr.mxu0 0.0
  %1489 = vmatpush1.msra.mxu0 0.0
  %1490 = vmatprep.subr.mxu0 0.0
  %1491 = vmatpush1.msra.mxu0 0.0
  %1492 = vmatprep.subr.mxu0 0.0
  %1493 = vmatpush1.msra.mxu0 0.0
  %1494 = vmatprep.subr.mxu0 0.0
  %1495 = vmatpush1.msra.mxu0 0.0
  %1496 = vmatprep.subr.mxu0 0.0
  %1497 = vmatpush1.msra.mxu0 0.0
  %1498 = vmatprep.subr.mxu0 0.0
  %1499 = vmatpush1.msra.mxu0 0.0
  %1500 = vmatprep.subr.mxu0 0.0
  %1501 = vmatpush1.msra.mxu0 0.0
  %1502 = vmatprep.subr.mxu0 0.0
  %1503 = vmatpush1.msra.mxu0 0.0
  %1504 = vmatprep.subr.mxu0 0.0
  %1505 = vmatpush1.msra.mxu0 0.0
  %1506 = vmatprep.subr.mxu0 0.0
  %1507 = vmatpush1.msra.mxu0 0.0
  %1508 = vmatprep.mubr.f32.mxu0 0.0
  %1509 = vmatmul.mubr.f32.gmra.mrb[0].mxu0 %v1439
  %v1510 = vpop.f32.mrb[0].mxu0
  %v1511 = vadd.f32 %v1436, %v1510
  %v1512 = vpop.f32.mrb[0].mxu0
  %1513 = vmatprep.mubr.f32.mxu0 0.0
  %1514 = vmatmul.mubr.f32.gmra.mrb[0].mxu0 %v1442
  %v1515 = vpop.f32.mrb[0].mxu0
  %v1516 = vadd.f32 %v1436, %v1515
  %v1517 = vpop.f32.mrb[0].mxu0
  %1518 = vdwg.mxu0
  %v1519 = vmax.f32 %v1511, 0.0
  %v1520 = vmax.f32 %v1516, 0.0
  %v1521 = vld [vmem:[%s16] sm:$0xff]
  %v1522 = vld [vmem:[%s16 + $0x8] sm:$0xff]
  %v1523 = vld [vmem:[%s16 + $0x10] sm:$0xff]
  %v1524 = vld [vmem:[%s16 + $0x18] sm:$0xff]
  %v1525 = vld [vmem:[%s16 + $0x20] sm:$0xff]
  %v1526 = vld [vmem:[%s16 + $0x28] sm:$0xff]
  %v1527 = vld [vmem:[%s16 + $0x30] sm:$0xff]
  %v1528 = vld [vmem:[%s16 + $0x38] sm:$0xff]
  %v1529 = vld [vmem:[%s17] sm:$0x1]
  %v1531 = vlaneseq
  %v1532 = vshrl.u32 %v1531, 7
  %v1533 = vsub.s32 0, %v1532
  %v1534 = vrot.slane %v1529, %v1533
  %v1537 = vsel %vm96, %v1519, 0
  %v1540 = vsel %vm96, %v1520, 0
  %1542 = vmatprep.subr.mxu0 0.0
  %1543 = vmatpush1.msra.mxu0 %v1521
  %1544 = vmatprep.subr.mxu0 0.0
  %1545 = vmatpush1.msra.mxu0 %v1522
  %1546 = vmatprep.subr.mxu0 0.0
  %1547 = vmatpush1.msra.mxu0 %v1523
  %1548 = vmatprep.subr.mxu0 0.0
  %1549 = vmatpush1.msra.mxu0 %v1524
  %1550 = vmatprep.subr.mxu0 0.0
  %1551 = vmatpush1.msra.mxu0 %v1525
  %1552 = vmatprep.subr.mxu0 0.0
  %1553 = vmatpush1.msra.mxu0 %v1526
  %1554 = vmatprep.subr.mxu0 0.0
  %1555 = vmatpush1.msra.mxu0 %v1527
  %1556 = vmatprep.subr.mxu0 0.0
  %1557 = vmatpush1.msra.mxu0 %v1528
  %1558 = vmatprep.subr.mxu0 0.0
  %1559 = vmatpush1.msra.mxu0 0.0
  %1560 = vmatprep.subr.mxu0 0.0
  %1561 = vmatpush1.msra.mxu0 0.0
  %1562 = vmatprep.subr.mxu0 0.0
  %1563 = vmatpush1.msra.mxu0 0.0
  %1564 = vmatprep.subr.mxu0 0.0
  %1565 = vmatpush1.msra.mxu0 0.0
  %1566 = vmatprep.subr.mxu0 0.0
  %1567 = vmatpush1.msra.mxu0 0.0
  %1568 = vmatprep.subr.mxu0 0.0
  %1569 = vmatpush1.msra.mxu0 0.0
  %1570 = vmatprep.subr.mxu0 0.0
  %1571 = vmatpush1.msra.mxu0 0.0
  %1572 = vmatprep.subr.mxu0 0.0
  %1573 = vmatpush1.msra.mxu0 0.0
  %1574 = vmatprep.subr.mxu0 0.0
  %1575 = vmatpush1.msra.mxu0 0.0
  %1576 = vmatprep.subr.mxu0 0.0
  %1577 = vmatpush1.msra.mxu0 0.0
  %1578 = vmatprep.subr.mxu0 0.0
  %1579 = vmatpush1.msra.mxu0 0.0
  %1580 = vmatprep.subr.mxu0 0.0
  %1581 = vmatpush1.msra.mxu0 0.0
  %1582 = vmatprep.subr.mxu0 0.0
  %1583 = vmatpush1.msra.mxu0 0.0
  %1584 = vmatprep.subr.mxu0 0.0
  %1585 = vmatpush1.msra.mxu0 0.0
  %1586 = vmatprep.subr.mxu0 0.0
  %1587 = vmatpush1.msra.mxu0 0.0
  %1588 = vmatprep.subr.mxu0 0.0
  %1589 = vmatpush1.msra.mxu0 0.0
  %1590 = vmatprep.subr.mxu0 0.0
  %1591 = vmatpush1.msra.mxu0 0.0
  %1592 = vmatprep.subr.mxu0 0.0
  %1593 = vmatpush1.msra.mxu0 0.0
  %1594 = vmatprep.subr.mxu0 0.0
  %1595 = vmatpush1.msra.mxu0 0.0
  %1596 = vmatprep.subr.mxu0 0.0
  %1597 = vmatpush1.msra.mxu0 0.0
  %1598 = vmatprep.subr.mxu0 0.0
  %1599 = vmatpush1.msra.mxu0 0.0
  %1600 = vmatprep.subr.mxu0 0.0
  %1601 = vmatpush1.msra.mxu0 0.0
  %1602 = vmatprep.subr.mxu0 0.0
  %1603 = vmatpush1.msra.mxu0 0.0
  %1604 = vmatprep.subr.mxu0 0.0
  %1605 = vmatpush1.msra.mxu0 0.0
  %1606 = vmatprep.mubr.f32.mxu0 0.0
  %1607 = vmatmul.mubr.f32.gmra.mrb[0].mxu0 %v1537
  %v1608 = vpop.f32.mrb[0].mxu0
  %v1609 = vadd.f32 %v1534, %v1608
  %v1610 = vpop.f32.mrb[0].mxu0
  %1611 = vmatprep.mubr.f32.mxu0 0.0
  %1612 = vmatmul.mubr.f32.gmra.mrb[0].mxu0 %v1540
  %v1613 = vpop.f32.mrb[0].mxu0
  %v1614 = vadd.f32 %v1534, %v1613
  %v1615 = vpop.f32.mrb[0].mxu0
  %1616 = vdwg.mxu0
  %v1617 = vadd.f32 %v1609, %v1425
  %v1618 = vadd.f32 %v1614, %v1426
  %v1619 = vld [vmem:[%s18] sm:$0x1]
  %v1620 = vld [vmem:[%s19] sm:$0x1]
  %v1621 = vsel %vm77, %v1617, 0.0
  %1622 = vadd.xlane.f32.xlu0 %v1621
  %v1623 = vpop.xlane.xlu0 %1622
  %v1624 = vsel %vm77, %v1618, 0.0
  %1625 = vadd.xlane.f32.xlu0 %v1624
  %v1626 = vpop.xlane.xlu0 %1625
  %v1627 = vmul.f32 %v1623, %v692
  %v1628 = vmul.f32 %v1626, %v692
  %v1629 = vsub.f32 %v1617, %v1627
  %v1630 = vsub.f32 %v1618, %v1628
  %v1631 = vmul.f32 %v1629, %v1629
  %v1632 = vmul.f32 %v1630, %v1630
  %v1633 = vsel %vm77, %v1631, 0.0
  %1634 = vadd.xlane.f32.xlu0 %v1633
  %v1635 = vpop.xlane.xlu0 %1634
  %v1636 = vsel %vm77, %v1632, 0.0
  %1637 = vadd.xlane.f32.xlu0 %v1636
  %v1638 = vpop.xlane.xlu0 %1637
  %v1639 = vmul.f32 %v1635, %v692
  %v1640 = vmul.f32 %v1638, %v692
  %v1641 = vadd.f32 %v1639, 1e-06
  %v1642 = vadd.f32 %v1640, 1e-06
  %v1643 = vrsqrt.pop %v1641
  %v1644 = vrsqrt.pop %v1642
  %v1645 = vmul.f32 %v1629, %v1643
  %v1646 = vmul.f32 %v1630, %v1644
  %v1648 = vlaneseq
  %v1649 = vshrl.u32 %v1648, 7
  %v1650 = vsub.s32 0, %v1649
  %v1651 = vrot.slane %v1619, %v1650
  %v1653 = vmul.f32 %v1645, %v1651
  %v1654 = vmul.f32 %v1646, %v1651
  %v1656 = vlaneseq
  %v1657 = vshrl.u32 %v1656, 7
  %v1658 = vsub.s32 0, %v1657
  %v1659 = vrot.slane %v1620, %v1658
  %v1661 = vadd.f32 %v1653, %v1659
  %v1662 = vadd.f32 %v1654, %v1659
  %1663 = vst.msk [vmem:[%s20] sm:$0xff] %vm77, %v1661
  %1664 = vst.msk [vmem:[%s20 + $0x8] sm:$0xff] %vm77, %v1662
  // Predicated region
  $region82: #{_lambda_.6} parent=0 // pred_check
    _
  $region83: #{_lambda_.6} parent=0 // pred_check_branch
    %1666 = sbr.rel (0) target = $region85
  $region84: #{_lambda_.6} parent=0 // pred_region
    _
  $region85: #{_lambda_.6} parent=0 // pred_fallthru
    _
  // Predicated region
  $region86: #{_lambda_.6} parent=0 // pred_check
    _
  $region87: #{_lambda_.6} parent=0 // pred_check_branch
    %1668 = sbr.rel (0) target = $region89
  $region88: #{_lambda_.6} parent=0 // pred_region
    _
  $region89: #{_lambda_.6} parent=0 // pred_fallthru
    _

// kernel: _lambda_.5
$region0: #{_lambda_.5}
  #allocation0 [shape = 'u32[]', space=smem, size = 0x4, offset = 0x4, fixed_abs, tag = 'smem constant byte address 0x4 - core index']
  #allocation1 [shape = 'u32[144,128]{1,0:T(1,128)}', space=vmem, size = 0x12000, scoped, tag = 'internal scratch']
  %s0 = inlined_call_operand.vmem [shape: f32[8,32], index: 0, kind: input, shape index: {}]
  %s1 = inlined_call_operand.vmem [shape: f32[8,32], index: 1, kind: input, shape index: {}]
  %s2 = inlined_call_operand.vmem [shape: f32[4,32], index: 2, kind: input, shape index: {}]
  %s3 = inlined_call_operand.vmem [shape: f32[8,8], index: 3, kind: input, shape index: {}]
  %s4 = inlined_call_operand.vmem [shape: f32[8,4], index: 4, kind: input, shape index: {}]
  %s5 = inlined_call_operand.vmem [shape: f32[64,192], index: 5, kind: input, shape index: {}]
  %s6 = inlined_call_operand.vmem [shape: f32[64,32], index: 6, kind: input, shape index: {}]
  %s7 = inlined_call_operand.vmem [shape: f32[1,32], index: 7, kind: input, shape index: {}]
  %s8 = inlined_call_operand.vmem [shape: f32[1,32], index: 8, kind: input, shape index: {}]
  %s9 = inlined_call_operand.vmem [shape: f32[32,64], index: 9, kind: input, shape index: {}]
  %s10 = inlined_call_operand.vmem [shape: f32[32,128], index: 10, kind: input, shape index: {}]
  %s11 = inlined_call_operand.vmem [shape: f32[64,32], index: 11, kind: input, shape index: {}]
  %s12 = inlined_call_operand.vmem [shape: f32[1,32], index: 12, kind: input, shape index: {}]
  %s13 = inlined_call_operand.vmem [shape: f32[1,32], index: 13, kind: input, shape index: {}]
  %s14 = inlined_call_operand.vmem [shape: f32[32,64], index: 14, kind: input, shape index: {}]
  %s15 = inlined_call_operand.vmem [shape: f32[1,64], index: 15, kind: input, shape index: {}]
  %s16 = inlined_call_operand.vmem [shape: f32[64,32], index: 16, kind: input, shape index: {}]
  %s17 = inlined_call_operand.vmem [shape: f32[1,32], index: 17, kind: input, shape index: {}]
  %s18 = inlined_call_operand.vmem [shape: f32[1,32], index: 18, kind: input, shape index: {}]
  %s19 = inlined_call_operand.vmem [shape: f32[1,32], index: 19, kind: input, shape index: {}]
  %s20 = inlined_call_operand.vmem [shape: f32[8,32], index: 20, kind: output, shape index: {}]
  %s21 = sld [smem:[#allocation0]]
  $region90: #{_lambda_.5} parent=0
    _
  %s23 = ssub.s32 1, %s21
  %s24 = scalar_select 0, %s23, %s21
  // Predicated region
  $region2: #{_lambda_.5} parent=0 // pred_check
    _
  $region3: #{_lambda_.5} parent=0 // pred_check_branch
    %26 = sbr.rel (0) target = $region5
  $region4: #{_lambda_.5} parent=0 // pred_region
    _
  $region5: #{_lambda_.5} parent=0 // pred_fallthru
    _
  // Predicated region
  $region6: #{_lambda_.5} parent=0 // pred_check
    _
  $region7: #{_lambda_.5} parent=0 // pred_check_branch
    %28 = sbr.rel (0) target = $region9
  $region8: #{_lambda_.5} parent=0 // pred_region
    _
  $region9: #{_lambda_.5} parent=0 // pred_fallthru
    _
  // Predicated region
  $region10: #{_lambda_.5} parent=0 // pred_check
    _
  $region11: #{_lambda_.5} parent=0 // pred_check_branch
    %30 = sbr.rel (0) target = $region13
  $region12: #{_lambda_.5} parent=0 // pred_region
    _
  $region13: #{_lambda_.5} parent=0 // pred_fallthru
    _
  // Predicated region
  $region14: #{_lambda_.5} parent=0 // pred_check
    _
  $region15: #{_lambda_.5} parent=0 // pred_check_branch
    %32 = sbr.rel (0) target = $region17
  $region16: #{_lambda_.5} parent=0 // pred_region
    _
  $region17: #{_lambda_.5} parent=0 // pred_fallthru
    _
  // Predicated region
  $region18: #{_lambda_.5} parent=0 // pred_check
    _
  $region19: #{_lambda_.5} parent=0 // pred_check_branch
    %34 = sbr.rel (0) target = $region21
  $region20: #{_lambda_.5} parent=0 // pred_region
    _
  $region21: #{_lambda_.5} parent=0 // pred_fallthru
    _
  // Predicated region
  $region22: #{_lambda_.5} parent=0 // pred_check
    _
  $region23: #{_lambda_.5} parent=0 // pred_check_branch
    %36 = sbr.rel (0) target = $region25
  $region24: #{_lambda_.5} parent=0 // pred_region
    _
  $region25: #{_lambda_.5} parent=0 // pred_fallthru
    _
  // Predicated region
  $region26: #{_lambda_.5} parent=0 // pred_check
    _
  $region27: #{_lambda_.5} parent=0 // pred_check_branch
    %38 = sbr.rel (0) target = $region29
  $region28: #{_lambda_.5} parent=0 // pred_region
    _
  $region29: #{_lambda_.5} parent=0 // pred_fallthru
    _
  // Predicated region
  $region30: #{_lambda_.5} parent=0 // pred_check
    _
  $region31: #{_lambda_.5} parent=0 // pred_check_branch
    %40 = sbr.rel (0) target = $region33
  $region32: #{_lambda_.5} parent=0 // pred_region
    _
  $region33: #{_lambda_.5} parent=0 // pred_fallthru
    _
  // Predicated region
  $region34: #{_lambda_.5} parent=0 // pred_check
    _
  $region35: #{_lambda_.5} parent=0 // pred_check_branch
    %42 = sbr.rel (0) target = $region37
  $region36: #{_lambda_.5} parent=0 // pred_region
    _
  $region37: #{_lambda_.5} parent=0 // pred_fallthru
    _
  // Predicated region
  $region38: #{_lambda_.5} parent=0 // pred_check
    _
  $region39: #{_lambda_.5} parent=0 // pred_check_branch
    %44 = sbr.rel (0) target = $region41
  $region40: #{_lambda_.5} parent=0 // pred_region
    _
  $region41: #{_lambda_.5} parent=0 // pred_fallthru
    _
  // Predicated region
  $region42: #{_lambda_.5} parent=0 // pred_check
    _
  $region43: #{_lambda_.5} parent=0 // pred_check_branch
    %46 = sbr.rel (0) target = $region45
  $region44: #{_lambda_.5} parent=0 // pred_region
    _
  $region45: #{_lambda_.5} parent=0 // pred_fallthru
    _
  // Predicated region
  $region46: #{_lambda_.5} parent=0 // pred_check
    _
  $region47: #{_lambda_.5} parent=0 // pred_check_branch
    %48 = sbr.rel (0) target = $region49
  $region48: #{_lambda_.5} parent=0 // pred_region
    _
  $region49: #{_lambda_.5} parent=0 // pred_fallthru
    _
  // Predicated region
  $region50: #{_lambda_.5} parent=0 // pred_check
    _
  $region51: #{_lambda_.5} parent=0 // pred_check_branch
    %50 = sbr.rel (0) target = $region53
  $region52: #{_lambda_.5} parent=0 // pred_region
    _
  $region53: #{_lambda_.5} parent=0 // pred_fallthru
    _
  // Predicated region
  $region54: #{_lambda_.5} parent=0 // pred_check
    _
  $region55: #{_lambda_.5} parent=0 // pred_check_branch
    %52 = sbr.rel (0) target = $region57
  $region56: #{_lambda_.5} parent=0 // pred_region
    _
  $region57: #{_lambda_.5} parent=0 // pred_fallthru
    _
  // Predicated region
  $region58: #{_lambda_.5} parent=0 // pred_check
    _
  $region59: #{_lambda_.5} parent=0 // pred_check_branch
    %54 = sbr.rel (0) target = $region61
  $region60: #{_lambda_.5} parent=0 // pred_region
    _
  $region61: #{_lambda_.5} parent=0 // pred_fallthru
    _
  // Predicated region
  $region62: #{_lambda_.5} parent=0 // pred_check
    _
  $region63: #{_lambda_.5} parent=0 // pred_check_branch
    %56 = sbr.rel (0) target = $region65
  $region64: #{_lambda_.5} parent=0 // pred_region
    _
  $region65: #{_lambda_.5} parent=0 // pred_fallthru
    _
  // Predicated region
  $region66: #{_lambda_.5} parent=0 // pred_check
    _
  $region67: #{_lambda_.5} parent=0 // pred_check_branch
    %58 = sbr.rel (0) target = $region69
  $region68: #{_lambda_.5} parent=0 // pred_region
    _
  $region69: #{_lambda_.5} parent=0 // pred_fallthru
    _
  // Predicated region
  $region70: #{_lambda_.5} parent=0 // pred_check
    _
  $region71: #{_lambda_.5} parent=0 // pred_check_branch
    %60 = sbr.rel (0) target = $region73
  $region72: #{_lambda_.5} parent=0 // pred_region
    _
  $region73: #{_lambda_.5} parent=0 // pred_fallthru
    _
  // Predicated region
  $region74: #{_lambda_.5} parent=0 // pred_check
    _
  $region75: #{_lambda_.5} parent=0 // pred_check_branch
    %62 = sbr.rel (0) target = $region77
  $region76: #{_lambda_.5} parent=0 // pred_region
    _
  $region77: #{_lambda_.5} parent=0 // pred_fallthru
    _
  // Predicated region
  $region78: #{_lambda_.5} parent=0 // pred_check
    _
  $region79: #{_lambda_.5} parent=0 // pred_check_branch
    %64 = sbr.rel (0) target = $region81
  $region80: #{_lambda_.5} parent=0 // pred_region
    _
  $region81: #{_lambda_.5} parent=0 // pred_fallthru
    _
  %v65 = vld [vmem:[%s0] sm:$0xff]
  %v66 = vld [vmem:[%s1] sm:$0xff]
  %68 = vrot.lane.b32.xlu0 %v66, 32
  %v69 = vpop.permute.xlu0 %68
  %vm71 = vcmask 261120
  %v72 = vsel %vm71, %v65, %v69
  %v73 = vld [vmem:[%s5] sm:$0xff]
  %v74 = vld [vmem:[%s5 + $0x8] sm:$0xff]
  %v75 = vld [vmem:[%s5 + $0x10] sm:$0xff]
  %v76 = vld [vmem:[%s5 + $0x18] sm:$0xff]
  %v77 = vld [vmem:[%s5 + $0x20] sm:$0xff]
  %v78 = vld [vmem:[%s5 + $0x28] sm:$0xff]
  %v79 = vld [vmem:[%s5 + $0x30] sm:$0xff]
  %v80 = vld [vmem:[%s5 + $0x38] sm:$0xff]
  %v81 = vld [vmem:[%s5 + $0x40] sm:$0xff]
  %v82 = vld [vmem:[%s5 + $0x48] sm:$0xff]
  %v83 = vld [vmem:[%s5 + $0x50] sm:$0xff]
  %v84 = vld [vmem:[%s5 + $0x58] sm:$0xff]
  %v85 = vld [vmem:[%s5 + $0x60] sm:$0xff]
  %v86 = vld [vmem:[%s5 + $0x68] sm:$0xff]
  %v87 = vld [vmem:[%s5 + $0x70] sm:$0xff]
  %v88 = vld [vmem:[%s5 + $0x78] sm:$0xff]
  %vm89 = vcmask 523264
  %v91 = vsel %vm89, %v72, 0
  %93 = vmatprep.subr.mxu0 %v74
  %94 = vmatpush1.msra.mxu0 %v73
  %95 = vmatprep.subr.mxu0 %v76
  %96 = vmatpush1.msra.mxu0 %v75
  %97 = vmatprep.subr.mxu0 %v78
  %98 = vmatpush1.msra.mxu0 %v77
  %99 = vmatprep.subr.mxu0 %v80
  %100 = vmatpush1.msra.mxu0 %v79
  %101 = vmatprep.subr.mxu0 %v82
  %102 = vmatpush1.msra.mxu0 %v81
  %103 = vmatprep.subr.mxu0 %v84
  %104 = vmatpush1.msra.mxu0 %v83
  %105 = vmatprep.subr.mxu0 %v86
  %106 = vmatpush1.msra.mxu0 %v85
  %107 = vmatprep.subr.mxu0 %v88
  %108 = vmatpush1.msra.mxu0 %v87
  %109 = vmatprep.subr.mxu0 0.0
  %110 = vmatpush1.msra.mxu0 0.0
  %111 = vmatprep.subr.mxu0 0.0
  %112 = vmatpush1.msra.mxu0 0.0
  %113 = vmatprep.subr.mxu0 0.0
  %114 = vmatpush1.msra.mxu0 0.0
  %115 = vmatprep.subr.mxu0 0.0
  %116 = vmatpush1.msra.mxu0 0.0
  %117 = vmatprep.subr.mxu0 0.0
  %118 = vmatpush1.msra.mxu0 0.0
  %119 = vmatprep.subr.mxu0 0.0
  %120 = vmatpush1.msra.mxu0 0.0
  %121 = vmatprep.subr.mxu0 0.0
  %122 = vmatpush1.msra.mxu0 0.0
  %123 = vmatprep.subr.mxu0 0.0
  %124 = vmatpush1.msra.mxu0 0.0
  %125 = vmatprep.subr.mxu0 0.0
  %126 = vmatpush1.msra.mxu0 0.0
  %127 = vmatprep.subr.mxu0 0.0
  %128 = vmatpush1.msra.mxu0 0.0
  %129 = vmatprep.subr.mxu0 0.0
  %130 = vmatpush1.msra.mxu0 0.0
  %131 = vmatprep.subr.mxu0 0.0
  %132 = vmatpush1.msra.mxu0 0.0
  %133 = vmatprep.subr.mxu0 0.0
  %134 = vmatpush1.msra.mxu0 0.0
  %135 = vmatprep.subr.mxu0 0.0
  %136 = vmatpush1.msra.mxu0 0.0
  %137 = vmatprep.subr.mxu0 0.0
  %138 = vmatpush1.msra.mxu0 0.0
  %139 = vmatprep.subr.mxu0 0.0
  %140 = vmatpush1.msra.mxu0 0.0
  %141 = vmatprep.subr.mxu0 0.0
  %142 = vmatpush1.msra.mxu0 0.0
  %143 = vmatprep.subr.mxu0 0.0
  %144 = vmatpush1.msra.mxu0 0.0
  %145 = vmatprep.subr.mxu0 0.0
  %146 = vmatpush1.msra.mxu0 0.0
  %147 = vmatprep.subr.mxu0 0.0
  %148 = vmatpush1.msra.mxu0 0.0
  %149 = vmatprep.subr.mxu0 0.0
  %150 = vmatpush1.msra.mxu0 0.0
  %151 = vmatprep.subr.mxu0 0.0
  %152 = vmatpush1.msra.mxu0 0.0
  %153 = vmatprep.subr.mxu0 0.0
  %154 = vmatpush1.msra.mxu0 0.0
  %155 = vmatprep.subr.mxu0 0.0
  %156 = vmatpush1.msra.mxu0 0.0
  %157 = vmatprep.mubr.f32.mxu0 0.0
  %158 = vmatmul.mubr.f32.gmra.mrb[0].mxu0 %v91
  %v159 = vpop.f32.mrb[0].mxu0
  %v160 = vadd.f32 0.0, %v159
  %v161 = vpop.f32.mrb[0].mxu0
  %v162 = vadd.f32 0.0, %v161
  %163 = vdwg.mxu0
  %v164 = vld [vmem:[%s3] sm:$0xff]
  %166 = vrot.lane.b32.xlu0 %v160, 64
  %v167 = vpop.permute.xlu0 %166
  %v168 = vsel %vm71, %v160, 0
  %v170 = vsel %vm71, %v167, 0
  %172 = vmatprep.subr.mxu0 0.0
  %173 = vmatpush1.xpose.msra.mxu0 %v170
  %174 = vmatprep.subr.mxu0 0.0
  %175 = vmatpush1.xpose.msra.mxu0 0.0
  %176 = vmatprep.subr.mxu0 0.0
  %177 = vmatpush1.xpose.msra.mxu0 0.0
  %178 = vmatprep.subr.mxu0 0.0
  %179 = vmatpush1.xpose.msra.mxu0 0.0
  %180 = vmatprep.subr.mxu0 0.0
  %181 = vmatpush1.xpose.msra.mxu0 0.0
  %182 = vmatprep.subr.mxu0 0.0
  %183 = vmatpush1.xpose.msra.mxu0 0.0
  %184 = vmatprep.subr.mxu0 0.0
  %185 = vmatpush1.xpose.msra.mxu0 0.0
  %186 = vmatprep.subr.mxu0 0.0
  %187 = vmatpush1.xpose.msra.mxu0 0.0
  %188 = vmatprep.subr.mxu0 0.0
  %189 = vmatpush1.xpose.msra.mxu0 0.0
  %190 = vmatprep.subr.mxu0 0.0
  %191 = vmatpush1.xpose.msra.mxu0 0.0
  %192 = vmatprep.subr.mxu0 0.0
  %193 = vmatpush1.xpose.msra.mxu0 0.0
  %194 = vmatprep.subr.mxu0 0.0
  %195 = vmatpush1.xpose.msra.mxu0 0.0
  %196 = vmatprep.subr.mxu0 0.0
  %197 = vmatpush1.xpose.msra.mxu0 0.0
  %198 = vmatprep.subr.mxu0 0.0
  %199 = vmatpush1.xpose.msra.mxu0 0.0
  %200 = vmatprep.subr.mxu0 0.0
  %201 = vmatpush1.xpose.msra.mxu0 0.0
  %202 = vmatprep.subr.mxu0 0.0
  %203 = vmatpush1.xpose.msra.mxu0 0.0
  %204 = vmatprep.subr.mxu0 0.0
  %205 = vmatpush1.xpose.msra.mxu0 0.0
  %206 = vmatprep.subr.mxu0 0.0
  %207 = vmatpush1.xpose.msra.mxu0 0.0
  %208 = vmatprep.subr.mxu0 0.0
  %209 = vmatpush1.xpose.msra.mxu0 0.0
  %210 = vmatprep.subr.mxu0 0.0
  %211 = vmatpush1.xpose.msra.mxu0 0.0
  %212 = vmatprep.subr.mxu0 0.0
  %213 = vmatpush1.xpose.msra.mxu0 0.0
  %214 = vmatprep.subr.mxu0 0.0
  %215 = vmatpush1.xpose.msra.mxu0 0.0
  %216 = vmatprep.subr.mxu0 0.0
  %217 = vmatpush1.xpose.msra.mxu0 0.0
  %218 = vmatprep.subr.mxu0 0.0
  %219 = vmatpush1.xpose.msra.mxu0 0.0
  %220 = vmatprep.subr.mxu0 0.0
  %221 = vmatpush1.xpose.msra.mxu0 0.0
  %222 = vmatprep.subr.mxu0 0.0
  %223 = vmatpush1.xpose.msra.mxu0 0.0
  %224 = vmatprep.subr.mxu0 0.0
  %225 = vmatpush1.xpose.msra.mxu0 0.0
  %226 = vmatprep.subr.mxu0 0.0
  %227 = vmatpush1.xpose.msra.mxu0 0.0
  %228 = vmatprep.subr.mxu0 0.0
  %229 = vmatpush1.xpose.msra.mxu0 0.0
  %230 = vmatprep.subr.mxu0 0.0
  %231 = vmatpush1.xpose.msra.mxu0 0.0
  %232 = vmatprep.subr.mxu0 0.0
  %233 = vmatpush1.xpose.msra.mxu0 0.0
  %234 = vmatprep.subr.mxu0 0.0
  %235 = vmatpush1.xpose.msra.mxu0 0.0
  %236 = vmatprep.mubr.f32.mxu0 0.0
  %237 = vmatmul.mubr.f32.gmra.mrb[0].mxu0 %v168
  %v238 = vpop.f32.mrb[0].mxu0
  %v239 = vadd.f32 0.0, %v238
  %v240 = vpop.f32.mrb[0].mxu0
  %241 = vdwg.mxu0
  %vm242 = vcmp.gt.f32.partialorder %v164, 0.5
  %v243 = vsel %vm242, %v239, -1e+09
  %vm244 = vcmask 64512
  %v245 = vsel %vm244, %v243, -inf
  %246 = vmax.xlane.f32.xlu0 %v245
  %v247 = vpop.xlane.xlu0 %246
  %v248 = vsub.f32 %v243, %v247
  %v249 = vmul.f32 %v248, 1.442695
  %v250 = vpow.pop %v249
  %v251 = vsel %vm244, %v250, 0.0
  %252 = vadd.xlane.f32.xlu0 %v251
  %v253 = vpop.xlane.xlu0 %252
  %v254 = vrcp.pop %v253
  %v255 = vmul.f32 %v250, %v254
  %v257 = vsel %vm244, %v255, 0
  %259 = vmatprep.subr.mxu0 0.0
  %260 = vmatpush1.msra.mxu0 %v162
  %261 = vmatprep.subr.mxu0 0.0
  %262 = vmatpush1.msra.mxu0 0.0
  %263 = vmatprep.subr.mxu0 0.0
  %264 = vmatpush1.msra.mxu0 0.0
  %265 = vmatprep.subr.mxu0 0.0
  %266 = vmatpush1.msra.mxu0 0.0
  %267 = vmatprep.subr.mxu0 0.0
  %268 = vmatpush1.msra.mxu0 0.0
  %269 = vmatprep.subr.mxu0 0.0
  %270 = vmatpush1.msra.mxu0 0.0
  %271 = vmatprep.subr.mxu0 0.0
  %272 = vmatpush1.msra.mxu0 0.0
  %273 = vmatprep.subr.mxu0 0.0
  %274 = vmatpush1.msra.mxu0 0.0
  %275 = vmatprep.subr.mxu0 0.0
  %276 = vmatpush1.msra.mxu0 0.0
  %277 = vmatprep.subr.mxu0 0.0
  %278 = vmatpush1.msra.mxu0 0.0
  %279 = vmatprep.subr.mxu0 0.0
  %280 = vmatpush1.msra.mxu0 0.0
  %281 = vmatprep.subr.mxu0 0.0
  %282 = vmatpush1.msra.mxu0 0.0
  %283 = vmatprep.subr.mxu0 0.0
  %284 = vmatpush1.msra.mxu0 0.0
  %285 = vmatprep.subr.mxu0 0.0
  %286 = vmatpush1.msra.mxu0 0.0
  %287 = vmatprep.subr.mxu0 0.0
  %288 = vmatpush1.msra.mxu0 0.0
  %289 = vmatprep.subr.mxu0 0.0
  %290 = vmatpush1.msra.mxu0 0.0
  %291 = vmatprep.subr.mxu0 0.0
  %292 = vmatpush1.msra.mxu0 0.0
  %293 = vmatprep.subr.mxu0 0.0
  %294 = vmatpush1.msra.mxu0 0.0
  %295 = vmatprep.subr.mxu0 0.0
  %296 = vmatpush1.msra.mxu0 0.0
  %297 = vmatprep.subr.mxu0 0.0
  %298 = vmatpush1.msra.mxu0 0.0
  %299 = vmatprep.subr.mxu0 0.0
  %300 = vmatpush1.msra.mxu0 0.0
  %301 = vmatprep.subr.mxu0 0.0
  %302 = vmatpush1.msra.mxu0 0.0
  %303 = vmatprep.subr.mxu0 0.0
  %304 = vmatpush1.msra.mxu0 0.0
  %305 = vmatprep.subr.mxu0 0.0
  %306 = vmatpush1.msra.mxu0 0.0
  %307 = vmatprep.subr.mxu0 0.0
  %308 = vmatpush1.msra.mxu0 0.0
  %309 = vmatprep.subr.mxu0 0.0
  %310 = vmatpush1.msra.mxu0 0.0
  %311 = vmatprep.subr.mxu0 0.0
  %312 = vmatpush1.msra.mxu0 0.0
  %313 = vmatprep.subr.mxu0 0.0
  %314 = vmatpush1.msra.mxu0 0.0
  %315 = vmatprep.subr.mxu0 0.0
  %316 = vmatpush1.msra.mxu0 0.0
  %317 = vmatprep.subr.mxu0 0.0
  %318 = vmatpush1.msra.mxu0 0.0
  %319 = vmatprep.subr.mxu0 0.0
  %320 = vmatpush1.msra.mxu0 0.0
  %321 = vmatprep.subr.mxu0 0.0
  %322 = vmatpush1.msra.mxu0 0.0
  %323 = vmatprep.mubr.f32.mxu0 0.0
  %324 = vmatmul.mubr.f32.gmra.mrb[0].mxu0 %v257
  %v325 = vpop.f32.mrb[0].mxu0
  %v326 = vadd.f32 0.0, %v325
  %v327 = vpop.f32.mrb[0].mxu0
  %328 = vdwg.mxu0
  %329 = vrot.lane.b32.xlu0 %v160, 96
  %v330 = vpop.permute.xlu0 %329
  %331 = vrot.lane.b32.xlu0 %v160, 32
  %v332 = vpop.permute.xlu0 %331
  %v333 = vsel %vm71, %v330, 0
  %v335 = vsel %vm71, %v332, 0
  %337 = vmatprep.subr.mxu0 0.0
  %338 = vmatpush1.xpose.msra.mxu0 %v335
  %339 = vmatprep.subr.mxu0 0.0
  %340 = vmatpush1.xpose.msra.mxu0 0.0
  %341 = vmatprep.subr.mxu0 0.0
  %342 = vmatpush1.xpose.msra.mxu0 0.0
  %343 = vmatprep.subr.mxu0 0.0
  %344 = vmatpush1.xpose.msra.mxu0 0.0
  %345 = vmatprep.subr.mxu0 0.0
  %346 = vmatpush1.xpose.msra.mxu0 0.0
  %347 = vmatprep.subr.mxu0 0.0
  %348 = vmatpush1.xpose.msra.mxu0 0.0
  %349 = vmatprep.subr.mxu0 0.0
  %350 = vmatpush1.xpose.msra.mxu0 0.0
  %351 = vmatprep.subr.mxu0 0.0
  %352 = vmatpush1.xpose.msra.mxu0 0.0
  %353 = vmatprep.subr.mxu0 0.0
  %354 = vmatpush1.xpose.msra.mxu0 0.0
  %355 = vmatprep.subr.mxu0 0.0
  %356 = vmatpush1.xpose.msra.mxu0 0.0
  %357 = vmatprep.subr.mxu0 0.0
  %358 = vmatpush1.xpose.msra.mxu0 0.0
  %359 = vmatprep.subr.mxu0 0.0
  %360 = vmatpush1.xpose.msra.mxu0 0.0
  %361 = vmatprep.subr.mxu0 0.0
  %362 = vmatpush1.xpose.msra.mxu0 0.0
  %363 = vmatprep.subr.mxu0 0.0
  %364 = vmatpush1.xpose.msra.mxu0 0.0
  %365 = vmatprep.subr.mxu0 0.0
  %366 = vmatpush1.xpose.msra.mxu0 0.0
  %367 = vmatprep.subr.mxu0 0.0
  %368 = vmatpush1.xpose.msra.mxu0 0.0
  %369 = vmatprep.subr.mxu0 0.0
  %370 = vmatpush1.xpose.msra.mxu0 0.0
  %371 = vmatprep.subr.mxu0 0.0
  %372 = vmatpush1.xpose.msra.mxu0 0.0
  %373 = vmatprep.subr.mxu0 0.0
  %374 = vmatpush1.xpose.msra.mxu0 0.0
  %375 = vmatprep.subr.mxu0 0.0
  %376 = vmatpush1.xpose.msra.mxu0 0.0
  %377 = vmatprep.subr.mxu0 0.0
  %378 = vmatpush1.xpose.msra.mxu0 0.0
  %379 = vmatprep.subr.mxu0 0.0
  %380 = vmatpush1.xpose.msra.mxu0 0.0
  %381 = vmatprep.subr.mxu0 0.0
  %382 = vmatpush1.xpose.msra.mxu0 0.0
  %383 = vmatprep.subr.mxu0 0.0
  %384 = vmatpush1.xpose.msra.mxu0 0.0
  %385 = vmatprep.subr.mxu0 0.0
  %386 = vmatpush1.xpose.msra.mxu0 0.0
  %387 = vmatprep.subr.mxu0 0.0
  %388 = vmatpush1.xpose.msra.mxu0 0.0
  %389 = vmatprep.subr.mxu0 0.0
  %390 = vmatpush1.xpose.msra.mxu0 0.0
  %391 = vmatprep.subr.mxu0 0.0
  %392 = vmatpush1.xpose.msra.mxu0 0.0
  %393 = vmatprep.subr.mxu0 0.0
  %394 = vmatpush1.xpose.msra.mxu0 0.0
  %395 = vmatprep.subr.mxu0 0.0
  %396 = vmatpush1.xpose.msra.mxu0 0.0
  %397 = vmatprep.subr.mxu0 0.0
  %398 = vmatpush1.xpose.msra.mxu0 0.0
  %399 = vmatprep.subr.mxu0 0.0
  %400 = vmatpush1.xpose.msra.mxu0 0.0
  %401 = vmatprep.mubr.f32.mxu0 0.0
  %402 = vmatmul.mubr.f32.gmra.mrb[0].mxu0 %v333
  %v403 = vpop.f32.mrb[0].mxu0
  %v404 = vadd.f32 0.0, %v403
  %v405 = vpop.f32.mrb[0].mxu0
  %406 = vdwg.mxu0
  %v407 = vsel %vm242, %v404, -1e+09
  %v408 = vsel %vm244, %v407, -inf
  %409 = vmax.xlane.f32.xlu0 %v408
  %v410 = vpop.xlane.xlu0 %409
  %v411 = vsub.f32 %v407, %v410
  %v412 = vmul.f32 %v411, 1.442695
  %v413 = vpow.pop %v412
  %v414 = vsel %vm244, %v413, 0.0
  %415 = vadd.xlane.f32.xlu0 %v414
  %v416 = vpop.xlane.xlu0 %415
  %v417 = vrcp.pop %v416
  %v418 = vmul.f32 %v413, %v417
  %420 = vrot.lane.b32.xlu0 %v162, 96
  %v421 = vpop.permute.xlu0 %420
  %v424 = vsel %vm244, %v418, 0
  %426 = vmatprep.subr.mxu0 0.0
  %427 = vmatpush1.msra.mxu0 %v421
  %428 = vmatprep.subr.mxu0 0.0
  %429 = vmatpush1.msra.mxu0 0.0
  %430 = vmatprep.subr.mxu0 0.0
  %431 = vmatpush1.msra.mxu0 0.0
  %432 = vmatprep.subr.mxu0 0.0
  %433 = vmatpush1.msra.mxu0 0.0
  %434 = vmatprep.subr.mxu0 0.0
  %435 = vmatpush1.msra.mxu0 0.0
  %436 = vmatprep.subr.mxu0 0.0
  %437 = vmatpush1.msra.mxu0 0.0
  %438 = vmatprep.subr.mxu0 0.0
  %439 = vmatpush1.msra.mxu0 0.0
  %440 = vmatprep.subr.mxu0 0.0
  %441 = vmatpush1.msra.mxu0 0.0
  %442 = vmatprep.subr.mxu0 0.0
  %443 = vmatpush1.msra.mxu0 0.0
  %444 = vmatprep.subr.mxu0 0.0
  %445 = vmatpush1.msra.mxu0 0.0
  %446 = vmatprep.subr.mxu0 0.0
  %447 = vmatpush1.msra.mxu0 0.0
  %448 = vmatprep.subr.mxu0 0.0
  %449 = vmatpush1.msra.mxu0 0.0
  %450 = vmatprep.subr.mxu0 0.0
  %451 = vmatpush1.msra.mxu0 0.0
  %452 = vmatprep.subr.mxu0 0.0
  %453 = vmatpush1.msra.mxu0 0.0
  %454 = vmatprep.subr.mxu0 0.0
  %455 = vmatpush1.msra.mxu0 0.0
  %456 = vmatprep.subr.mxu0 0.0
  %457 = vmatpush1.msra.mxu0 0.0
  %458 = vmatprep.subr.mxu0 0.0
  %459 = vmatpush1.msra.mxu0 0.0
  %460 = vmatprep.subr.mxu0 0.0
  %461 = vmatpush1.msra.mxu0 0.0
  %462 = vmatprep.subr.mxu0 0.0
  %463 = vmatpush1.msra.mxu0 0.0
  %464 = vmatprep.subr.mxu0 0.0
  %465 = vmatpush1.msra.mxu0 0.0
  %466 = vmatprep.subr.mxu0 0.0
  %467 = vmatpush1.msra.mxu0 0.0
  %468 = vmatprep.subr.mxu0 0.0
  %469 = vmatpush1.msra.mxu0 0.0
  %470 = vmatprep.subr.mxu0 0.0
  %471 = vmatpush1.msra.mxu0 0.0
  %472 = vmatprep.subr.mxu0 0.0
  %473 = vmatpush1.msra.mxu0 0.0
  %474 = vmatprep.subr.mxu0 0.0
  %475 = vmatpush1.msra.mxu0 0.0
  %476 = vmatprep.subr.mxu0 0.0
  %477 = vmatpush1.msra.mxu0 0.0
  %478 = vmatprep.subr.mxu0 0.0
  %479 = vmatpush1.msra.mxu0 0.0
  %480 = vmatprep.subr.mxu0 0.0
  %481 = vmatpush1.msra.mxu0 0.0
  %482 = vmatprep.subr.mxu0 0.0
  %483 = vmatpush1.msra.mxu0 0.0
  %484 = vmatprep.subr.mxu0 0.0
  %485 = vmatpush1.msra.mxu0 0.0
  %486 = vmatprep.subr.mxu0 0.0
  %487 = vmatpush1.msra.mxu0 0.0
  %488 = vmatprep.subr.mxu0 0.0
  %489 = vmatpush1.msra.mxu0 0.0
  %490 = vmatprep.mubr.f32.mxu0 0.0
  %491 = vmatmul.mubr.f32.gmra.mrb[0].mxu0 %v424
  %v492 = vpop.f32.mrb[0].mxu0
  %v493 = vadd.f32 0.0, %v492
  %v494 = vpop.f32.mrb[0].mxu0
  %495 = vdwg.mxu0
  %497 = vrot.lane.b32.xlu0 %v493, 32
  %v498 = vpop.permute.xlu0 %497
  %v500 = vsel %vm71, %v326, %v498
  %v501 = vld [vmem:[%s6] sm:$0xff]
  %v502 = vld [vmem:[%s6 + $0x8] sm:$0xff]
  %v503 = vld [vmem:[%s6 + $0x10] sm:$0xff]
  %v504 = vld [vmem:[%s6 + $0x18] sm:$0xff]
  %v505 = vld [vmem:[%s6 + $0x20] sm:$0xff]
  %v506 = vld [vmem:[%s6 + $0x28] sm:$0xff]
  %v507 = vld [vmem:[%s6 + $0x30] sm:$0xff]
  %v508 = vld [vmem:[%s6 + $0x38] sm:$0xff]
  %v509 = vadd.f32 %v65, %v66
  %v511 = vsel %vm89, %v500, 0
  %513 = vmatprep.subr.mxu0 0.0
  %514 = vmatpush1.msra.mxu0 %v501
  %515 = vmatprep.subr.mxu0 0.0
  %516 = vmatpush1.msra.mxu0 %v502
  %517 = vmatprep.subr.mxu0 0.0
  %518 = vmatpush1.msra.mxu0 %v503
  %519 = vmatprep.subr.mxu0 0.0
  %520 = vmatpush1.msra.mxu0 %v504
  %521 = vmatprep.subr.mxu0 0.0
  %522 = vmatpush1.msra.mxu0 %v505
  %523 = vmatprep.subr.mxu0 0.0
  %524 = vmatpush1.msra.mxu0 %v506
  %525 = vmatprep.subr.mxu0 0.0
  %526 = vmatpush1.msra.mxu0 %v507
  %527 = vmatprep.subr.mxu0 0.0
  %528 = vmatpush1.msra.mxu0 %v508
  %529 = vmatprep.subr.mxu0 0.0
  %530 = vmatpush1.msra.mxu0 0.0
  %531 = vmatprep.subr.mxu0 0.0
  %532 = vmatpush1.msra.mxu0 0.0
  %533 = vmatprep.subr.mxu0 0.0
  %534 = vmatpush1.msra.mxu0 0.0
  %535 = vmatprep.subr.mxu0 0.0
  %536 = vmatpush1.msra.mxu0 0.0
  %537 = vmatprep.subr.mxu0 0.0
  %538 = vmatpush1.msra.mxu0 0.0
  %539 = vmatprep.subr.mxu0 0.0
  %540 = vmatpush1.msra.mxu0 0.0
  %541 = vmatprep.subr.mxu0 0.0
  %542 = vmatpush1.msra.mxu0 0.0
  %543 = vmatprep.subr.mxu0 0.0
  %544 = vmatpush1.msra.mxu0 0.0
  %545 = vmatprep.subr.mxu0 0.0
  %546 = vmatpush1.msra.mxu0 0.0
  %547 = vmatprep.subr.mxu0 0.0
  %548 = vmatpush1.msra.mxu0 0.0
  %549 = vmatprep.subr.mxu0 0.0
  %550 = vmatpush1.msra.mxu0 0.0
  %551 = vmatprep.subr.mxu0 0.0
  %552 = vmatpush1.msra.mxu0 0.0
  %553 = vmatprep.subr.mxu0 0.0
  %554 = vmatpush1.msra.mxu0 0.0
  %555 = vmatprep.subr.mxu0 0.0
  %556 = vmatpush1.msra.mxu0 0.0
  %557 = vmatprep.subr.mxu0 0.0
  %558 = vmatpush1.msra.mxu0 0.0
  %559 = vmatprep.subr.mxu0 0.0
  %560 = vmatpush1.msra.mxu0 0.0
  %561 = vmatprep.subr.mxu0 0.0
  %562 = vmatpush1.msra.mxu0 0.0
  %563 = vmatprep.subr.mxu0 0.0
  %564 = vmatpush1.msra.mxu0 0.0
  %565 = vmatprep.subr.mxu0 0.0
  %566 = vmatpush1.msra.mxu0 0.0
  %567 = vmatprep.subr.mxu0 0.0
  %568 = vmatpush1.msra.mxu0 0.0
  %569 = vmatprep.subr.mxu0 0.0
  %570 = vmatpush1.msra.mxu0 0.0
  %571 = vmatprep.subr.mxu0 0.0
  %572 = vmatpush1.msra.mxu0 0.0
  %573 = vmatprep.subr.mxu0 0.0
  %574 = vmatpush1.msra.mxu0 0.0
  %575 = vmatprep.subr.mxu0 0.0
  %576 = vmatpush1.msra.mxu0 0.0
  %577 = vmatprep.mubr.f32.mxu0 0.0
  %578 = vmatmul.mubr.f32.gmra.mrb[0].mxu0 %v511
  %v579 = vpop.f32.mrb[0].mxu0
  %v580 = vadd.f32 %v509, %v579
  %v581 = vpop.f32.mrb[0].mxu0
  %582 = vdwg.mxu0
  %v583 = vld [vmem:[%s7] sm:$0x1]
  %v584 = vld [vmem:[%s8] sm:$0x1]
  %v585 = vsel %vm71, %v580, 0.0
  %586 = vadd.xlane.f32.xlu0 %v585
  %v587 = vpop.xlane.xlu0 %586
  %v588 = vrcp.pop 32.0
  %v589 = vmul.f32 %v587, %v588
  %v590 = vsub.f32 %v580, %v589
  %v591 = vmul.f32 %v590, %v590
  %v592 = vsel %vm71, %v591, 0.0
  %593 = vadd.xlane.f32.xlu0 %v592
  %v594 = vpop.xlane.xlu0 %593
  %v595 = vmul.f32 %v594, %v588
  %v596 = vadd.f32 %v595, 1e-06
  %v597 = vrsqrt.pop %v596
  %v598 = vmul.f32 %v590, %v597
  %v600 = vlaneseq
  %v601 = vshrl.u32 %v600, 7
  %v602 = vsub.s32 0, %v601
  %v603 = vrot.slane %v583, %v602
  %v605 = vmul.f32 %v598, %v603
  %v607 = vlaneseq
  %v608 = vshrl.u32 %v607, 7
  %v609 = vsub.s32 0, %v608
  %v610 = vrot.slane %v584, %v609
  %v612 = vadd.f32 %v605, %v610
  %v613 = vld [vmem:[%s9] sm:$0xff]
  %v614 = vld [vmem:[%s9 + $0x8] sm:$0xff]
  %v615 = vld [vmem:[%s9 + $0x10] sm:$0xff]
  %v616 = vld [vmem:[%s9 + $0x18] sm:$0xff]
  %v618 = vsel %vm71, %v612, 0
  %620 = vmatprep.subr.mxu0 0.0
  %621 = vmatpush1.msra.mxu0 %v613
  %622 = vmatprep.subr.mxu0 0.0
  %623 = vmatpush1.msra.mxu0 %v614
  %624 = vmatprep.subr.mxu0 0.0
  %625 = vmatpush1.msra.mxu0 %v615
  %626 = vmatprep.subr.mxu0 0.0
  %627 = vmatpush1.msra.mxu0 %v616
  %628 = vmatprep.subr.mxu0 0.0
  %629 = vmatpush1.msra.mxu0 0.0
  %630 = vmatprep.subr.mxu0 0.0
  %631 = vmatpush1.msra.mxu0 0.0
  %632 = vmatprep.subr.mxu0 0.0
  %633 = vmatpush1.msra.mxu0 0.0
  %634 = vmatprep.subr.mxu0 0.0
  %635 = vmatpush1.msra.mxu0 0.0
  %636 = vmatprep.subr.mxu0 0.0
  %637 = vmatpush1.msra.mxu0 0.0
  %638 = vmatprep.subr.mxu0 0.0
  %639 = vmatpush1.msra.mxu0 0.0
  %640 = vmatprep.subr.mxu0 0.0
  %641 = vmatpush1.msra.mxu0 0.0
  %642 = vmatprep.subr.mxu0 0.0
  %643 = vmatpush1.msra.mxu0 0.0
  %644 = vmatprep.subr.mxu0 0.0
  %645 = vmatpush1.msra.mxu0 0.0
  %646 = vmatprep.subr.mxu0 0.0
  %647 = vmatpush1.msra.mxu0 0.0
  %648 = vmatprep.subr.mxu0 0.0
  %649 = vmatpush1.msra.mxu0 0.0
  %650 = vmatprep.subr.mxu0 0.0
  %651 = vmatpush1.msra.mxu0 0.0
  %652 = vmatprep.subr.mxu0 0.0
  %653 = vmatpush1.msra.mxu0 0.0
  %654 = vmatprep.subr.mxu0 0.0
  %655 = vmatpush1.msra.mxu0 0.0
  %656 = vmatprep.subr.mxu0 0.0
  %657 = vmatpush1.msra.mxu0 0.0
  %658 = vmatprep.subr.mxu0 0.0
  %659 = vmatpush1.msra.mxu0 0.0
  %660 = vmatprep.subr.mxu0 0.0
  %661 = vmatpush1.msra.mxu0 0.0
  %662 = vmatprep.subr.mxu0 0.0
  %663 = vmatpush1.msra.mxu0 0.0
  %664 = vmatprep.subr.mxu0 0.0
  %665 = vmatpush1.msra.mxu0 0.0
  %666 = vmatprep.subr.mxu0 0.0
  %667 = vmatpush1.msra.mxu0 0.0
  %668 = vmatprep.subr.mxu0 0.0
  %669 = vmatpush1.msra.mxu0 0.0
  %670 = vmatprep.subr.mxu0 0.0
  %671 = vmatpush1.msra.mxu0 0.0
  %672 = vmatprep.subr.mxu0 0.0
  %673 = vmatpush1.msra.mxu0 0.0
  %674 = vmatprep.subr.mxu0 0.0
  %675 = vmatpush1.msra.mxu0 0.0
  %676 = vmatprep.subr.mxu0 0.0
  %677 = vmatpush1.msra.mxu0 0.0
  %678 = vmatprep.subr.mxu0 0.0
  %679 = vmatpush1.msra.mxu0 0.0
  %680 = vmatprep.subr.mxu0 0.0
  %681 = vmatpush1.msra.mxu0 0.0
  %682 = vmatprep.subr.mxu0 0.0
  %683 = vmatpush1.msra.mxu0 0.0
  %684 = vmatprep.mubr.f32.mxu0 0.0
  %685 = vmatmul.mubr.f32.gmra.mrb[0].mxu0 %v618
  %v686 = vpop.f32.mrb[0].mxu0
  %v687 = vadd.f32 0.0, %v686
  %v688 = vpop.f32.mrb[0].mxu0
  %689 = vdwg.mxu0
  %v690 = vld [vmem:[%s2] sm:$0xf]
  %v691 = vld [vmem:[%s10] sm:$0xff]
  %v692 = vld [vmem:[%s10 + $0x8] sm:$0xff]
  %v693 = vld [vmem:[%s10 + $0x10] sm:$0xff]
  %v694 = vld [vmem:[%s10 + $0x18] sm:$0xff]
  %v696 = vsel %vm71, %v690, 0
  %698 = vmatprep.subr.mxu0 0.0
  %699 = vmatpush1.msra.mxu0 %v691
  %700 = vmatprep.subr.mxu0 0.0
  %701 = vmatpush1.msra.mxu0 %v692
  %702 = vmatprep.subr.mxu0 0.0
  %703 = vmatpush1.msra.mxu0 %v693
  %704 = vmatprep.subr.mxu0 0.0
  %705 = vmatpush1.msra.mxu0 %v694
  %706 = vmatprep.subr.mxu0 0.0
  %707 = vmatpush1.msra.mxu0 0.0
  %708 = vmatprep.subr.mxu0 0.0
  %709 = vmatpush1.msra.mxu0 0.0
  %710 = vmatprep.subr.mxu0 0.0
  %711 = vmatpush1.msra.mxu0 0.0
  %712 = vmatprep.subr.mxu0 0.0
  %713 = vmatpush1.msra.mxu0 0.0
  %714 = vmatprep.subr.mxu0 0.0
  %715 = vmatpush1.msra.mxu0 0.0
  %716 = vmatprep.subr.mxu0 0.0
  %717 = vmatpush1.msra.mxu0 0.0
  %718 = vmatprep.subr.mxu0 0.0
  %719 = vmatpush1.msra.mxu0 0.0
  %720 = vmatprep.subr.mxu0 0.0
  %721 = vmatpush1.msra.mxu0 0.0
  %722 = vmatprep.subr.mxu0 0.0
  %723 = vmatpush1.msra.mxu0 0.0
  %724 = vmatprep.subr.mxu0 0.0
  %725 = vmatpush1.msra.mxu0 0.0
  %726 = vmatprep.subr.mxu0 0.0
  %727 = vmatpush1.msra.mxu0 0.0
  %728 = vmatprep.subr.mxu0 0.0
  %729 = vmatpush1.msra.mxu0 0.0
  %730 = vmatprep.subr.mxu0 0.0
  %731 = vmatpush1.msra.mxu0 0.0
  %732 = vmatprep.subr.mxu0 0.0
  %733 = vmatpush1.msra.mxu0 0.0
  %734 = vmatprep.subr.mxu0 0.0
  %735 = vmatpush1.msra.mxu0 0.0
  %736 = vmatprep.subr.mxu0 0.0
  %737 = vmatpush1.msra.mxu0 0.0
  %738 = vmatprep.subr.mxu0 0.0
  %739 = vmatpush1.msra.mxu0 0.0
  %740 = vmatprep.subr.mxu0 0.0
  %741 = vmatpush1.msra.mxu0 0.0
  %742 = vmatprep.subr.mxu0 0.0
  %743 = vmatpush1.msra.mxu0 0.0
  %744 = vmatprep.subr.mxu0 0.0
  %745 = vmatpush1.msra.mxu0 0.0
  %746 = vmatprep.subr.mxu0 0.0
  %747 = vmatpush1.msra.mxu0 0.0
  %748 = vmatprep.subr.mxu0 0.0
  %749 = vmatpush1.msra.mxu0 0.0
  %750 = vmatprep.subr.mxu0 0.0
  %751 = vmatpush1.msra.mxu0 0.0
  %752 = vmatprep.subr.mxu0 0.0
  %753 = vmatpush1.msra.mxu0 0.0
  %754 = vmatprep.subr.mxu0 0.0
  %755 = vmatpush1.msra.mxu0 0.0
  %756 = vmatprep.subr.mxu0 0.0
  %757 = vmatpush1.msra.mxu0 0.0
  %758 = vmatprep.subr.mxu0 0.0
  %759 = vmatpush1.msra.mxu0 0.0
  %760 = vmatprep.subr.mxu0 0.0
  %761 = vmatpush1.msra.mxu0 0.0
  %762 = vmatprep.mubr.f32.mxu0 0.0
  %763 = vmatmul.mubr.f32.gmra.mrb[0].mxu0 %v696
  %v764 = vpop.f32.mrb[0].mxu0
  %v765 = vadd.f32 0.0, %v764
  %v766 = vpop.f32.mrb[0].mxu0
  %767 = vdwg.mxu0
  %v768 = vld [vmem:[%s4] sm:$0xff]
  %v770 = vsel %vm71, %v687, 0
  %v773 = vsel %vm71, %v765, 0
  %775 = vmatprep.subr.mxu0 0.0
  %776 = vmatpush1.xpose.msra.mxu0 %v773
  %777 = vmatprep.subr.mxu0 0.0
  %778 = vmatpush1.xpose.msra.mxu0 0.0
  %779 = vmatprep.subr.mxu0 0.0
  %780 = vmatpush1.xpose.msra.mxu0 0.0
  %781 = vmatprep.subr.mxu0 0.0
  %782 = vmatpush1.xpose.msra.mxu0 0.0
  %783 = vmatprep.subr.mxu0 0.0
  %784 = vmatpush1.xpose.msra.mxu0 0.0
  %785 = vmatprep.subr.mxu0 0.0
  %786 = vmatpush1.xpose.msra.mxu0 0.0
  %787 = vmatprep.subr.mxu0 0.0
  %788 = vmatpush1.xpose.msra.mxu0 0.0
  %789 = vmatprep.subr.mxu0 0.0
  %790 = vmatpush1.xpose.msra.mxu0 0.0
  %791 = vmatprep.subr.mxu0 0.0
  %792 = vmatpush1.xpose.msra.mxu0 0.0
  %793 = vmatprep.subr.mxu0 0.0
  %794 = vmatpush1.xpose.msra.mxu0 0.0
  %795 = vmatprep.subr.mxu0 0.0
  %796 = vmatpush1.xpose.msra.mxu0 0.0
  %797 = vmatprep.subr.mxu0 0.0
  %798 = vmatpush1.xpose.msra.mxu0 0.0
  %799 = vmatprep.subr.mxu0 0.0
  %800 = vmatpush1.xpose.msra.mxu0 0.0
  %801 = vmatprep.subr.mxu0 0.0
  %802 = vmatpush1.xpose.msra.mxu0 0.0
  %803 = vmatprep.subr.mxu0 0.0
  %804 = vmatpush1.xpose.msra.mxu0 0.0
  %805 = vmatprep.subr.mxu0 0.0
  %806 = vmatpush1.xpose.msra.mxu0 0.0
  %807 = vmatprep.subr.mxu0 0.0
  %808 = vmatpush1.xpose.msra.mxu0 0.0
  %809 = vmatprep.subr.mxu0 0.0
  %810 = vmatpush1.xpose.msra.mxu0 0.0
  %811 = vmatprep.subr.mxu0 0.0
  %812 = vmatpush1.xpose.msra.mxu0 0.0
  %813 = vmatprep.subr.mxu0 0.0
  %814 = vmatpush1.xpose.msra.mxu0 0.0
  %815 = vmatprep.subr.mxu0 0.0
  %816 = vmatpush1.xpose.msra.mxu0 0.0
  %817 = vmatprep.subr.mxu0 0.0
  %818 = vmatpush1.xpose.msra.mxu0 0.0
  %819 = vmatprep.subr.mxu0 0.0
  %820 = vmatpush1.xpose.msra.mxu0 0.0
  %821 = vmatprep.subr.mxu0 0.0
  %822 = vmatpush1.xpose.msra.mxu0 0.0
  %823 = vmatprep.subr.mxu0 0.0
  %824 = vmatpush1.xpose.msra.mxu0 0.0
  %825 = vmatprep.subr.mxu0 0.0
  %826 = vmatpush1.xpose.msra.mxu0 0.0
  %827 = vmatprep.subr.mxu0 0.0
  %828 = vmatpush1.xpose.msra.mxu0 0.0
  %829 = vmatprep.subr.mxu0 0.0
  %830 = vmatpush1.xpose.msra.mxu0 0.0
  %831 = vmatprep.subr.mxu0 0.0
  %832 = vmatpush1.xpose.msra.mxu0 0.0
  %833 = vmatprep.subr.mxu0 0.0
  %834 = vmatpush1.xpose.msra.mxu0 0.0
  %835 = vmatprep.subr.mxu0 0.0
  %836 = vmatpush1.xpose.msra.mxu0 0.0
  %837 = vmatprep.subr.mxu0 0.0
  %838 = vmatpush1.xpose.msra.mxu0 0.0
  %839 = vmatprep.mubr.f32.mxu0 0.0
  %840 = vmatmul.mubr.f32.gmra.mrb[0].mxu0 %v770
  %v841 = vpop.f32.mrb[0].mxu0
  %v842 = vadd.f32 0.0, %v841
  %v843 = vpop.f32.mrb[0].mxu0
  %844 = vdwg.mxu0
  %vm845 = vcmp.gt.f32.partialorder %v768, 0.5
  %v846 = vsel %vm845, %v842, -1e+09
  %vm847 = vcmask 31744
  %v848 = vsel %vm847, %v846, -inf
  %849 = vmax.xlane.f32.xlu0 %v848
  %v850 = vpop.xlane.xlu0 %849
  %v851 = vsub.f32 %v846, %v850
  %v852 = vmul.f32 %v851, 1.442695
  %v853 = vpow.pop %v852
  %v854 = vsel %vm847, %v853, 0.0
  %855 = vadd.xlane.f32.xlu0 %v854
  %v856 = vpop.xlane.xlu0 %855
  %v857 = vrcp.pop %v856
  %v858 = vmul.f32 %v853, %v857
  %859 = vrot.lane.b32.xlu0 %v765, 64
  %v860 = vpop.permute.xlu0 %859
  %v862 = vsel %vm847, %v858, 0
  %vm864 = vcmask 1043456
  %v865 = vsel %vm864, %v860, 0
  %867 = vmatprep.subr.mxu0 0.0
  %868 = vmatpush1.msra.mxu0 %v865
  %869 = vmatprep.subr.mxu0 0.0
  %870 = vmatpush1.msra.mxu0 0.0
  %871 = vmatprep.subr.mxu0 0.0
  %872 = vmatpush1.msra.mxu0 0.0
  %873 = vmatprep.subr.mxu0 0.0
  %874 = vmatpush1.msra.mxu0 0.0
  %875 = vmatprep.subr.mxu0 0.0
  %876 = vmatpush1.msra.mxu0 0.0
  %877 = vmatprep.subr.mxu0 0.0
  %878 = vmatpush1.msra.mxu0 0.0
  %879 = vmatprep.subr.mxu0 0.0
  %880 = vmatpush1.msra.mxu0 0.0
  %881 = vmatprep.subr.mxu0 0.0
  %882 = vmatpush1.msra.mxu0 0.0
  %883 = vmatprep.subr.mxu0 0.0
  %884 = vmatpush1.msra.mxu0 0.0
  %885 = vmatprep.subr.mxu0 0.0
  %886 = vmatpush1.msra.mxu0 0.0
  %887 = vmatprep.subr.mxu0 0.0
  %888 = vmatpush1.msra.mxu0 0.0
  %889 = vmatprep.subr.mxu0 0.0
  %890 = vmatpush1.msra.mxu0 0.0
  %891 = vmatprep.subr.mxu0 0.0
  %892 = vmatpush1.msra.mxu0 0.0
  %893 = vmatprep.subr.mxu0 0.0
  %894 = vmatpush1.msra.mxu0 0.0
  %895 = vmatprep.subr.mxu0 0.0
  %896 = vmatpush1.msra.mxu0 0.0
  %897 = vmatprep.subr.mxu0 0.0
  %898 = vmatpush1.msra.mxu0 0.0
  %899 = vmatprep.subr.mxu0 0.0
  %900 = vmatpush1.msra.mxu0 0.0
  %901 = vmatprep.subr.mxu0 0.0
  %902 = vmatpush1.msra.mxu0 0.0
  %903 = vmatprep.subr.mxu0 0.0
  %904 = vmatpush1.msra.mxu0 0.0
  %905 = vmatprep.subr.mxu0 0.0
  %906 = vmatpush1.msra.mxu0 0.0
  %907 = vmatprep.subr.mxu0 0.0
  %908 = vmatpush1.msra.mxu0 0.0
  %909 = vmatprep.subr.mxu0 0.0
  %910 = vmatpush1.msra.mxu0 0.0
  %911 = vmatprep.subr.mxu0 0.0
  %912 = vmatpush1.msra.mxu0 0.0
  %913 = vmatprep.subr.mxu0 0.0
  %914 = vmatpush1.msra.mxu0 0.0
  %915 = vmatprep.subr.mxu0 0.0
  %916 = vmatpush1.msra.mxu0 0.0
  %917 = vmatprep.subr.mxu0 0.0
  %918 = vmatpush1.msra.mxu0 0.0
  %919 = vmatprep.subr.mxu0 0.0
  %920 = vmatpush1.msra.mxu0 0.0
  %921 = vmatprep.subr.mxu0 0.0
  %922 = vmatpush1.msra.mxu0 0.0
  %923 = vmatprep.subr.mxu0 0.0
  %924 = vmatpush1.msra.mxu0 0.0
  %925 = vmatprep.subr.mxu0 0.0
  %926 = vmatpush1.msra.mxu0 0.0
  %927 = vmatprep.subr.mxu0 0.0
  %928 = vmatpush1.msra.mxu0 0.0
  %929 = vmatprep.subr.mxu0 0.0
  %930 = vmatpush1.msra.mxu0 0.0
  %931 = vmatprep.mubr.f32.mxu0 0.0
  %932 = vmatmul.mubr.f32.gmra.mrb[0].mxu0 %v862
  %v933 = vpop.f32.mrb[0].mxu0
  %v934 = vadd.f32 0.0, %v933
  %v935 = vpop.f32.mrb[0].mxu0
  %936 = vdwg.mxu0
  %937 = vrot.lane.b32.xlu0 %v687, 96
  %v938 = vpop.permute.xlu0 %937
  %939 = vrot.lane.b32.xlu0 %v765, 96
  %v940 = vpop.permute.xlu0 %939
  %v941 = vsel %vm71, %v938, 0
  %v943 = vsel %vm71, %v940, 0
  %945 = vmatprep.subr.mxu0 0.0
  %946 = vmatpush1.xpose.msra.mxu0 %v943
  %947 = vmatprep.subr.mxu0 0.0
  %948 = vmatpush1.xpose.msra.mxu0 0.0
  %949 = vmatprep.subr.mxu0 0.0
  %950 = vmatpush1.xpose.msra.mxu0 0.0
  %951 = vmatprep.subr.mxu0 0.0
  %952 = vmatpush1.xpose.msra.mxu0 0.0
  %953 = vmatprep.subr.mxu0 0.0
  %954 = vmatpush1.xpose.msra.mxu0 0.0
  %955 = vmatprep.subr.mxu0 0.0
  %956 = vmatpush1.xpose.msra.mxu0 0.0
  %957 = vmatprep.subr.mxu0 0.0
  %958 = vmatpush1.xpose.msra.mxu0 0.0
  %959 = vmatprep.subr.mxu0 0.0
  %960 = vmatpush1.xpose.msra.mxu0 0.0
  %961 = vmatprep.subr.mxu0 0.0
  %962 = vmatpush1.xpose.msra.mxu0 0.0
  %963 = vmatprep.subr.mxu0 0.0
  %964 = vmatpush1.xpose.msra.mxu0 0.0
  %965 = vmatprep.subr.mxu0 0.0
  %966 = vmatpush1.xpose.msra.mxu0 0.0
  %967 = vmatprep.subr.mxu0 0.0
  %968 = vmatpush1.xpose.msra.mxu0 0.0
  %969 = vmatprep.subr.mxu0 0.0
  %970 = vmatpush1.xpose.msra.mxu0 0.0
  %971 = vmatprep.subr.mxu0 0.0
  %972 = vmatpush1.xpose.msra.mxu0 0.0
  %973 = vmatprep.subr.mxu0 0.0
  %974 = vmatpush1.xpose.msra.mxu0 0.0
  %975 = vmatprep.subr.mxu0 0.0
  %976 = vmatpush1.xpose.msra.mxu0 0.0
  %977 = vmatprep.subr.mxu0 0.0
  %978 = vmatpush1.xpose.msra.mxu0 0.0
  %979 = vmatprep.subr.mxu0 0.0
  %980 = vmatpush1.xpose.msra.mxu0 0.0
  %981 = vmatprep.subr.mxu0 0.0
  %982 = vmatpush1.xpose.msra.mxu0 0.0
  %983 = vmatprep.subr.mxu0 0.0
  %984 = vmatpush1.xpose.msra.mxu0 0.0
  %985 = vmatprep.subr.mxu0 0.0
  %986 = vmatpush1.xpose.msra.mxu0 0.0
  %987 = vmatprep.subr.mxu0 0.0
  %988 = vmatpush1.xpose.msra.mxu0 0.0
  %989 = vmatprep.subr.mxu0 0.0
  %990 = vmatpush1.xpose.msra.mxu0 0.0
  %991 = vmatprep.subr.mxu0 0.0
  %992 = vmatpush1.xpose.msra.mxu0 0.0
  %993 = vmatprep.subr.mxu0 0.0
  %994 = vmatpush1.xpose.msra.mxu0 0.0
  %995 = vmatprep.subr.mxu0 0.0
  %996 = vmatpush1.xpose.msra.mxu0 0.0
  %997 = vmatprep.subr.mxu0 0.0
  %998 = vmatpush1.xpose.msra.mxu0 0.0
  %999 = vmatprep.subr.mxu0 0.0
  %1000 = vmatpush1.xpose.msra.mxu0 0.0
  %1001 = vmatprep.subr.mxu0 0.0
  %1002 = vmatpush1.xpose.msra.mxu0 0.0
  %1003 = vmatprep.subr.mxu0 0.0
  %1004 = vmatpush1.xpose.msra.mxu0 0.0
  %1005 = vmatprep.subr.mxu0 0.0
  %1006 = vmatpush1.xpose.msra.mxu0 0.0
  %1007 = vmatprep.subr.mxu0 0.0
  %1008 = vmatpush1.xpose.msra.mxu0 0.0
  %1009 = vmatprep.mubr.f32.mxu0 0.0
  %1010 = vmatmul.mubr.f32.gmra.mrb[0].mxu0 %v941
  %v1011 = vpop.f32.mrb[0].mxu0
  %v1012 = vadd.f32 0.0, %v1011
  %v1013 = vpop.f32.mrb[0].mxu0
  %1014 = vdwg.mxu0
  %v1015 = vsel %vm845, %v1012, -1e+09
  %v1016 = vsel %vm847, %v1015, -inf
  %1017 = vmax.xlane.f32.xlu0 %v1016
  %v1018 = vpop.xlane.xlu0 %1017
  %v1019 = vsub.f32 %v1015, %v1018
  %v1020 = vmul.f32 %v1019, 1.442695
  %v1021 = vpow.pop %v1020
  %v1022 = vsel %vm847, %v1021, 0.0
  %1023 = vadd.xlane.f32.xlu0 %v1022
  %v1024 = vpop.xlane.xlu0 %1023
  %v1025 = vrcp.pop %v1024
  %v1026 = vmul.f32 %v1021, %v1025
  %1027 = vrot.lane.b32.xlu0 %v765, 32
  %v1028 = vpop.permute.xlu0 %1027
  %v1030 = vsel %vm847, %v1026, 0
  %v1032 = vsel %vm864, %v1028, 0
  %1034 = vmatprep.subr.mxu0 0.0
  %1035 = vmatpush1.msra.mxu0 %v1032
  %1036 = vmatprep.subr.mxu0 0.0
  %1037 = vmatpush1.msra.mxu0 0.0
  %1038 = vmatprep.subr.mxu0 0.0
  %1039 = vmatpush1.msra.mxu0 0.0
  %1040 = vmatprep.subr.mxu0 0.0
  %1041 = vmatpush1.msra.mxu0 0.0
  %1042 = vmatprep.subr.mxu0 0.0
  %1043 = vmatpush1.msra.mxu0 0.0
  %1044 = vmatprep.subr.mxu0 0.0
  %1045 = vmatpush1.msra.mxu0 0.0
  %1046 = vmatprep.subr.mxu0 0.0
  %1047 = vmatpush1.msra.mxu0 0.0
  %1048 = vmatprep.subr.mxu0 0.0
  %1049 = vmatpush1.msra.mxu0 0.0
  %1050 = vmatprep.subr.mxu0 0.0
  %1051 = vmatpush1.msra.mxu0 0.0
  %1052 = vmatprep.subr.mxu0 0.0
  %1053 = vmatpush1.msra.mxu0 0.0
  %1054 = vmatprep.subr.mxu0 0.0
  %1055 = vmatpush1.msra.mxu0 0.0
  %1056 = vmatprep.subr.mxu0 0.0
  %1057 = vmatpush1.msra.mxu0 0.0
  %1058 = vmatprep.subr.mxu0 0.0
  %1059 = vmatpush1.msra.mxu0 0.0
  %1060 = vmatprep.subr.mxu0 0.0
  %1061 = vmatpush1.msra.mxu0 0.0
  %1062 = vmatprep.subr.mxu0 0.0
  %1063 = vmatpush1.msra.mxu0 0.0
  %1064 = vmatprep.subr.mxu0 0.0
  %1065 = vmatpush1.msra.mxu0 0.0
  %1066 = vmatprep.subr.mxu0 0.0
  %1067 = vmatpush1.msra.mxu0 0.0
  %1068 = vmatprep.subr.mxu0 0.0
  %1069 = vmatpush1.msra.mxu0 0.0
  %1070 = vmatprep.subr.mxu0 0.0
  %1071 = vmatpush1.msra.mxu0 0.0
  %1072 = vmatprep.subr.mxu0 0.0
  %1073 = vmatpush1.msra.mxu0 0.0
  %1074 = vmatprep.subr.mxu0 0.0
  %1075 = vmatpush1.msra.mxu0 0.0
  %1076 = vmatprep.subr.mxu0 0.0
  %1077 = vmatpush1.msra.mxu0 0.0
  %1078 = vmatprep.subr.mxu0 0.0
  %1079 = vmatpush1.msra.mxu0 0.0
  %1080 = vmatprep.subr.mxu0 0.0
  %1081 = vmatpush1.msra.mxu0 0.0
  %1082 = vmatprep.subr.mxu0 0.0
  %1083 = vmatpush1.msra.mxu0 0.0
  %1084 = vmatprep.subr.mxu0 0.0
  %1085 = vmatpush1.msra.mxu0 0.0
  %1086 = vmatprep.subr.mxu0 0.0
  %1087 = vmatpush1.msra.mxu0 0.0
  %1088 = vmatprep.subr.mxu0 0.0
  %1089 = vmatpush1.msra.mxu0 0.0
  %1090 = vmatprep.subr.mxu0 0.0
  %1091 = vmatpush1.msra.mxu0 0.0
  %1092 = vmatprep.subr.mxu0 0.0
  %1093 = vmatpush1.msra.mxu0 0.0
  %1094 = vmatprep.subr.mxu0 0.0
  %1095 = vmatpush1.msra.mxu0 0.0
  %1096 = vmatprep.subr.mxu0 0.0
  %1097 = vmatpush1.msra.mxu0 0.0
  %1098 = vmatprep.mubr.f32.mxu0 0.0
  %1099 = vmatmul.mubr.f32.gmra.mrb[0].mxu0 %v1030
  %v1100 = vpop.f32.mrb[0].mxu0
  %v1101 = vadd.f32 0.0, %v1100
  %v1102 = vpop.f32.mrb[0].mxu0
  %1103 = vdwg.mxu0
  %1105 = vrot.lane.b32.xlu0 %v1101, 32
  %v1106 = vpop.permute.xlu0 %1105
  %v1108 = vsel %vm71, %v934, %v1106
  %v1109 = vld [vmem:[%s11] sm:$0xff]
  %v1110 = vld [vmem:[%s11 + $0x8] sm:$0xff]
  %v1111 = vld [vmem:[%s11 + $0x10] sm:$0xff]
  %v1112 = vld [vmem:[%s11 + $0x18] sm:$0xff]
  %v1113 = vld [vmem:[%s11 + $0x20] sm:$0xff]
  %v1114 = vld [vmem:[%s11 + $0x28] sm:$0xff]
  %v1115 = vld [vmem:[%s11 + $0x30] sm:$0xff]
  %v1116 = vld [vmem:[%s11 + $0x38] sm:$0xff]
  %v1118 = vsel %vm89, %v1108, 0
  %1120 = vmatprep.subr.mxu0 0.0
  %1121 = vmatpush1.msra.mxu0 %v1109
  %1122 = vmatprep.subr.mxu0 0.0
  %1123 = vmatpush1.msra.mxu0 %v1110
  %1124 = vmatprep.subr.mxu0 0.0
  %1125 = vmatpush1.msra.mxu0 %v1111
  %1126 = vmatprep.subr.mxu0 0.0
  %1127 = vmatpush1.msra.mxu0 %v1112
  %1128 = vmatprep.subr.mxu0 0.0
  %1129 = vmatpush1.msra.mxu0 %v1113
  %1130 = vmatprep.subr.mxu0 0.0
  %1131 = vmatpush1.msra.mxu0 %v1114
  %1132 = vmatprep.subr.mxu0 0.0
  %1133 = vmatpush1.msra.mxu0 %v1115
  %1134 = vmatprep.subr.mxu0 0.0
  %1135 = vmatpush1.msra.mxu0 %v1116
  %1136 = vmatprep.subr.mxu0 0.0
  %1137 = vmatpush1.msra.mxu0 0.0
  %1138 = vmatprep.subr.mxu0 0.0
  %1139 = vmatpush1.msra.mxu0 0.0
  %1140 = vmatprep.subr.mxu0 0.0
  %1141 = vmatpush1.msra.mxu0 0.0
  %1142 = vmatprep.subr.mxu0 0.0
  %1143 = vmatpush1.msra.mxu0 0.0
  %1144 = vmatprep.subr.mxu0 0.0
  %1145 = vmatpush1.msra.mxu0 0.0
  %1146 = vmatprep.subr.mxu0 0.0
  %1147 = vmatpush1.msra.mxu0 0.0
  %1148 = vmatprep.subr.mxu0 0.0
  %1149 = vmatpush1.msra.mxu0 0.0
  %1150 = vmatprep.subr.mxu0 0.0
  %1151 = vmatpush1.msra.mxu0 0.0
  %1152 = vmatprep.subr.mxu0 0.0
  %1153 = vmatpush1.msra.mxu0 0.0
  %1154 = vmatprep.subr.mxu0 0.0
  %1155 = vmatpush1.msra.mxu0 0.0
  %1156 = vmatprep.subr.mxu0 0.0
  %1157 = vmatpush1.msra.mxu0 0.0
  %1158 = vmatprep.subr.mxu0 0.0
  %1159 = vmatpush1.msra.mxu0 0.0
  %1160 = vmatprep.subr.mxu0 0.0
  %1161 = vmatpush1.msra.mxu0 0.0
  %1162 = vmatprep.subr.mxu0 0.0
  %1163 = vmatpush1.msra.mxu0 0.0
  %1164 = vmatprep.subr.mxu0 0.0
  %1165 = vmatpush1.msra.mxu0 0.0
  %1166 = vmatprep.subr.mxu0 0.0
  %1167 = vmatpush1.msra.mxu0 0.0
  %1168 = vmatprep.subr.mxu0 0.0
  %1169 = vmatpush1.msra.mxu0 0.0
  %1170 = vmatprep.subr.mxu0 0.0
  %1171 = vmatpush1.msra.mxu0 0.0
  %1172 = vmatprep.subr.mxu0 0.0
  %1173 = vmatpush1.msra.mxu0 0.0
  %1174 = vmatprep.subr.mxu0 0.0
  %1175 = vmatpush1.msra.mxu0 0.0
  %1176 = vmatprep.subr.mxu0 0.0
  %1177 = vmatpush1.msra.mxu0 0.0
  %1178 = vmatprep.subr.mxu0 0.0
  %1179 = vmatpush1.msra.mxu0 0.0
  %1180 = vmatprep.subr.mxu0 0.0
  %1181 = vmatpush1.msra.mxu0 0.0
  %1182 = vmatprep.subr.mxu0 0.0
  %1183 = vmatpush1.msra.mxu0 0.0
  %1184 = vmatprep.mubr.f32.mxu0 0.0
  %1185 = vmatmul.mubr.f32.gmra.mrb[0].mxu0 %v1118
  %v1186 = vpop.f32.mrb[0].mxu0
  %v1187 = vadd.f32 %v612, %v1186
  %v1188 = vpop.f32.mrb[0].mxu0
  %1189 = vdwg.mxu0
  %v1190 = vld [vmem:[%s12] sm:$0x1]
  %v1191 = vld [vmem:[%s13] sm:$0x1]
  %v1192 = vsel %vm71, %v1187, 0.0
  %1193 = vadd.xlane.f32.xlu0 %v1192
  %v1194 = vpop.xlane.xlu0 %1193
  %v1195 = vmul.f32 %v1194, %v588
  %v1196 = vsub.f32 %v1187, %v1195
  %v1197 = vmul.f32 %v1196, %v1196
  %v1198 = vsel %vm71, %v1197, 0.0
  %1199 = vadd.xlane.f32.xlu0 %v1198
  %v1200 = vpop.xlane.xlu0 %1199
  %v1201 = vmul.f32 %v1200, %v588
  %v1202 = vadd.f32 %v1201, 1e-06
  %v1203 = vrsqrt.pop %v1202
  %v1204 = vmul.f32 %v1196, %v1203
  %v1206 = vlaneseq
  %v1207 = vshrl.u32 %v1206, 7
  %v1208 = vsub.s32 0, %v1207
  %v1209 = vrot.slane %v1190, %v1208
  %v1211 = vmul.f32 %v1204, %v1209
  %v1213 = vlaneseq
  %v1214 = vshrl.u32 %v1213, 7
  %v1215 = vsub.s32 0, %v1214
  %v1216 = vrot.slane %v1191, %v1215
  %v1218 = vadd.f32 %v1211, %v1216
  %v1219 = vld [vmem:[%s14] sm:$0xff]
  %v1220 = vld [vmem:[%s14 + $0x8] sm:$0xff]
  %v1221 = vld [vmem:[%s14 + $0x10] sm:$0xff]
  %v1222 = vld [vmem:[%s14 + $0x18] sm:$0xff]
  %v1223 = vld [vmem:[%s15] sm:$0x1]
  %v1225 = vlaneseq
  %v1226 = vshrl.u32 %v1225, 7
  %v1227 = vsub.s32 0, %v1226
  %v1228 = vrot.slane %v1223, %v1227
  %v1231 = vsel %vm71, %v1218, 0
  %1233 = vmatprep.subr.mxu0 0.0
  %1234 = vmatpush1.msra.mxu0 %v1219
  %1235 = vmatprep.subr.mxu0 0.0
  %1236 = vmatpush1.msra.mxu0 %v1220
  %1237 = vmatprep.subr.mxu0 0.0
  %1238 = vmatpush1.msra.mxu0 %v1221
  %1239 = vmatprep.subr.mxu0 0.0
  %1240 = vmatpush1.msra.mxu0 %v1222
  %1241 = vmatprep.subr.mxu0 0.0
  %1242 = vmatpush1.msra.mxu0 0.0
  %1243 = vmatprep.subr.mxu0 0.0
  %1244 = vmatpush1.msra.mxu0 0.0
  %1245 = vmatprep.subr.mxu0 0.0
  %1246 = vmatpush1.msra.mxu0 0.0
  %1247 = vmatprep.subr.mxu0 0.0
  %1248 = vmatpush1.msra.mxu0 0.0
  %1249 = vmatprep.subr.mxu0 0.0
  %1250 = vmatpush1.msra.mxu0 0.0
  %1251 = vmatprep.subr.mxu0 0.0
  %1252 = vmatpush1.msra.mxu0 0.0
  %1253 = vmatprep.subr.mxu0 0.0
  %1254 = vmatpush1.msra.mxu0 0.0
  %1255 = vmatprep.subr.mxu0 0.0
  %1256 = vmatpush1.msra.mxu0 0.0
  %1257 = vmatprep.subr.mxu0 0.0
  %1258 = vmatpush1.msra.mxu0 0.0
  %1259 = vmatprep.subr.mxu0 0.0
  %1260 = vmatpush1.msra.mxu0 0.0
  %1261 = vmatprep.subr.mxu0 0.0
  %1262 = vmatpush1.msra.mxu0 0.0
  %1263 = vmatprep.subr.mxu0 0.0
  %1264 = vmatpush1.msra.mxu0 0.0
  %1265 = vmatprep.subr.mxu0 0.0
  %1266 = vmatpush1.msra.mxu0 0.0
  %1267 = vmatprep.subr.mxu0 0.0
  %1268 = vmatpush1.msra.mxu0 0.0
  %1269 = vmatprep.subr.mxu0 0.0
  %1270 = vmatpush1.msra.mxu0 0.0
  %1271 = vmatprep.subr.mxu0 0.0
  %1272 = vmatpush1.msra.mxu0 0.0
  %1273 = vmatprep.subr.mxu0 0.0
  %1274 = vmatpush1.msra.mxu0 0.0
  %1275 = vmatprep.subr.mxu0 0.0
  %1276 = vmatpush1.msra.mxu0 0.0
  %1277 = vmatprep.subr.mxu0 0.0
  %1278 = vmatpush1.msra.mxu0 0.0
  %1279 = vmatprep.subr.mxu0 0.0
  %1280 = vmatpush1.msra.mxu0 0.0
  %1281 = vmatprep.subr.mxu0 0.0
  %1282 = vmatpush1.msra.mxu0 0.0
  %1283 = vmatprep.subr.mxu0 0.0
  %1284 = vmatpush1.msra.mxu0 0.0
  %1285 = vmatprep.subr.mxu0 0.0
  %1286 = vmatpush1.msra.mxu0 0.0
  %1287 = vmatprep.subr.mxu0 0.0
  %1288 = vmatpush1.msra.mxu0 0.0
  %1289 = vmatprep.subr.mxu0 0.0
  %1290 = vmatpush1.msra.mxu0 0.0
  %1291 = vmatprep.subr.mxu0 0.0
  %1292 = vmatpush1.msra.mxu0 0.0
  %1293 = vmatprep.subr.mxu0 0.0
  %1294 = vmatpush1.msra.mxu0 0.0
  %1295 = vmatprep.subr.mxu0 0.0
  %1296 = vmatpush1.msra.mxu0 0.0
  %1297 = vmatprep.mubr.f32.mxu0 0.0
  %1298 = vmatmul.mubr.f32.gmra.mrb[0].mxu0 %v1231
  %v1299 = vpop.f32.mrb[0].mxu0
  %v1300 = vadd.f32 %v1228, %v1299
  %v1301 = vpop.f32.mrb[0].mxu0
  %1302 = vdwg.mxu0
  %v1303 = vmax.f32 %v1300, 0.0
  %v1304 = vld [vmem:[%s16] sm:$0xff]
  %v1305 = vld [vmem:[%s16 + $0x8] sm:$0xff]
  %v1306 = vld [vmem:[%s16 + $0x10] sm:$0xff]
  %v1307 = vld [vmem:[%s16 + $0x18] sm:$0xff]
  %v1308 = vld [vmem:[%s16 + $0x20] sm:$0xff]
  %v1309 = vld [vmem:[%s16 + $0x28] sm:$0xff]
  %v1310 = vld [vmem:[%s16 + $0x30] sm:$0xff]
  %v1311 = vld [vmem:[%s16 + $0x38] sm:$0xff]
  %v1312 = vld [vmem:[%s17] sm:$0x1]
  %v1314 = vlaneseq
  %v1315 = vshrl.u32 %v1314, 7
  %v1316 = vsub.s32 0, %v1315
  %v1317 = vrot.slane %v1312, %v1316
  %v1320 = vsel %vm89, %v1303, 0
  %1322 = vmatprep.subr.mxu0 0.0
  %1323 = vmatpush1.msra.mxu0 %v1304
  %1324 = vmatprep.subr.mxu0 0.0
  %1325 = vmatpush1.msra.mxu0 %v1305
  %1326 = vmatprep.subr.mxu0 0.0
  %1327 = vmatpush1.msra.mxu0 %v1306
  %1328 = vmatprep.subr.mxu0 0.0
  %1329 = vmatpush1.msra.mxu0 %v1307
  %1330 = vmatprep.subr.mxu0 0.0
  %1331 = vmatpush1.msra.mxu0 %v1308
  %1332 = vmatprep.subr.mxu0 0.0
  %1333 = vmatpush1.msra.mxu0 %v1309
  %1334 = vmatprep.subr.mxu0 0.0
  %1335 = vmatpush1.msra.mxu0 %v1310
  %1336 = vmatprep.subr.mxu0 0.0
  %1337 = vmatpush1.msra.mxu0 %v1311
  %1338 = vmatprep.subr.mxu0 0.0
  %1339 = vmatpush1.msra.mxu0 0.0
  %1340 = vmatprep.subr.mxu0 0.0
  %1341 = vmatpush1.msra.mxu0 0.0
  %1342 = vmatprep.subr.mxu0 0.0
  %1343 = vmatpush1.msra.mxu0 0.0
  %1344 = vmatprep.subr.mxu0 0.0
  %1345 = vmatpush1.msra.mxu0 0.0
  %1346 = vmatprep.subr.mxu0 0.0
  %1347 = vmatpush1.msra.mxu0 0.0
  %1348 = vmatprep.subr.mxu0 0.0
  %1349 = vmatpush1.msra.mxu0 0.0
  %1350 = vmatprep.subr.mxu0 0.0
  %1351 = vmatpush1.msra.mxu0 0.0
  %1352 = vmatprep.subr.mxu0 0.0
  %1353 = vmatpush1.msra.mxu0 0.0
  %1354 = vmatprep.subr.mxu0 0.0
  %1355 = vmatpush1.msra.mxu0 0.0
  %1356 = vmatprep.subr.mxu0 0.0
  %1357 = vmatpush1.msra.mxu0 0.0
  %1358 = vmatprep.subr.mxu0 0.0
  %1359 = vmatpush1.msra.mxu0 0.0
  %1360 = vmatprep.subr.mxu0 0.0
  %1361 = vmatpush1.msra.mxu0 0.0
  %1362 = vmatprep.subr.mxu0 0.0
  %1363 = vmatpush1.msra.mxu0 0.0
  %1364 = vmatprep.subr.mxu0 0.0
  %1365 = vmatpush1.msra.mxu0 0.0
  %1366 = vmatprep.subr.mxu0 0.0
  %1367 = vmatpush1.msra.mxu0 0.0
  %1368 = vmatprep.subr.mxu0 0.0
  %1369 = vmatpush1.msra.mxu0 0.0
  %1370 = vmatprep.subr.mxu0 0.0
  %1371 = vmatpush1.msra.mxu0 0.0
  %1372 = vmatprep.subr.mxu0 0.0
  %1373 = vmatpush1.msra.mxu0 0.0
  %1374 = vmatprep.subr.mxu0 0.0
  %1375 = vmatpush1.msra.mxu0 0.0
  %1376 = vmatprep.subr.mxu0 0.0
  %1377 = vmatpush1.msra.mxu0 0.0
  %1378 = vmatprep.subr.mxu0 0.0
  %1379 = vmatpush1.msra.mxu0 0.0
  %1380 = vmatprep.subr.mxu0 0.0
  %1381 = vmatpush1.msra.mxu0 0.0
  %1382 = vmatprep.subr.mxu0 0.0
  %1383 = vmatpush1.msra.mxu0 0.0
  %1384 = vmatprep.subr.mxu0 0.0
  %1385 = vmatpush1.msra.mxu0 0.0
  %1386 = vmatprep.mubr.f32.mxu0 0.0
  %1387 = vmatmul.mubr.f32.gmra.mrb[0].mxu0 %v1320
  %v1388 = vpop.f32.mrb[0].mxu0
  %v1389 = vadd.f32 %v1317, %v1388
  %v1390 = vpop.f32.mrb[0].mxu0
  %1391 = vdwg.mxu0
  %v1392 = vadd.f32 %v1389, %v1218
  %v1393 = vld [vmem:[%s18] sm:$0x1]
  %v1394 = vld [vmem:[%s19] sm:$0x1]
  %v1395 = vsel %vm71, %v1392, 0.0
  %1396 = vadd.xlane.f32.xlu0 %v1395
  %v1397 = vpop.xlane.xlu0 %1396
  %v1398 = vmul.f32 %v1397, %v588
  %v1399 = vsub.f32 %v1392, %v1398
  %v1400 = vmul.f32 %v1399, %v1399
  %v1401 = vsel %vm71, %v1400, 0.0
  %1402 = vadd.xlane.f32.xlu0 %v1401
  %v1403 = vpop.xlane.xlu0 %1402
  %v1404 = vmul.f32 %v1403, %v588
  %v1405 = vadd.f32 %v1404, 1e-06
  %v1406 = vrsqrt.pop %v1405
  %v1407 = vmul.f32 %v1399, %v1406
  %v1409 = vlaneseq
  %v1410 = vshrl.u32 %v1409, 7
  %v1411 = vsub.s32 0, %v1410
  %v1412 = vrot.slane %v1393, %v1411
  %v1414 = vmul.f32 %v1407, %v1412
  %v1416 = vlaneseq
  %v1417 = vshrl.u32 %v1416, 7
  %v1418 = vsub.s32 0, %v1417
  %v1419 = vrot.slane %v1394, %v1418
  %v1421 = vadd.f32 %v1414, %v1419
  %1422 = vst.msk [vmem:[%s20] sm:$0xff] %vm71, %v1421
  // Predicated region
  $region82: #{_lambda_.5} parent=0 // pred_check
    _
  $region83: #{_lambda_.5} parent=0 // pred_check_branch
    %1424 = sbr.rel (0) target = $region85
  $region84: #{_lambda_.5} parent=0 // pred_region
    _
  $region85: #{_lambda_.5} parent=0 // pred_fallthru
    _
  // Predicated region
  $region86: #{_lambda_.5} parent=0 // pred_check
    _
  $region87: #{_lambda_.5} parent=0 // pred_check_branch
    %1426 = sbr.rel (0) target = $region89
  $region88: #{_lambda_.5} parent=0 // pred_region
    _
  $region89: #{_lambda_.5} parent=0 // pred_fallthru
    _

</llo_original>
